<compile_context>
chip_gen: v7x
topology: tpu7x:2x2x1
jax: 0.10.0
libtpu: 0.0.40
codegen_flags: <defaults>
</compile_context>

<pallas_src>
import functools

import jax
import jax.numpy as jnp
from jax.experimental import pallas as pl
from jax.experimental.pallas import tpu as pltpu


# ----------------------------- Fused kernel ------------------------------- #
def _fused_kernel(xs_ref, w1_ref, b1_ref, w2_ref, b2_ref, w3_ref, b3_ref,
                  wf1_ref, bf1_ref, wf2_ref, bf2_ref,
                  out_ref,
                  a1_ref, a1w_ref, rows2_ref, a2_ref, rows3_ref, a3_ref,
                  fcin_ref):
    f32 = jnp.float32
    bf16 = jnp.bfloat16
    bt = out_ref.shape[0]                    # batch tile

    # ---- conv1: 8x8 / stride 4.  Wrapper already built the (bt*64, 64C) im2col
    # (rows ordered (b, p, q); K ordered (ki, kj, c)); single MXU dot.
    acc1 = jnp.dot(xs_ref[...], w1_ref[...], preferred_element_type=f32)
    a1 = jnp.maximum(acc1 + b1_ref[...], 0.0).astype(bf16)        # (bt*64, 32)
    a1_ref[...] = a1.reshape(bt, 8, 8, 32)                        # [b, row, col, ch]

    # Repack act1 so (col, ch) is lane-contiguous: a1w[b, r, q*32 + c].
    for q in range(8):
        a1w_ref[:, :, q * 32:(q + 1) * 32] = a1_ref[:, :, q, :]

    # ---- conv2: 4x4 / stride 2, computed only on the valid 3x3 output grid.
    # Row (u*3+v)*bt + b of the im2col holds the flattened (ki, kj, c) window;
    # for kernel row ki the 4 taps x 32 ch are one contiguous 128-lane slice.
    for u in range(3):
        for v in range(3):
            r = (u * 3 + v) * bt
            for i in range(4):
                rows2_ref[r:r + bt, i * 128:(i + 1) * 128] = \
                    a1w_ref[:, 2 * u + i, 64 * v:64 * v + 128]
    acc2 = jnp.dot(rows2_ref[...], w2_ref[...], preferred_element_type=f32)
    a2_ref[...] = jnp.maximum(acc2 + b2_ref[...], 0.0).astype(bf16)   # (9*bt, 64)

    # ---- conv3: 2x2 / stride 1 over the 3x3 conv2 grid -> (4*bt, 256) im2col.
    for p3 in range(2):
        for q3 in range(2):
            r = (p3 * 2 + q3) * bt
            for i in range(2):
                for j in range(2):
                    s = ((p3 + i) * 3 + (q3 + j)) * bt
                    rows3_ref[r:r + bt, (i * 2 + j) * 64:(i * 2 + j + 1) * 64] = \
                        a2_ref[s:s + bt, :]
    acc3 = jnp.dot(rows3_ref[...], w3_ref[...], preferred_element_type=f32)
    a3_ref[...] = jnp.maximum(acc3 + b3_ref[...], 0.0).astype(bf16)   # (4*bt, 64)

    # ---- fc1: regroup conv3 outputs per image; feature order (p, q, oc)
    # matches the pre-permuted wf1 rows -> single dot.
    for k in range(4):
        fcin_ref[:, k * 64:(k + 1) * 64] = a3_ref[k * bt:(k + 1) * bt, :]
    h = jnp.maximum(jnp.dot(fcin_ref[...], wf1_ref[...],
                            preferred_element_type=f32) + bf1_ref[...],
                    0.0).astype(bf16)                                  # (bt, 512)

    # ---- fc2 (N padded to 128 lanes for a lane-dense final store) ----
    out_ref[...] = jnp.dot(h, wf2_ref[...],
                           preferred_element_type=f32) + bf2_ref[...]


def _pick_batch_tile(batch):
    for bt in (32, 16, 8):
        if batch % bt == 0:
            return bt
    return batch            # small / odd batches run as one tile (grid = (1,))


def fused_forward(x1, pp):
    """x1: (B*64, 64*C) bf16 conv1-im2col; pp: prepared params."""
    rows, k1 = x1.shape
    B = rows // 64
    bt = _pick_batch_tile(B)
    n_pad = pp["wf2"].shape[1]
    hidden = pp["wf1"].shape[1]

    weight_args = (pp["w1"], pp["b1"], pp["w2"], pp["b2"], pp["w3"], pp["b3"],
                   pp["wf1"], pp["bf1"], pp["wf2"], pp["bf2"])

    in_specs = [pl.BlockSpec((bt * 64, k1), lambda i: (i, 0))]
    in_specs += [pl.BlockSpec(w.shape, lambda i: (0, 0)) for w in weight_args]
    out_spec = pl.BlockSpec((bt, n_pad), lambda i: (i, 0))

    flops = 2 * B * (64 * k1 * 32 + 9 * 512 * 64 + 4 * 256 * 64
                     + 256 * hidden + hidden * n_pad)
    bytes_accessed = (x1.size * x1.dtype.itemsize
                      + sum(int(w.size) * w.dtype.itemsize for w in weight_args)
                      + B * n_pad * 4)

    return pl.pallas_call(
        _fused_kernel,
        out_shape=jax.ShapeDtypeStruct((B, n_pad), jnp.float32),
        grid=(B // bt,),
        in_specs=in_specs,
        out_specs=out_spec,
        scratch_shapes=[
            pltpu.VMEM((bt, 8, 8, 32), jnp.bfloat16),   # act1
            pltpu.VMEM((bt, 8, 256), jnp.bfloat16),     # act1, (col,ch) merged
            pltpu.VMEM((9 * bt, 512), jnp.bfloat16),    # conv2 im2col
            pltpu.VMEM((9 * bt, 64), jnp.bfloat16),     # conv2 output (u,v,b rows)
            pltpu.VMEM((4 * bt, 256), jnp.bfloat16),    # conv3 im2col
            pltpu.VMEM((4 * bt, 64), jnp.bfloat16),     # conv3 output (p,q,b rows)
            pltpu.VMEM((bt, 256), jnp.bfloat16),        # fc1 input
        ],
        compiler_params=pltpu.CompilerParams(
            dimension_semantics=("parallel",)),
        cost_estimate=pl.CostEstimate(flops=flops, transcendentals=0,
                                      bytes_accessed=bytes_accessed),
    )(x1, *weight_args)


# --------------------------- Parameter handling ---------------------------- #
def init_params(key, in_dim, out_dim):
    """PyTorch-style (default-ish init) parameters, conv weights in OIHW."""
    c = in_dim[0]
    ks = jax.random.split(key, 10)

    def u(k, shape, fan_in):
        bound = 1.0 / jnp.sqrt(fan_in)
        return jax.random.uniform(k, shape, jnp.float32, -bound, bound)

    p = {}
    p["w1"] = u(ks[0], (32, c, 8, 8), c * 8 * 8)
    p["b1"] = u(ks[1], (32,), c * 8 * 8)
    p["w2"] = u(ks[2], (64, 32, 4, 4), 32 * 4 * 4)
    p["b2"] = u(ks[3], (64,), 32 * 4 * 4)
    p["w3"] = u(ks[4], (64, 64, 2, 2), 64 * 2 * 2)
    p["b3"] = u(ks[5], (64,), 64 * 2 * 2)

    h = in_dim[1]
    o1 = (h - 8) // 4 + 1
    o2 = (o1 - 4) // 2 + 1
    o3 = (o2 - 2) // 1 + 1
    conv_out = 64 * o3 * o3          # analytic _get_conv_out

    p["wf1"] = u(ks[6], (conv_out, 512), conv_out)   # stored as (in, out)
    p["bf1"] = u(ks[7], (512,), conv_out)
    p["wf2"] = u(ks[8], (512, out_dim), 512)
    p["bf2"] = u(ks[9], (out_dim,), 512)
    return p


def prepare_params(p, n_pad=128):
    """One-time preprocessing into matmul-ready, kernel-layout weights."""
    f32, bf16 = jnp.float32, jnp.bfloat16
    C = p["w1"].shape[1]

    # Each conv weight becomes one (K, OC) matrix, rows ordered (ki, kj, ic).
    w1 = p["w1"].transpose(2, 3, 1, 0).reshape(8 * 8 * C, 32)
    w2 = p["w2"].transpose(2, 3, 1, 0).reshape(4 * 4 * 32, 64)
    w3 = p["w3"].transpose(2, 3, 1, 0).reshape(2 * 2 * 64, 64)

    # fc1: PyTorch NCHW flatten order is (oc, p, q); kernel feeds (p, q, oc),
    # so permute the weight rows accordingly (free at prep time).
    conv_out, hidden = p["wf1"].shape                          # (256, 512)
    n_sp = conv_out // 64                                      # 4 spatial positions
    wf1 = p["wf1"].reshape(64, n_sp, hidden).transpose(1, 0, 2).reshape(conv_out, hidden)

    # fc2: zero-pad N (out_dim) up to 128 lanes.
    out_dim = p["wf2"].shape[1]
    wf2 = jnp.zeros((hidden, n_pad), f32).at[:, :out_dim].set(p["wf2"])
    bf2 = jnp.zeros((1, n_pad), f32).at[0, :out_dim].set(p["bf2"])

    return {
        "w1": w1.astype(bf16), "b1": p["b1"].reshape(1, -1).astype(f32),
        "w2": w2.astype(bf16), "b2": p["b2"].reshape(1, -1).astype(f32),
        "w3": w3.astype(bf16), "b3": p["b3"].reshape(1, -1).astype(f32),
        "wf1": wf1.astype(bf16), "bf1": p["bf1"].reshape(1, -1).astype(f32),
        "wf2": wf2.astype(bf16), "bf2": bf2,
    }


# ------------------------------ Forward ------------------------------------ #
def _forward(pp, state, out_dim):
    # state.clone().detach().to(float) -> cast; conv1 im2col is layout plumbing
    # on the tiny input (41 KiB), fused by XLA inside the same jit.
    x = state.astype(jnp.float32)                     # (B, C, H, W)
    B, C, H, W = x.shape
    assert H == 36 and W == 36, "fused kernel is specialized to 36x36 inputs"
    x = x.transpose(0, 2, 3, 1)                       # NHWC
    r = 4 * jnp.arange(8)[:, None] + jnp.arange(8)[None, :]   # (p, ki) -> 4p+ki
    pat = x[:, r, :, :]                               # (B, 8, 8, 36, C)  [b,p,ki,col,c]
    pat = pat[:, :, :, r, :]                          # (B, 8, 8, 8, 8, C)[b,p,ki,q,kj,c]
    pat = pat.transpose(0, 1, 3, 2, 4, 5)             # (B, p, q, ki, kj, c)
    x1 = pat.reshape(B * 64, 64 * C).astype(jnp.bfloat16)
    # TODO(synk): observations are cast to bf16 before the conv1 MXU dot
    # (identical to the MXU operand precision used throughout; fine for RL).
    out = fused_forward(x1, pp)                       # (B, 128)
    return out[:, :out_dim]


# ---------------------------- Reference check ------------------------------ #
def forward_ref(params, state):
    x = state.astype(jnp.float32)

    def conv(x, w, b, s):
        y = jax.lax.conv_general_dilated(
            x, w, window_strides=(s, s), padding="VALID",
            dimension_numbers=("NCHW", "OIHW", "NCHW"))
        return jax.nn.relu(y + b[None, :, None, None])

    x = conv(x, params["w1"], params["b1"], 4)
    x = conv(x, params["w2"], params["b2"], 2)
    x = conv(x, params["w3"], params["b3"], 1)
    x = x.reshape(x.shape[0], -1)
    x = jax.nn.relu(x @ params["wf1"] + params["bf1"])
    return x @ params["wf2"] + params["bf2"]


if __name__ == "__main__":
    in_dim = (4, 36, 36)   # (C, H, W); spatial 36 -> 8 -> 3 -> 2, conv_out = 256
    out_dim = 6
    batch = 2

    key = jax.random.PRNGKey(0)
    k_param, k_state = jax.random.split(key)
    params = init_params(k_param, in_dim, out_dim)
    state = jax.random.normal(k_state, (batch,) + in_dim, dtype=jnp.float32)

    prepped = prepare_params(params)
    fwd = jax.jit(functools.partial(_forward, out_dim=out_dim))

    out = fwd(prepped, state)
    out = jax.block_until_ready(out)

    ref = forward_ref(params, state)
    assert out.shape == (batch, out_dim), out.shape
    # bf16 MXU operands with f32 accumulation -> loosened tolerance vs f32 ref.
    assert jnp.allclose(out, ref, atol=1e-2, rtol=5e-2), (
        "mismatch vs reference, max abs err = %f"
        % float(jnp.max(jnp.abs(out - ref))))

    print("KERNEL_OK")
</pallas_src>

<mosaic_0001>
module attributes {stable_mosaic.version = 11 : i64} {
  func.func @_fused_kernel(%arg0: i32, %arg1: memref<128x256xbf16, #tpu.memory_space<vmem>>, %arg2: memref<256x32xbf16, #tpu.memory_space<vmem>>, %arg3: memref<1x32xf32, #tpu.memory_space<vmem>>, %arg4: memref<512x64xbf16, #tpu.memory_space<vmem>>, %arg5: memref<1x64xf32, #tpu.memory_space<vmem>>, %arg6: memref<256x64xbf16, #tpu.memory_space<vmem>>, %arg7: memref<1x64xf32, #tpu.memory_space<vmem>>, %arg8: memref<256x512xbf16, #tpu.memory_space<vmem>>, %arg9: memref<1x512xf32, #tpu.memory_space<vmem>>, %arg10: memref<512x128xbf16, #tpu.memory_space<vmem>>, %arg11: memref<1x128xf32, #tpu.memory_space<vmem>>, %arg12: memref<2x128xf32, #tpu.memory_space<vmem>>, %arg13: memref<2x8x8x32xbf16, #tpu.memory_space<vmem>>, %arg14: memref<2x8x256xbf16, #tpu.memory_space<vmem>>, %arg15: memref<18x512xbf16, #tpu.memory_space<vmem>>, %arg16: memref<18x64xbf16, #tpu.memory_space<vmem>>, %arg17: memref<8x256xbf16, #tpu.memory_space<vmem>>, %arg18: memref<8x64xbf16, #tpu.memory_space<vmem>>, %arg19: memref<2x256xbf16, #tpu.memory_space<vmem>>) attributes {dimension_semantics = [#tpu.dimension_semantics<parallel>], iteration_bounds = array<i64: 1>, scalar_prefetch = 0 : i64, scratch_operands = 7 : i64, tpu.core_type = #tpu.core_type<tc>, window_params = [{transform_indices = @transform_0, window_bounds = array<i64: 128, 256>}, {pipeline_mode = #tpu.pipeline_mode<synchronous>, transform_indices = @transform_1, window_bounds = array<i64: 256, 32>}, {pipeline_mode = #tpu.pipeline_mode<synchronous>, transform_indices = @transform_2, window_bounds = array<i64: 1, 32>}, {pipeline_mode = #tpu.pipeline_mode<synchronous>, transform_indices = @transform_3, window_bounds = array<i64: 512, 64>}, {pipeline_mode = #tpu.pipeline_mode<synchronous>, transform_indices = @transform_4, window_bounds = array<i64: 1, 64>}, {pipeline_mode = #tpu.pipeline_mode<synchronous>, transform_indices = @transform_5, window_bounds = array<i64: 256, 64>}, {pipeline_mode = #tpu.pipeline_mode<synchronous>, transform_indices = @transform_6, window_bounds = array<i64: 1, 64>}, {pipeline_mode = #tpu.pipeline_mode<synchronous>, transform_indices = @transform_7, window_bounds = array<i64: 256, 512>}, {pipeline_mode = #tpu.pipeline_mode<synchronous>, transform_indices = @transform_8, window_bounds = array<i64: 1, 512>}, {pipeline_mode = #tpu.pipeline_mode<synchronous>, transform_indices = @transform_9, window_bounds = array<i64: 512, 128>}, {pipeline_mode = #tpu.pipeline_mode<synchronous>, transform_indices = @transform_10, window_bounds = array<i64: 1, 128>}, {transform_indices = @transform_11, window_bounds = array<i64: 2, 128>}]} {
    %c0 = arith.constant 0 : index
    %c0_0 = arith.constant 0 : index
    %0 = vector.load %arg1[%c0, %c0_0] : memref<128x256xbf16, #tpu.memory_space<vmem>>, vector<128x256xbf16>
    %c0_1 = arith.constant 0 : index
    %c0_2 = arith.constant 0 : index
    %1 = vector.load %arg2[%c0_1, %c0_2] : memref<256x32xbf16, #tpu.memory_space<vmem>>, vector<256x32xbf16>
    %cst = arith.constant dense<0.000000e+00> : vector<128x32xf32>
    %2 = tpu.matmul %0, %1, %cst {dimension_numbers = #tpu.dot_dimension_numbers<[1], [0], [0], [1], [0, 0, 1, 1], [], []>} : vector<128x256xbf16>, vector<256x32xbf16>, vector<128x32xf32> -> vector<128x32xf32>
    %c0_3 = arith.constant 0 : index
    %c0_4 = arith.constant 0 : index
    %3 = vector.load %arg3[%c0_3, %c0_4] : memref<1x32xf32, #tpu.memory_space<vmem>>, vector<1x32xf32>
    %4 = vector.broadcast %3 : vector<1x32xf32> to vector<128x32xf32>
    %5 = arith.addf %2, %4 : vector<128x32xf32>
    %cst_5 = arith.constant 0.000000e+00 : f32
    %6 = vector.broadcast %cst_5 : f32 to vector<128x32xf32>
    %7 = arith.maximumf %5, %6 : vector<128x32xf32>
    %8 = arith.truncf %7 : vector<128x32xf32> to vector<128x32xbf16>
    %9 = vector.shape_cast %8 : vector<128x32xbf16> to vector<2x8x8x32xbf16>
    %c0_6 = arith.constant 0 : index
    %c0_7 = arith.constant 0 : index
    %c0_8 = arith.constant 0 : index
    %c0_9 = arith.constant 0 : index
    %10 = vector.load %arg13[%c0_6, %c0_7, %c0_8, %c0_9] : memref<2x8x8x32xbf16, #tpu.memory_space<vmem>>, vector<2x8x8x32xbf16>
    tpu.vector_store %arg13[%c0_6, %c0_7, %c0_8, %c0_9], %9 {strides = array<i32>} : memref<2x8x8x32xbf16, #tpu.memory_space<vmem>>, vector<2x8x8x32xbf16>,
    %c0_10 = arith.constant 0 : index
    %c0_11 = arith.constant 0 : index
    %c0_12 = arith.constant 0 : index
    %c0_13 = arith.constant 0 : index
    %11 = vector.load %arg13[%c0_10, %c0_11, %c0_12, %c0_13] : memref<2x8x8x32xbf16, #tpu.memory_space<vmem>>, vector<2x8x1x32xbf16>
    %12 = vector.shape_cast %11 : vector<2x8x1x32xbf16> to vector<2x8x32xbf16>
    %c0_14 = arith.constant 0 : index
    %c0_15 = arith.constant 0 : index
    %c0_16 = arith.constant 0 : index
    %13 = vector.load %arg14[%c0_14, %c0_15, %c0_16] : memref<2x8x256xbf16, #tpu.memory_space<vmem>>, vector<2x8x32xbf16>
    tpu.vector_store %arg14[%c0_14, %c0_15, %c0_16], %12 {strides = array<i32>} : memref<2x8x256xbf16, #tpu.memory_space<vmem>>, vector<2x8x32xbf16>,
    %c0_17 = arith.constant 0 : index
    %c0_18 = arith.constant 0 : index
    %c1 = arith.constant 1 : index
    %c0_19 = arith.constant 0 : index
    %14 = vector.load %arg13[%c0_17, %c0_18, %c1, %c0_19] : memref<2x8x8x32xbf16, #tpu.memory_space<vmem>>, vector<2x8x1x32xbf16>
    %15 = vector.shape_cast %14 : vector<2x8x1x32xbf16> to vector<2x8x32xbf16>
    %c0_20 = arith.constant 0 : index
    %c0_21 = arith.constant 0 : index
    %c32 = arith.constant 32 : index
    %16 = vector.load %arg14[%c0_20, %c0_21, %c32] : memref<2x8x256xbf16, #tpu.memory_space<vmem>>, vector<2x8x32xbf16>
    tpu.vector_store %arg14[%c0_20, %c0_21, %c32], %15 {strides = array<i32>} : memref<2x8x256xbf16, #tpu.memory_space<vmem>>, vector<2x8x32xbf16>,
    %c0_22 = arith.constant 0 : index
    %c0_23 = arith.constant 0 : index
    %c2 = arith.constant 2 : index
    %c0_24 = arith.constant 0 : index
    %17 = vector.load %arg13[%c0_22, %c0_23, %c2, %c0_24] : memref<2x8x8x32xbf16, #tpu.memory_space<vmem>>, vector<2x8x1x32xbf16>
    %18 = vector.shape_cast %17 : vector<2x8x1x32xbf16> to vector<2x8x32xbf16>
    %c0_25 = arith.constant 0 : index
    %c0_26 = arith.constant 0 : index
    %c64 = arith.constant 64 : index
    %19 = vector.load %arg14[%c0_25, %c0_26, %c64] : memref<2x8x256xbf16, #tpu.memory_space<vmem>>, vector<2x8x32xbf16>
    tpu.vector_store %arg14[%c0_25, %c0_26, %c64], %18 {strides = array<i32>} : memref<2x8x256xbf16, #tpu.memory_space<vmem>>, vector<2x8x32xbf16>,
    %c0_27 = arith.constant 0 : index
    %c0_28 = arith.constant 0 : index
    %c3 = arith.constant 3 : index
    %c0_29 = arith.constant 0 : index
    %20 = vector.load %arg13[%c0_27, %c0_28, %c3, %c0_29] : memref<2x8x8x32xbf16, #tpu.memory_space<vmem>>, vector<2x8x1x32xbf16>
    %21 = vector.shape_cast %20 : vector<2x8x1x32xbf16> to vector<2x8x32xbf16>
    %c0_30 = arith.constant 0 : index
    %c0_31 = arith.constant 0 : index
    %c96 = arith.constant 96 : index
    %22 = vector.load %arg14[%c0_30, %c0_31, %c96] : memref<2x8x256xbf16, #tpu.memory_space<vmem>>, vector<2x8x32xbf16>
    tpu.vector_store %arg14[%c0_30, %c0_31, %c96], %21 {strides = array<i32>} : memref<2x8x256xbf16, #tpu.memory_space<vmem>>, vector<2x8x32xbf16>,
    %c0_32 = arith.constant 0 : index
    %c0_33 = arith.constant 0 : index
    %c4 = arith.constant 4 : index
    %c0_34 = arith.constant 0 : index
    %23 = vector.load %arg13[%c0_32, %c0_33, %c4, %c0_34] : memref<2x8x8x32xbf16, #tpu.memory_space<vmem>>, vector<2x8x1x32xbf16>
    %24 = vector.shape_cast %23 : vector<2x8x1x32xbf16> to vector<2x8x32xbf16>
    %c0_35 = arith.constant 0 : index
    %c0_36 = arith.constant 0 : index
    %c128 = arith.constant 128 : index
    %25 = vector.load %arg14[%c0_35, %c0_36, %c128] : memref<2x8x256xbf16, #tpu.memory_space<vmem>>, vector<2x8x32xbf16>
    tpu.vector_store %arg14[%c0_35, %c0_36, %c128], %24 {strides = array<i32>} : memref<2x8x256xbf16, #tpu.memory_space<vmem>>, vector<2x8x32xbf16>,
    %c0_37 = arith.constant 0 : index
    %c0_38 = arith.constant 0 : index
    %c5 = arith.constant 5 : index
    %c0_39 = arith.constant 0 : index
    %26 = vector.load %arg13[%c0_37, %c0_38, %c5, %c0_39] : memref<2x8x8x32xbf16, #tpu.memory_space<vmem>>, vector<2x8x1x32xbf16>
    %27 = vector.shape_cast %26 : vector<2x8x1x32xbf16> to vector<2x8x32xbf16>
    %c0_40 = arith.constant 0 : index
    %c0_41 = arith.constant 0 : index
    %c160 = arith.constant 160 : index
    %28 = vector.load %arg14[%c0_40, %c0_41, %c160] : memref<2x8x256xbf16, #tpu.memory_space<vmem>>, vector<2x8x32xbf16>
    tpu.vector_store %arg14[%c0_40, %c0_41, %c160], %27 {strides = array<i32>} : memref<2x8x256xbf16, #tpu.memory_space<vmem>>, vector<2x8x32xbf16>,
    %c0_42 = arith.constant 0 : index
    %c0_43 = arith.constant 0 : index
    %c6 = arith.constant 6 : index
    %c0_44 = arith.constant 0 : index
    %29 = vector.load %arg13[%c0_42, %c0_43, %c6, %c0_44] : memref<2x8x8x32xbf16, #tpu.memory_space<vmem>>, vector<2x8x1x32xbf16>
    %30 = vector.shape_cast %29 : vector<2x8x1x32xbf16> to vector<2x8x32xbf16>
    %c0_45 = arith.constant 0 : index
    %c0_46 = arith.constant 0 : index
    %c192 = arith.constant 192 : index
    %31 = vector.load %arg14[%c0_45, %c0_46, %c192] : memref<2x8x256xbf16, #tpu.memory_space<vmem>>, vector<2x8x32xbf16>
    tpu.vector_store %arg14[%c0_45, %c0_46, %c192], %30 {strides = array<i32>} : memref<2x8x256xbf16, #tpu.memory_space<vmem>>, vector<2x8x32xbf16>,
    %c0_47 = arith.constant 0 : index
    %c0_48 = arith.constant 0 : index
    %c7 = arith.constant 7 : index
    %c0_49 = arith.constant 0 : index
    %32 = vector.load %arg13[%c0_47, %c0_48, %c7, %c0_49] : memref<2x8x8x32xbf16, #tpu.memory_space<vmem>>, vector<2x8x1x32xbf16>
    %33 = vector.shape_cast %32 : vector<2x8x1x32xbf16> to vector<2x8x32xbf16>
    %c0_50 = arith.constant 0 : index
    %c0_51 = arith.constant 0 : index
    %c224 = arith.constant 224 : index
    %34 = vector.load %arg14[%c0_50, %c0_51, %c224] : memref<2x8x256xbf16, #tpu.memory_space<vmem>>, vector<2x8x32xbf16>
    tpu.vector_store %arg14[%c0_50, %c0_51, %c224], %33 {strides = array<i32>} : memref<2x8x256xbf16, #tpu.memory_space<vmem>>, vector<2x8x32xbf16>,
    %c0_52 = arith.constant 0 : index
    %c0_53 = arith.constant 0 : index
    %c0_54 = arith.constant 0 : index
    %35 = vector.load %arg14[%c0_52, %c0_53, %c0_54] : memref<2x8x256xbf16, #tpu.memory_space<vmem>>, vector<2x1x128xbf16>
    %36 = vector.shape_cast %35 : vector<2x1x128xbf16> to vector<2x128xbf16>
    %c0_55 = arith.constant 0 : index
    %c0_56 = arith.constant 0 : index
    %37 = vector.load %arg15[%c0_55, %c0_56] : memref<18x512xbf16, #tpu.memory_space<vmem>>, vector<2x128xbf16>
    tpu.vector_store %arg15[%c0_55, %c0_56], %36 {strides = array<i32>} : memref<18x512xbf16, #tpu.memory_space<vmem>>, vector<2x128xbf16>,
    %c0_57 = arith.constant 0 : index
    %c1_58 = arith.constant 1 : index
    %c0_59 = arith.constant 0 : index
    %38 = vector.load %arg14[%c0_57, %c1_58, %c0_59] : memref<2x8x256xbf16, #tpu.memory_space<vmem>>, vector<2x1x128xbf16>
    %39 = vector.shape_cast %38 : vector<2x1x128xbf16> to vector<2x128xbf16>
    %c0_60 = arith.constant 0 : index
    %c128_61 = arith.constant 128 : index
    %40 = vector.load %arg15[%c0_60, %c128_61] : memref<18x512xbf16, #tpu.memory_space<vmem>>, vector<2x128xbf16>
    tpu.vector_store %arg15[%c0_60, %c128_61], %39 {strides = array<i32>} : memref<18x512xbf16, #tpu.memory_space<vmem>>, vector<2x128xbf16>,
    %c0_62 = arith.constant 0 : index
    %c2_63 = arith.constant 2 : index
    %c0_64 = arith.constant 0 : index
    %41 = vector.load %arg14[%c0_62, %c2_63, %c0_64] : memref<2x8x256xbf16, #tpu.memory_space<vmem>>, vector<2x1x128xbf16>
    %42 = vector.shape_cast %41 : vector<2x1x128xbf16> to vector<2x128xbf16>
    %c0_65 = arith.constant 0 : index
    %c256 = arith.constant 256 : index
    %43 = vector.load %arg15[%c0_65, %c256] : memref<18x512xbf16, #tpu.memory_space<vmem>>, vector<2x128xbf16>
    tpu.vector_store %arg15[%c0_65, %c256], %42 {strides = array<i32>} : memref<18x512xbf16, #tpu.memory_space<vmem>>, vector<2x128xbf16>,
    %c0_66 = arith.constant 0 : index
    %c3_67 = arith.constant 3 : index
    %c0_68 = arith.constant 0 : index
    %44 = vector.load %arg14[%c0_66, %c3_67, %c0_68] : memref<2x8x256xbf16, #tpu.memory_space<vmem>>, vector<2x1x128xbf16>
    %45 = vector.shape_cast %44 : vector<2x1x128xbf16> to vector<2x128xbf16>
    %c0_69 = arith.constant 0 : index
    %c384 = arith.constant 384 : index
    %46 = vector.load %arg15[%c0_69, %c384] : memref<18x512xbf16, #tpu.memory_space<vmem>>, vector<2x128xbf16>
    tpu.vector_store %arg15[%c0_69, %c384], %45 {strides = array<i32>} : memref<18x512xbf16, #tpu.memory_space<vmem>>, vector<2x128xbf16>,
    %c0_70 = arith.constant 0 : index
    %c0_71 = arith.constant 0 : index
    %c64_72 = arith.constant 64 : index
    %47 = vector.load %arg14[%c0_70, %c0_71, %c64_72] : memref<2x8x256xbf16, #tpu.memory_space<vmem>>, vector<2x1x128xbf16>
    %48 = vector.shape_cast %47 : vector<2x1x128xbf16> to vector<2x128xbf16>
    %c2_73 = arith.constant 2 : index
    %c0_74 = arith.constant 0 : index
    %49 = vector.load %arg15[%c2_73, %c0_74] : memref<18x512xbf16, #tpu.memory_space<vmem>>, vector<2x128xbf16>
    tpu.vector_store %arg15[%c2_73, %c0_74], %48 {strides = array<i32>} : memref<18x512xbf16, #tpu.memory_space<vmem>>, vector<2x128xbf16>,
    %c0_75 = arith.constant 0 : index
    %c1_76 = arith.constant 1 : index
    %c64_77 = arith.constant 64 : index
    %50 = vector.load %arg14[%c0_75, %c1_76, %c64_77] : memref<2x8x256xbf16, #tpu.memory_space<vmem>>, vector<2x1x128xbf16>
    %51 = vector.shape_cast %50 : vector<2x1x128xbf16> to vector<2x128xbf16>
    %c2_78 = arith.constant 2 : index
    %c128_79 = arith.constant 128 : index
    %52 = vector.load %arg15[%c2_78, %c128_79] : memref<18x512xbf16, #tpu.memory_space<vmem>>, vector<2x128xbf16>
    tpu.vector_store %arg15[%c2_78, %c128_79], %51 {strides = array<i32>} : memref<18x512xbf16, #tpu.memory_space<vmem>>, vector<2x128xbf16>,
    %c0_80 = arith.constant 0 : index
    %c2_81 = arith.constant 2 : index
    %c64_82 = arith.constant 64 : index
    %53 = vector.load %arg14[%c0_80, %c2_81, %c64_82] : memref<2x8x256xbf16, #tpu.memory_space<vmem>>, vector<2x1x128xbf16>
    %54 = vector.shape_cast %53 : vector<2x1x128xbf16> to vector<2x128xbf16>
    %c2_83 = arith.constant 2 : index
    %c256_84 = arith.constant 256 : index
    %55 = vector.load %arg15[%c2_83, %c256_84] : memref<18x512xbf16, #tpu.memory_space<vmem>>, vector<2x128xbf16>
    tpu.vector_store %arg15[%c2_83, %c256_84], %54 {strides = array<i32>} : memref<18x512xbf16, #tpu.memory_space<vmem>>, vector<2x128xbf16>,
    %c0_85 = arith.constant 0 : index
    %c3_86 = arith.constant 3 : index
    %c64_87 = arith.constant 64 : index
    %56 = vector.load %arg14[%c0_85, %c3_86, %c64_87] : memref<2x8x256xbf16, #tpu.memory_space<vmem>>, vector<2x1x128xbf16>
    %57 = vector.shape_cast %56 : vector<2x1x128xbf16> to vector<2x128xbf16>
    %c2_88 = arith.constant 2 : index
    %c384_89 = arith.constant 384 : index
    %58 = vector.load %arg15[%c2_88, %c384_89] : memref<18x512xbf16, #tpu.memory_space<vmem>>, vector<2x128xbf16>
    tpu.vector_store %arg15[%c2_88, %c384_89], %57 {strides = array<i32>} : memref<18x512xbf16, #tpu.memory_space<vmem>>, vector<2x128xbf16>,
    %c0_90 = arith.constant 0 : index
    %c0_91 = arith.constant 0 : index
    %c128_92 = arith.constant 128 : index
    %59 = vector.load %arg14[%c0_90, %c0_91, %c128_92] : memref<2x8x256xbf16, #tpu.memory_space<vmem>>, vector<2x1x128xbf16>
    %60 = vector.shape_cast %59 : vector<2x1x128xbf16> to vector<2x128xbf16>
    %c4_93 = arith.constant 4 : index
    %c0_94 = arith.constant 0 : index
    %61 = vector.load %arg15[%c4_93, %c0_94] : memref<18x512xbf16, #tpu.memory_space<vmem>>, vector<2x128xbf16>
    tpu.vector_store %arg15[%c4_93, %c0_94], %60 {strides = array<i32>} : memref<18x512xbf16, #tpu.memory_space<vmem>>, vector<2x128xbf16>,
    %c0_95 = arith.constant 0 : index
    %c1_96 = arith.constant 1 : index
    %c128_97 = arith.constant 128 : index
    %62 = vector.load %arg14[%c0_95, %c1_96, %c128_97] : memref<2x8x256xbf16, #tpu.memory_space<vmem>>, vector<2x1x128xbf16>
    %63 = vector.shape_cast %62 : vector<2x1x128xbf16> to vector<2x128xbf16>
    %c4_98 = arith.constant 4 : index
    %c128_99 = arith.constant 128 : index
    %64 = vector.load %arg15[%c4_98, %c128_99] : memref<18x512xbf16, #tpu.memory_space<vmem>>, vector<2x128xbf16>
    tpu.vector_store %arg15[%c4_98, %c128_99], %63 {strides = array<i32>} : memref<18x512xbf16, #tpu.memory_space<vmem>>, vector<2x128xbf16>,
    %c0_100 = arith.constant 0 : index
    %c2_101 = arith.constant 2 : index
    %c128_102 = arith.constant 128 : index
    %65 = vector.load %arg14[%c0_100, %c2_101, %c128_102] : memref<2x8x256xbf16, #tpu.memory_space<vmem>>, vector<2x1x128xbf16>
    %66 = vector.shape_cast %65 : vector<2x1x128xbf16> to vector<2x128xbf16>
    %c4_103 = arith.constant 4 : index
    %c256_104 = arith.constant 256 : index
    %67 = vector.load %arg15[%c4_103, %c256_104] : memref<18x512xbf16, #tpu.memory_space<vmem>>, vector<2x128xbf16>
    tpu.vector_store %arg15[%c4_103, %c256_104], %66 {strides = array<i32>} : memref<18x512xbf16, #tpu.memory_space<vmem>>, vector<2x128xbf16>,
    %c0_105 = arith.constant 0 : index
    %c3_106 = arith.constant 3 : index
    %c128_107 = arith.constant 128 : index
    %68 = vector.load %arg14[%c0_105, %c3_106, %c128_107] : memref<2x8x256xbf16, #tpu.memory_space<vmem>>, vector<2x1x128xbf16>
    %69 = vector.shape_cast %68 : vector<2x1x128xbf16> to vector<2x128xbf16>
    %c4_108 = arith.constant 4 : index
    %c384_109 = arith.constant 384 : index
    %70 = vector.load %arg15[%c4_108, %c384_109] : memref<18x512xbf16, #tpu.memory_space<vmem>>, vector<2x128xbf16>
    tpu.vector_store %arg15[%c4_108, %c384_109], %69 {strides = array<i32>} : memref<18x512xbf16, #tpu.memory_space<vmem>>, vector<2x128xbf16>,
    %c0_110 = arith.constant 0 : index
    %c2_111 = arith.constant 2 : index
    %c0_112 = arith.constant 0 : index
    %71 = vector.load %arg14[%c0_110, %c2_111, %c0_112] : memref<2x8x256xbf16, #tpu.memory_space<vmem>>, vector<2x1x128xbf16>
    %72 = vector.shape_cast %71 : vector<2x1x128xbf16> to vector<2x128xbf16>
    %c6_113 = arith.constant 6 : index
    %c0_114 = arith.constant 0 : index
    %73 = vector.load %arg15[%c6_113, %c0_114] : memref<18x512xbf16, #tpu.memory_space<vmem>>, vector<2x128xbf16>
    tpu.vector_store %arg15[%c6_113, %c0_114], %72 {strides = array<i32>} : memref<18x512xbf16, #tpu.memory_space<vmem>>, vector<2x128xbf16>,
    %c0_115 = arith.constant 0 : index
    %c3_116 = arith.constant 3 : index
    %c0_117 = arith.constant 0 : index
    %74 = vector.load %arg14[%c0_115, %c3_116, %c0_117] : memref<2x8x256xbf16, #tpu.memory_space<vmem>>, vector<2x1x128xbf16>
    %75 = vector.shape_cast %74 : vector<2x1x128xbf16> to vector<2x128xbf16>
    %c6_118 = arith.constant 6 : index
    %c128_119 = arith.constant 128 : index
    %76 = vector.load %arg15[%c6_118, %c128_119] : memref<18x512xbf16, #tpu.memory_space<vmem>>, vector<2x128xbf16>
    tpu.vector_store %arg15[%c6_118, %c128_119], %75 {strides = array<i32>} : memref<18x512xbf16, #tpu.memory_space<vmem>>, vector<2x128xbf16>,
    %c0_120 = arith.constant 0 : index
    %c4_121 = arith.constant 4 : index
    %c0_122 = arith.constant 0 : index
    %77 = vector.load %arg14[%c0_120, %c4_121, %c0_122] : memref<2x8x256xbf16, #tpu.memory_space<vmem>>, vector<2x1x128xbf16>
    %78 = vector.shape_cast %77 : vector<2x1x128xbf16> to vector<2x128xbf16>
    %c6_123 = arith.constant 6 : index
    %c256_124 = arith.constant 256 : index
    %79 = vector.load %arg15[%c6_123, %c256_124] : memref<18x512xbf16, #tpu.memory_space<vmem>>, vector<2x128xbf16>
    tpu.vector_store %arg15[%c6_123, %c256_124], %78 {strides = array<i32>} : memref<18x512xbf16, #tpu.memory_space<vmem>>, vector<2x128xbf16>,
    %c0_125 = arith.constant 0 : index
    %c5_126 = arith.constant 5 : index
    %c0_127 = arith.constant 0 : index
    %80 = vector.load %arg14[%c0_125, %c5_126, %c0_127] : memref<2x8x256xbf16, #tpu.memory_space<vmem>>, vector<2x1x128xbf16>
    %81 = vector.shape_cast %80 : vector<2x1x128xbf16> to vector<2x128xbf16>
    %c6_128 = arith.constant 6 : index
    %c384_129 = arith.constant 384 : index
    %82 = vector.load %arg15[%c6_128, %c384_129] : memref<18x512xbf16, #tpu.memory_space<vmem>>, vector<2x128xbf16>
    tpu.vector_store %arg15[%c6_128, %c384_129], %81 {strides = array<i32>} : memref<18x512xbf16, #tpu.memory_space<vmem>>, vector<2x128xbf16>,
    %c0_130 = arith.constant 0 : index
    %c2_131 = arith.constant 2 : index
    %c64_132 = arith.constant 64 : index
    %83 = vector.load %arg14[%c0_130, %c2_131, %c64_132] : memref<2x8x256xbf16, #tpu.memory_space<vmem>>, vector<2x1x128xbf16>
    %84 = vector.shape_cast %83 : vector<2x1x128xbf16> to vector<2x128xbf16>
    %c8 = arith.constant 8 : index
    %c0_133 = arith.constant 0 : index
    %85 = vector.load %arg15[%c8, %c0_133] : memref<18x512xbf16, #tpu.memory_space<vmem>>, vector<2x128xbf16>
    tpu.vector_store %arg15[%c8, %c0_133], %84 {strides = array<i32>} : memref<18x512xbf16, #tpu.memory_space<vmem>>, vector<2x128xbf16>,
    %c0_134 = arith.constant 0 : index
    %c3_135 = arith.constant 3 : index
    %c64_136 = arith.constant 64 : index
    %86 = vector.load %arg14[%c0_134, %c3_135, %c64_136] : memref<2x8x256xbf16, #tpu.memory_space<vmem>>, vector<2x1x128xbf16>
    %87 = vector.shape_cast %86 : vector<2x1x128xbf16> to vector<2x128xbf16>
    %c8_137 = arith.constant 8 : index
    %c128_138 = arith.constant 128 : index
    %88 = vector.load %arg15[%c8_137, %c128_138] : memref<18x512xbf16, #tpu.memory_space<vmem>>, vector<2x128xbf16>
    tpu.vector_store %arg15[%c8_137, %c128_138], %87 {strides = array<i32>} : memref<18x512xbf16, #tpu.memory_space<vmem>>, vector<2x128xbf16>,
    %c0_139 = arith.constant 0 : index
    %c4_140 = arith.constant 4 : index
    %c64_141 = arith.constant 64 : index
    %89 = vector.load %arg14[%c0_139, %c4_140, %c64_141] : memref<2x8x256xbf16, #tpu.memory_space<vmem>>, vector<2x1x128xbf16>
    %90 = vector.shape_cast %89 : vector<2x1x128xbf16> to vector<2x128xbf16>
    %c8_142 = arith.constant 8 : index
    %c256_143 = arith.constant 256 : index
    %91 = vector.load %arg15[%c8_142, %c256_143] : memref<18x512xbf16, #tpu.memory_space<vmem>>, vector<2x128xbf16>
    tpu.vector_store %arg15[%c8_142, %c256_143], %90 {strides = array<i32>} : memref<18x512xbf16, #tpu.memory_space<vmem>>, vector<2x128xbf16>,
    %c0_144 = arith.constant 0 : index
    %c5_145 = arith.constant 5 : index
    %c64_146 = arith.constant 64 : index
    %92 = vector.load %arg14[%c0_144, %c5_145, %c64_146] : memref<2x8x256xbf16, #tpu.memory_space<vmem>>, vector<2x1x128xbf16>
    %93 = vector.shape_cast %92 : vector<2x1x128xbf16> to vector<2x128xbf16>
    %c8_147 = arith.constant 8 : index
    %c384_148 = arith.constant 384 : index
    %94 = vector.load %arg15[%c8_147, %c384_148] : memref<18x512xbf16, #tpu.memory_space<vmem>>, vector<2x128xbf16>
    tpu.vector_store %arg15[%c8_147, %c384_148], %93 {strides = array<i32>} : memref<18x512xbf16, #tpu.memory_space<vmem>>, vector<2x128xbf16>,
    %c0_149 = arith.constant 0 : index
    %c2_150 = arith.constant 2 : index
    %c128_151 = arith.constant 128 : index
    %95 = vector.load %arg14[%c0_149, %c2_150, %c128_151] : memref<2x8x256xbf16, #tpu.memory_space<vmem>>, vector<2x1x128xbf16>
    %96 = vector.shape_cast %95 : vector<2x1x128xbf16> to vector<2x128xbf16>
    %c10 = arith.constant 10 : index
    %c0_152 = arith.constant 0 : index
    %97 = vector.load %arg15[%c10, %c0_152] : memref<18x512xbf16, #tpu.memory_space<vmem>>, vector<2x128xbf16>
    tpu.vector_store %arg15[%c10, %c0_152], %96 {strides = array<i32>} : memref<18x512xbf16, #tpu.memory_space<vmem>>, vector<2x128xbf16>,
    %c0_153 = arith.constant 0 : index
    %c3_154 = arith.constant 3 : index
    %c128_155 = arith.constant 128 : index
    %98 = vector.load %arg14[%c0_153, %c3_154, %c128_155] : memref<2x8x256xbf16, #tpu.memory_space<vmem>>, vector<2x1x128xbf16>
    %99 = vector.shape_cast %98 : vector<2x1x128xbf16> to vector<2x128xbf16>
    %c10_156 = arith.constant 10 : index
    %c128_157 = arith.constant 128 : index
    %100 = vector.load %arg15[%c10_156, %c128_157] : memref<18x512xbf16, #tpu.memory_space<vmem>>, vector<2x128xbf16>
    tpu.vector_store %arg15[%c10_156, %c128_157], %99 {strides = array<i32>} : memref<18x512xbf16, #tpu.memory_space<vmem>>, vector<2x128xbf16>,
    %c0_158 = arith.constant 0 : index
    %c4_159 = arith.constant 4 : index
    %c128_160 = arith.constant 128 : index
    %101 = vector.load %arg14[%c0_158, %c4_159, %c128_160] : memref<2x8x256xbf16, #tpu.memory_space<vmem>>, vector<2x1x128xbf16>
    %102 = vector.shape_cast %101 : vector<2x1x128xbf16> to vector<2x128xbf16>
    %c10_161 = arith.constant 10 : index
    %c256_162 = arith.constant 256 : index
    %103 = vector.load %arg15[%c10_161, %c256_162] : memref<18x512xbf16, #tpu.memory_space<vmem>>, vector<2x128xbf16>
    tpu.vector_store %arg15[%c10_161, %c256_162], %102 {strides = array<i32>} : memref<18x512xbf16, #tpu.memory_space<vmem>>, vector<2x128xbf16>,
    %c0_163 = arith.constant 0 : index
    %c5_164 = arith.constant 5 : index
    %c128_165 = arith.constant 128 : index
    %104 = vector.load %arg14[%c0_163, %c5_164, %c128_165] : memref<2x8x256xbf16, #tpu.memory_space<vmem>>, vector<2x1x128xbf16>
    %105 = vector.shape_cast %104 : vector<2x1x128xbf16> to vector<2x128xbf16>
    %c10_166 = arith.constant 10 : index
    %c384_167 = arith.constant 384 : index
    %106 = vector.load %arg15[%c10_166, %c384_167] : memref<18x512xbf16, #tpu.memory_space<vmem>>, vector<2x128xbf16>
    tpu.vector_store %arg15[%c10_166, %c384_167], %105 {strides = array<i32>} : memref<18x512xbf16, #tpu.memory_space<vmem>>, vector<2x128xbf16>,
    %c0_168 = arith.constant 0 : index
    %c4_169 = arith.constant 4 : index
    %c0_170 = arith.constant 0 : index
    %107 = vector.load %arg14[%c0_168, %c4_169, %c0_170] : memref<2x8x256xbf16, #tpu.memory_space<vmem>>, vector<2x1x128xbf16>
    %108 = vector.shape_cast %107 : vector<2x1x128xbf16> to vector<2x128xbf16>
    %c12 = arith.constant 12 : index
    %c0_171 = arith.constant 0 : index
    %109 = vector.load %arg15[%c12, %c0_171] : memref<18x512xbf16, #tpu.memory_space<vmem>>, vector<2x128xbf16>
    tpu.vector_store %arg15[%c12, %c0_171], %108 {strides = array<i32>} : memref<18x512xbf16, #tpu.memory_space<vmem>>, vector<2x128xbf16>,
    %c0_172 = arith.constant 0 : index
    %c5_173 = arith.constant 5 : index
    %c0_174 = arith.constant 0 : index
    %110 = vector.load %arg14[%c0_172, %c5_173, %c0_174] : memref<2x8x256xbf16, #tpu.memory_space<vmem>>, vector<2x1x128xbf16>
    %111 = vector.shape_cast %110 : vector<2x1x128xbf16> to vector<2x128xbf16>
    %c12_175 = arith.constant 12 : index
    %c128_176 = arith.constant 128 : index
    %112 = vector.load %arg15[%c12_175, %c128_176] : memref<18x512xbf16, #tpu.memory_space<vmem>>, vector<2x128xbf16>
    tpu.vector_store %arg15[%c12_175, %c128_176], %111 {strides = array<i32>} : memref<18x512xbf16, #tpu.memory_space<vmem>>, vector<2x128xbf16>,
    %c0_177 = arith.constant 0 : index
    %c6_178 = arith.constant 6 : index
    %c0_179 = arith.constant 0 : index
    %113 = vector.load %arg14[%c0_177, %c6_178, %c0_179] : memref<2x8x256xbf16, #tpu.memory_space<vmem>>, vector<2x1x128xbf16>
    %114 = vector.shape_cast %113 : vector<2x1x128xbf16> to vector<2x128xbf16>
    %c12_180 = arith.constant 12 : index
    %c256_181 = arith.constant 256 : index
    %115 = vector.load %arg15[%c12_180, %c256_181] : memref<18x512xbf16, #tpu.memory_space<vmem>>, vector<2x128xbf16>
    tpu.vector_store %arg15[%c12_180, %c256_181], %114 {strides = array<i32>} : memref<18x512xbf16, #tpu.memory_space<vmem>>, vector<2x128xbf16>,
    %c0_182 = arith.constant 0 : index
    %c7_183 = arith.constant 7 : index
    %c0_184 = arith.constant 0 : index
    %116 = vector.load %arg14[%c0_182, %c7_183, %c0_184] : memref<2x8x256xbf16, #tpu.memory_space<vmem>>, vector<2x1x128xbf16>
    %117 = vector.shape_cast %116 : vector<2x1x128xbf16> to vector<2x128xbf16>
    %c12_185 = arith.constant 12 : index
    %c384_186 = arith.constant 384 : index
    %118 = vector.load %arg15[%c12_185, %c384_186] : memref<18x512xbf16, #tpu.memory_space<vmem>>, vector<2x128xbf16>
    tpu.vector_store %arg15[%c12_185, %c384_186], %117 {strides = array<i32>} : memref<18x512xbf16, #tpu.memory_space<vmem>>, vector<2x128xbf16>,
    %c0_187 = arith.constant 0 : index
    %c4_188 = arith.constant 4 : index
    %c64_189 = arith.constant 64 : index
    %119 = vector.load %arg14[%c0_187, %c4_188, %c64_189] : memref<2x8x256xbf16, #tpu.memory_space<vmem>>, vector<2x1x128xbf16>
    %120 = vector.shape_cast %119 : vector<2x1x128xbf16> to vector<2x128xbf16>
    %c14 = arith.constant 14 : index
    %c0_190 = arith.constant 0 : index
    %121 = vector.load %arg15[%c14, %c0_190] : memref<18x512xbf16, #tpu.memory_space<vmem>>, vector<2x128xbf16>
    tpu.vector_store %arg15[%c14, %c0_190], %120 {strides = array<i32>} : memref<18x512xbf16, #tpu.memory_space<vmem>>, vector<2x128xbf16>,
    %c0_191 = arith.constant 0 : index
    %c5_192 = arith.constant 5 : index
    %c64_193 = arith.constant 64 : index
    %122 = vector.load %arg14[%c0_191, %c5_192, %c64_193] : memref<2x8x256xbf16, #tpu.memory_space<vmem>>, vector<2x1x128xbf16>
    %123 = vector.shape_cast %122 : vector<2x1x128xbf16> to vector<2x128xbf16>
    %c14_194 = arith.constant 14 : index
    %c128_195 = arith.constant 128 : index
    %124 = vector.load %arg15[%c14_194, %c128_195] : memref<18x512xbf16, #tpu.memory_space<vmem>>, vector<2x128xbf16>
    tpu.vector_store %arg15[%c14_194, %c128_195], %123 {strides = array<i32>} : memref<18x512xbf16, #tpu.memory_space<vmem>>, vector<2x128xbf16>,
    %c0_196 = arith.constant 0 : index
    %c6_197 = arith.constant 6 : index
    %c64_198 = arith.constant 64 : index
    %125 = vector.load %arg14[%c0_196, %c6_197, %c64_198] : memref<2x8x256xbf16, #tpu.memory_space<vmem>>, vector<2x1x128xbf16>
    %126 = vector.shape_cast %125 : vector<2x1x128xbf16> to vector<2x128xbf16>
    %c14_199 = arith.constant 14 : index
    %c256_200 = arith.constant 256 : index
    %127 = vector.load %arg15[%c14_199, %c256_200] : memref<18x512xbf16, #tpu.memory_space<vmem>>, vector<2x128xbf16>
    tpu.vector_store %arg15[%c14_199, %c256_200], %126 {strides = array<i32>} : memref<18x512xbf16, #tpu.memory_space<vmem>>, vector<2x128xbf16>,
    %c0_201 = arith.constant 0 : index
    %c7_202 = arith.constant 7 : index
    %c64_203 = arith.constant 64 : index
    %128 = vector.load %arg14[%c0_201, %c7_202, %c64_203] : memref<2x8x256xbf16, #tpu.memory_space<vmem>>, vector<2x1x128xbf16>
    %129 = vector.shape_cast %128 : vector<2x1x128xbf16> to vector<2x128xbf16>
    %c14_204 = arith.constant 14 : index
    %c384_205 = arith.constant 384 : index
    %130 = vector.load %arg15[%c14_204, %c384_205] : memref<18x512xbf16, #tpu.memory_space<vmem>>, vector<2x128xbf16>
    tpu.vector_store %arg15[%c14_204, %c384_205], %129 {strides = array<i32>} : memref<18x512xbf16, #tpu.memory_space<vmem>>, vector<2x128xbf16>,
    %c0_206 = arith.constant 0 : index
    %c4_207 = arith.constant 4 : index
    %c128_208 = arith.constant 128 : index
    %131 = vector.load %arg14[%c0_206, %c4_207, %c128_208] : memref<2x8x256xbf16, #tpu.memory_space<vmem>>, vector<2x1x128xbf16>
    %132 = vector.shape_cast %131 : vector<2x1x128xbf16> to vector<2x128xbf16>
    %c16 = arith.constant 16 : index
    %c0_209 = arith.constant 0 : index
    %133 = vector.load %arg15[%c16, %c0_209] : memref<18x512xbf16, #tpu.memory_space<vmem>>, vector<2x128xbf16>
    tpu.vector_store %arg15[%c16, %c0_209], %132 {strides = array<i32>} : memref<18x512xbf16, #tpu.memory_space<vmem>>, vector<2x128xbf16>,
    %c0_210 = arith.constant 0 : index
    %c5_211 = arith.constant 5 : index
    %c128_212 = arith.constant 128 : index
    %134 = vector.load %arg14[%c0_210, %c5_211, %c128_212] : memref<2x8x256xbf16, #tpu.memory_space<vmem>>, vector<2x1x128xbf16>
    %135 = vector.shape_cast %134 : vector<2x1x128xbf16> to vector<2x128xbf16>
    %c16_213 = arith.constant 16 : index
    %c128_214 = arith.constant 128 : index
    %136 = vector.load %arg15[%c16_213, %c128_214] : memref<18x512xbf16, #tpu.memory_space<vmem>>, vector<2x128xbf16>
    tpu.vector_store %arg15[%c16_213, %c128_214], %135 {strides = array<i32>} : memref<18x512xbf16, #tpu.memory_space<vmem>>, vector<2x128xbf16>,
    %c0_215 = arith.constant 0 : index
    %c6_216 = arith.constant 6 : index
    %c128_217 = arith.constant 128 : index
    %137 = vector.load %arg14[%c0_215, %c6_216, %c128_217] : memref<2x8x256xbf16, #tpu.memory_space<vmem>>, vector<2x1x128xbf16>
    %138 = vector.shape_cast %137 : vector<2x1x128xbf16> to vector<2x128xbf16>
    %c16_218 = arith.constant 16 : index
    %c256_219 = arith.constant 256 : index
    %139 = vector.load %arg15[%c16_218, %c256_219] : memref<18x512xbf16, #tpu.memory_space<vmem>>, vector<2x128xbf16>
    tpu.vector_store %arg15[%c16_218, %c256_219], %138 {strides = array<i32>} : memref<18x512xbf16, #tpu.memory_space<vmem>>, vector<2x128xbf16>,
    %c0_220 = arith.constant 0 : index
    %c7_221 = arith.constant 7 : index
    %c128_222 = arith.constant 128 : index
    %140 = vector.load %arg14[%c0_220, %c7_221, %c128_222] : memref<2x8x256xbf16, #tpu.memory_space<vmem>>, vector<2x1x128xbf16>
    %141 = vector.shape_cast %140 : vector<2x1x128xbf16> to vector<2x128xbf16>
    %c16_223 = arith.constant 16 : index
    %c384_224 = arith.constant 384 : index
    %142 = vector.load %arg15[%c16_223, %c384_224] : memref<18x512xbf16, #tpu.memory_space<vmem>>, vector<2x128xbf16>
    tpu.vector_store %arg15[%c16_223, %c384_224], %141 {strides = array<i32>} : memref<18x512xbf16, #tpu.memory_space<vmem>>, vector<2x128xbf16>,
    %c0_225 = arith.constant 0 : index
    %c0_226 = arith.constant 0 : index
    %143 = vector.load %arg15[%c0_225, %c0_226] : memref<18x512xbf16, #tpu.memory_space<vmem>>, vector<18x512xbf16>
    %c0_227 = arith.constant 0 : index
    %c0_228 = arith.constant 0 : index
    %144 = vector.load %arg4[%c0_227, %c0_228] : memref<512x64xbf16, #tpu.memory_space<vmem>>, vector<512x64xbf16>
    %cst_229 = arith.constant dense<0.000000e+00> : vector<18x64xf32>
    %145 = tpu.matmul %143, %144, %cst_229 {dimension_numbers = #tpu.dot_dimension_numbers<[1], [0], [0], [1], [0, 0, 1, 1], [], []>} : vector<18x512xbf16>, vector<512x64xbf16>, vector<18x64xf32> -> vector<18x64xf32>
    %c0_230 = arith.constant 0 : index
    %c0_231 = arith.constant 0 : index
    %146 = vector.load %arg5[%c0_230, %c0_231] : memref<1x64xf32, #tpu.memory_space<vmem>>, vector<1x64xf32>
    %147 = vector.broadcast %146 : vector<1x64xf32> to vector<18x64xf32>
    %148 = arith.addf %145, %147 : vector<18x64xf32>
    %cst_232 = arith.constant 0.000000e+00 : f32
    %149 = vector.broadcast %cst_232 : f32 to vector<18x64xf32>
    %150 = arith.maximumf %148, %149 : vector<18x64xf32>
    %151 = arith.truncf %150 : vector<18x64xf32> to vector<18x64xbf16>
    %c0_233 = arith.constant 0 : index
    %c0_234 = arith.constant 0 : index
    %152 = vector.load %arg16[%c0_233, %c0_234] : memref<18x64xbf16, #tpu.memory_space<vmem>>, vector<18x64xbf16>
    tpu.vector_store %arg16[%c0_233, %c0_234], %151 {strides = array<i32>} : memref<18x64xbf16, #tpu.memory_space<vmem>>, vector<18x64xbf16>,
    %c0_235 = arith.constant 0 : index
    %c0_236 = arith.constant 0 : index
    %153 = vector.load %arg16[%c0_235, %c0_236] : memref<18x64xbf16, #tpu.memory_space<vmem>>, vector<2x64xbf16>
    %c0_237 = arith.constant 0 : index
    %c0_238 = arith.constant 0 : index
    %154 = vector.load %arg17[%c0_237, %c0_238] : memref<8x256xbf16, #tpu.memory_space<vmem>>, vector<2x64xbf16>
    tpu.vector_store %arg17[%c0_237, %c0_238], %153 {strides = array<i32>} : memref<8x256xbf16, #tpu.memory_space<vmem>>, vector<2x64xbf16>,
    %c2_239 = arith.constant 2 : index
    %c0_240 = arith.constant 0 : index
    %155 = vector.load %arg16[%c2_239, %c0_240] : memref<18x64xbf16, #tpu.memory_space<vmem>>, vector<2x64xbf16>
    %c0_241 = arith.constant 0 : index
    %c64_242 = arith.constant 64 : index
    %156 = vector.load %arg17[%c0_241, %c64_242] : memref<8x256xbf16, #tpu.memory_space<vmem>>, vector<2x64xbf16>
    tpu.vector_store %arg17[%c0_241, %c64_242], %155 {strides = array<i32>} : memref<8x256xbf16, #tpu.memory_space<vmem>>, vector<2x64xbf16>,
    %c6_243 = arith.constant 6 : index
    %c0_244 = arith.constant 0 : index
    %157 = vector.load %arg16[%c6_243, %c0_244] : memref<18x64xbf16, #tpu.memory_space<vmem>>, vector<2x64xbf16>
    %c0_245 = arith.constant 0 : index
    %c128_246 = arith.constant 128 : index
    %158 = vector.load %arg17[%c0_245, %c128_246] : memref<8x256xbf16, #tpu.memory_space<vmem>>, vector<2x64xbf16>
    tpu.vector_store %arg17[%c0_245, %c128_246], %157 {strides = array<i32>} : memref<8x256xbf16, #tpu.memory_space<vmem>>, vector<2x64xbf16>,
    %c8_247 = arith.constant 8 : index
    %c0_248 = arith.constant 0 : index
    %159 = vector.load %arg16[%c8_247, %c0_248] : memref<18x64xbf16, #tpu.memory_space<vmem>>, vector<2x64xbf16>
    %c0_249 = arith.constant 0 : index
    %c192_250 = arith.constant 192 : index
    %160 = vector.load %arg17[%c0_249, %c192_250] : memref<8x256xbf16, #tpu.memory_space<vmem>>, vector<2x64xbf16>
    tpu.vector_store %arg17[%c0_249, %c192_250], %159 {strides = array<i32>} : memref<8x256xbf16, #tpu.memory_space<vmem>>, vector<2x64xbf16>,
    %c2_251 = arith.constant 2 : index
    %c0_252 = arith.constant 0 : index
    %161 = vector.load %arg16[%c2_251, %c0_252] : memref<18x64xbf16, #tpu.memory_space<vmem>>, vector<2x64xbf16>
    %c2_253 = arith.constant 2 : index
    %c0_254 = arith.constant 0 : index
    %162 = vector.load %arg17[%c2_253, %c0_254] : memref<8x256xbf16, #tpu.memory_space<vmem>>, vector<2x64xbf16>
    tpu.vector_store %arg17[%c2_253, %c0_254], %161 {strides = array<i32>} : memref<8x256xbf16, #tpu.memory_space<vmem>>, vector<2x64xbf16>,
    %c4_255 = arith.constant 4 : index
    %c0_256 = arith.constant 0 : index
    %163 = vector.load %arg16[%c4_255, %c0_256] : memref<18x64xbf16, #tpu.memory_space<vmem>>, vector<2x64xbf16>
    %c2_257 = arith.constant 2 : index
    %c64_258 = arith.constant 64 : index
    %164 = vector.load %arg17[%c2_257, %c64_258] : memref<8x256xbf16, #tpu.memory_space<vmem>>, vector<2x64xbf16>
    tpu.vector_store %arg17[%c2_257, %c64_258], %163 {strides = array<i32>} : memref<8x256xbf16, #tpu.memory_space<vmem>>, vector<2x64xbf16>,
    %c8_259 = arith.constant 8 : index
    %c0_260 = arith.constant 0 : index
    %165 = vector.load %arg16[%c8_259, %c0_260] : memref<18x64xbf16, #tpu.memory_space<vmem>>, vector<2x64xbf16>
    %c2_261 = arith.constant 2 : index
    %c128_262 = arith.constant 128 : index
    %166 = vector.load %arg17[%c2_261, %c128_262] : memref<8x256xbf16, #tpu.memory_space<vmem>>, vector<2x64xbf16>
    tpu.vector_store %arg17[%c2_261, %c128_262], %165 {strides = array<i32>} : memref<8x256xbf16, #tpu.memory_space<vmem>>, vector<2x64xbf16>,
    %c10_263 = arith.constant 10 : index
    %c0_264 = arith.constant 0 : index
    %167 = vector.load %arg16[%c10_263, %c0_264] : memref<18x64xbf16, #tpu.memory_space<vmem>>, vector<2x64xbf16>
    %c2_265 = arith.constant 2 : index
    %c192_266 = arith.constant 192 : index
    %168 = vector.load %arg17[%c2_265, %c192_266] : memref<8x256xbf16, #tpu.memory_space<vmem>>, vector<2x64xbf16>
    tpu.vector_store %arg17[%c2_265, %c192_266], %167 {strides = array<i32>} : memref<8x256xbf16, #tpu.memory_space<vmem>>, vector<2x64xbf16>,
    %c6_267 = arith.constant 6 : index
    %c0_268 = arith.constant 0 : index
    %169 = vector.load %arg16[%c6_267, %c0_268] : memref<18x64xbf16, #tpu.memory_space<vmem>>, vector<2x64xbf16>
    %c4_269 = arith.constant 4 : index
    %c0_270 = arith.constant 0 : index
    %170 = vector.load %arg17[%c4_269, %c0_270] : memref<8x256xbf16, #tpu.memory_space<vmem>>, vector<2x64xbf16>
    tpu.vector_store %arg17[%c4_269, %c0_270], %169 {strides = array<i32>} : memref<8x256xbf16, #tpu.memory_space<vmem>>, vector<2x64xbf16>,
    %c8_271 = arith.constant 8 : index
    %c0_272 = arith.constant 0 : index
    %171 = vector.load %arg16[%c8_271, %c0_272] : memref<18x64xbf16, #tpu.memory_space<vmem>>, vector<2x64xbf16>
    %c4_273 = arith.constant 4 : index
    %c64_274 = arith.constant 64 : index
    %172 = vector.load %arg17[%c4_273, %c64_274] : memref<8x256xbf16, #tpu.memory_space<vmem>>, vector<2x64xbf16>
    tpu.vector_store %arg17[%c4_273, %c64_274], %171 {strides = array<i32>} : memref<8x256xbf16, #tpu.memory_space<vmem>>, vector<2x64xbf16>,
    %c12_275 = arith.constant 12 : index
    %c0_276 = arith.constant 0 : index
    %173 = vector.load %arg16[%c12_275, %c0_276] : memref<18x64xbf16, #tpu.memory_space<vmem>>, vector<2x64xbf16>
    %c4_277 = arith.constant 4 : index
    %c128_278 = arith.constant 128 : index
    %174 = vector.load %arg17[%c4_277, %c128_278] : memref<8x256xbf16, #tpu.memory_space<vmem>>, vector<2x64xbf16>
    tpu.vector_store %arg17[%c4_277, %c128_278], %173 {strides = array<i32>} : memref<8x256xbf16, #tpu.memory_space<vmem>>, vector<2x64xbf16>,
    %c14_279 = arith.constant 14 : index
    %c0_280 = arith.constant 0 : index
    %175 = vector.load %arg16[%c14_279, %c0_280] : memref<18x64xbf16, #tpu.memory_space<vmem>>, vector<2x64xbf16>
    %c4_281 = arith.constant 4 : index
    %c192_282 = arith.constant 192 : index
    %176 = vector.load %arg17[%c4_281, %c192_282] : memref<8x256xbf16, #tpu.memory_space<vmem>>, vector<2x64xbf16>
    tpu.vector_store %arg17[%c4_281, %c192_282], %175 {strides = array<i32>} : memref<8x256xbf16, #tpu.memory_space<vmem>>, vector<2x64xbf16>,
    %c8_283 = arith.constant 8 : index
    %c0_284 = arith.constant 0 : index
    %177 = vector.load %arg16[%c8_283, %c0_284] : memref<18x64xbf16, #tpu.memory_space<vmem>>, vector<2x64xbf16>
    %c6_285 = arith.constant 6 : index
    %c0_286 = arith.constant 0 : index
    %178 = vector.load %arg17[%c6_285, %c0_286] : memref<8x256xbf16, #tpu.memory_space<vmem>>, vector<2x64xbf16>
    tpu.vector_store %arg17[%c6_285, %c0_286], %177 {strides = array<i32>} : memref<8x256xbf16, #tpu.memory_space<vmem>>, vector<2x64xbf16>,
    %c10_287 = arith.constant 10 : index
    %c0_288 = arith.constant 0 : index
    %179 = vector.load %arg16[%c10_287, %c0_288] : memref<18x64xbf16, #tpu.memory_space<vmem>>, vector<2x64xbf16>
    %c6_289 = arith.constant 6 : index
    %c64_290 = arith.constant 64 : index
    %180 = vector.load %arg17[%c6_289, %c64_290] : memref<8x256xbf16, #tpu.memory_space<vmem>>, vector<2x64xbf16>
    tpu.vector_store %arg17[%c6_289, %c64_290], %179 {strides = array<i32>} : memref<8x256xbf16, #tpu.memory_space<vmem>>, vector<2x64xbf16>,
    %c14_291 = arith.constant 14 : index
    %c0_292 = arith.constant 0 : index
    %181 = vector.load %arg16[%c14_291, %c0_292] : memref<18x64xbf16, #tpu.memory_space<vmem>>, vector<2x64xbf16>
    %c6_293 = arith.constant 6 : index
    %c128_294 = arith.constant 128 : index
    %182 = vector.load %arg17[%c6_293, %c128_294] : memref<8x256xbf16, #tpu.memory_space<vmem>>, vector<2x64xbf16>
    tpu.vector_store %arg17[%c6_293, %c128_294], %181 {strides = array<i32>} : memref<8x256xbf16, #tpu.memory_space<vmem>>, vector<2x64xbf16>,
    %c16_295 = arith.constant 16 : index
    %c0_296 = arith.constant 0 : index
    %183 = vector.load %arg16[%c16_295, %c0_296] : memref<18x64xbf16, #tpu.memory_space<vmem>>, vector<2x64xbf16>
    %c6_297 = arith.constant 6 : index
    %c192_298 = arith.constant 192 : index
    %184 = vector.load %arg17[%c6_297, %c192_298] : memref<8x256xbf16, #tpu.memory_space<vmem>>, vector<2x64xbf16>
    tpu.vector_store %arg17[%c6_297, %c192_298], %183 {strides = array<i32>} : memref<8x256xbf16, #tpu.memory_space<vmem>>, vector<2x64xbf16>,
    %c0_299 = arith.constant 0 : index
    %c0_300 = arith.constant 0 : index
    %185 = vector.load %arg17[%c0_299, %c0_300] : memref<8x256xbf16, #tpu.memory_space<vmem>>, vector<8x256xbf16>
    %c0_301 = arith.constant 0 : index
    %c0_302 = arith.constant 0 : index
    %186 = vector.load %arg6[%c0_301, %c0_302] : memref<256x64xbf16, #tpu.memory_space<vmem>>, vector<256x64xbf16>
    %cst_303 = arith.constant dense<0.000000e+00> : vector<8x64xf32>
    %187 = tpu.matmul %185, %186, %cst_303 {dimension_numbers = #tpu.dot_dimension_numbers<[1], [0], [0], [1], [0, 0, 1, 1], [], []>} : vector<8x256xbf16>, vector<256x64xbf16>, vector<8x64xf32> -> vector<8x64xf32>
    %c0_304 = arith.constant 0 : index
    %c0_305 = arith.constant 0 : index
    %188 = vector.load %arg7[%c0_304, %c0_305] : memref<1x64xf32, #tpu.memory_space<vmem>>, vector<1x64xf32>
    %189 = vector.broadcast %188 : vector<1x64xf32> to vector<8x64xf32>
    %190 = arith.addf %187, %189 : vector<8x64xf32>
    %cst_306 = arith.constant 0.000000e+00 : f32
    %191 = vector.broadcast %cst_306 : f32 to vector<8x64xf32>
    %192 = arith.maximumf %190, %191 : vector<8x64xf32>
    %193 = arith.truncf %192 : vector<8x64xf32> to vector<8x64xbf16>
    %c0_307 = arith.constant 0 : index
    %c0_308 = arith.constant 0 : index
    %194 = vector.load %arg18[%c0_307, %c0_308] : memref<8x64xbf16, #tpu.memory_space<vmem>>, vector<8x64xbf16>
    tpu.vector_store %arg18[%c0_307, %c0_308], %193 {strides = array<i32>} : memref<8x64xbf16, #tpu.memory_space<vmem>>, vector<8x64xbf16>,
    %c0_309 = arith.constant 0 : index
    %c0_310 = arith.constant 0 : index
    %195 = vector.load %arg18[%c0_309, %c0_310] : memref<8x64xbf16, #tpu.memory_space<vmem>>, vector<2x64xbf16>
    %c0_311 = arith.constant 0 : index
    %c0_312 = arith.constant 0 : index
    %196 = vector.load %arg19[%c0_311, %c0_312] : memref<2x256xbf16, #tpu.memory_space<vmem>>, vector<2x64xbf16>
    tpu.vector_store %arg19[%c0_311, %c0_312], %195 {strides = array<i32>} : memref<2x256xbf16, #tpu.memory_space<vmem>>, vector<2x64xbf16>,
    %c2_313 = arith.constant 2 : index
    %c0_314 = arith.constant 0 : index
    %197 = vector.load %arg18[%c2_313, %c0_314] : memref<8x64xbf16, #tpu.memory_space<vmem>>, vector<2x64xbf16>
    %c0_315 = arith.constant 0 : index
    %c64_316 = arith.constant 64 : index
    %198 = vector.load %arg19[%c0_315, %c64_316] : memref<2x256xbf16, #tpu.memory_space<vmem>>, vector<2x64xbf16>
    tpu.vector_store %arg19[%c0_315, %c64_316], %197 {strides = array<i32>} : memref<2x256xbf16, #tpu.memory_space<vmem>>, vector<2x64xbf16>,
    %c4_317 = arith.constant 4 : index
    %c0_318 = arith.constant 0 : index
    %199 = vector.load %arg18[%c4_317, %c0_318] : memref<8x64xbf16, #tpu.memory_space<vmem>>, vector<2x64xbf16>
    %c0_319 = arith.constant 0 : index
    %c128_320 = arith.constant 128 : index
    %200 = vector.load %arg19[%c0_319, %c128_320] : memref<2x256xbf16, #tpu.memory_space<vmem>>, vector<2x64xbf16>
    tpu.vector_store %arg19[%c0_319, %c128_320], %199 {strides = array<i32>} : memref<2x256xbf16, #tpu.memory_space<vmem>>, vector<2x64xbf16>,
    %c6_321 = arith.constant 6 : index
    %c0_322 = arith.constant 0 : index
    %201 = vector.load %arg18[%c6_321, %c0_322] : memref<8x64xbf16, #tpu.memory_space<vmem>>, vector<2x64xbf16>
    %c0_323 = arith.constant 0 : index
    %c192_324 = arith.constant 192 : index
    %202 = vector.load %arg19[%c0_323, %c192_324] : memref<2x256xbf16, #tpu.memory_space<vmem>>, vector<2x64xbf16>
    tpu.vector_store %arg19[%c0_323, %c192_324], %201 {strides = array<i32>} : memref<2x256xbf16, #tpu.memory_space<vmem>>, vector<2x64xbf16>,
    %c0_325 = arith.constant 0 : index
    %c0_326 = arith.constant 0 : index
    %203 = vector.load %arg19[%c0_325, %c0_326] : memref<2x256xbf16, #tpu.memory_space<vmem>>, vector<2x256xbf16>
    %c0_327 = arith.constant 0 : index
    %c0_328 = arith.constant 0 : index
    %204 = vector.load %arg8[%c0_327, %c0_328] : memref<256x512xbf16, #tpu.memory_space<vmem>>, vector<256x512xbf16>
    %cst_329 = arith.constant dense<0.000000e+00> : vector<2x512xf32>
    %205 = tpu.matmul %203, %204, %cst_329 {dimension_numbers = #tpu.dot_dimension_numbers<[1], [0], [0], [1], [0, 0, 1, 1], [], []>} : vector<2x256xbf16>, vector<256x512xbf16>, vector<2x512xf32> -> vector<2x512xf32>
    %c0_330 = arith.constant 0 : index
    %c0_331 = arith.constant 0 : index
    %206 = vector.load %arg9[%c0_330, %c0_331] : memref<1x512xf32, #tpu.memory_space<vmem>>, vector<1x512xf32>
    %207 = vector.broadcast %206 : vector<1x512xf32> to vector<2x512xf32>
    %208 = arith.addf %205, %207 : vector<2x512xf32>
    %cst_332 = arith.constant 0.000000e+00 : f32
    %209 = vector.broadcast %cst_332 : f32 to vector<2x512xf32>
    %210 = arith.maximumf %208, %209 : vector<2x512xf32>
    %211 = arith.truncf %210 : vector<2x512xf32> to vector<2x512xbf16>
    %c0_333 = arith.constant 0 : index
    %c0_334 = arith.constant 0 : index
    %212 = vector.load %arg10[%c0_333, %c0_334] : memref<512x128xbf16, #tpu.memory_space<vmem>>, vector<512x128xbf16>
    %cst_335 = arith.constant dense<0.000000e+00> : vector<2x128xf32>
    %213 = tpu.matmul %211, %212, %cst_335 {dimension_numbers = #tpu.dot_dimension_numbers<[1], [0], [0], [1], [0, 0, 1, 1], [], []>} : vector<2x512xbf16>, vector<512x128xbf16>, vector<2x128xf32> -> vector<2x128xf32>
    %c0_336 = arith.constant 0 : index
    %c0_337 = arith.constant 0 : index
    %214 = vector.load %arg11[%c0_336, %c0_337] : memref<1x128xf32, #tpu.memory_space<vmem>>, vector<1x128xf32>
    %215 = vector.broadcast %214 : vector<1x128xf32> to vector<2x128xf32>
    %216 = arith.addf %213, %215 : vector<2x128xf32>
    %c0_338 = arith.constant 0 : index
    %c0_339 = arith.constant 0 : index
    %217 = vector.load %arg12[%c0_338, %c0_339] : memref<2x128xf32, #tpu.memory_space<vmem>>, vector<2x128xf32>
    tpu.vector_store %arg12[%c0_338, %c0_339], %216 {strides = array<i32>} : memref<2x128xf32, #tpu.memory_space<vmem>>, vector<2x128xf32>,
    return
  }
  func.func @transform_0(%arg0: i32) -> (i32, i32) {
    %c0_i32 = arith.constant 0 : i32
    %c0_i32_0 = arith.constant 0 : i32
    return %arg0, %c0_i32 : i32, i32
  }
  func.func @transform_1(%arg0: i32) -> (i32, i32) {
    %c0_i32 = arith.constant 0 : i32
    %c0_i32_0 = arith.constant 0 : i32
    %c0_i32_1 = arith.constant 0 : i32
    return %c0_i32, %c0_i32_0 : i32, i32
  }
  func.func @transform_2(%arg0: i32) -> (i32, i32) {
    %c0_i32 = arith.constant 0 : i32
    %c0_i32_0 = arith.constant 0 : i32
    %c0_i32_1 = arith.constant 0 : i32
    return %c0_i32, %c0_i32_0 : i32, i32
  }
  func.func @transform_3(%arg0: i32) -> (i32, i32) {
    %c0_i32 = arith.constant 0 : i32
    %c0_i32_0 = arith.constant 0 : i32
    %c0_i32_1 = arith.constant 0 : i32
    return %c0_i32, %c0_i32_0 : i32, i32
  }
  func.func @transform_4(%arg0: i32) -> (i32, i32) {
    %c0_i32 = arith.constant 0 : i32
    %c0_i32_0 = arith.constant 0 : i32
    %c0_i32_1 = arith.constant 0 : i32
    return %c0_i32, %c0_i32_0 : i32, i32
  }
  func.func @transform_5(%arg0: i32) -> (i32, i32) {
    %c0_i32 = arith.constant 0 : i32
    %c0_i32_0 = arith.constant 0 : i32
    %c0_i32_1 = arith.constant 0 : i32
    return %c0_i32, %c0_i32_0 : i32, i32
  }
  func.func @transform_6(%arg0: i32) -> (i32, i32) {
    %c0_i32 = arith.constant 0 : i32
    %c0_i32_0 = arith.constant 0 : i32
    %c0_i32_1 = arith.constant 0 : i32
    return %c0_i32, %c0_i32_0 : i32, i32
  }
  func.func @transform_7(%arg0: i32) -> (i32, i32) {
    %c0_i32 = arith.constant 0 : i32
    %c0_i32_0 = arith.constant 0 : i32
    %c0_i32_1 = arith.constant 0 : i32
    return %c0_i32, %c0_i32_0 : i32, i32
  }
  func.func @transform_8(%arg0: i32) -> (i32, i32) {
    %c0_i32 = arith.constant 0 : i32
    %c0_i32_0 = arith.constant 0 : i32
    %c0_i32_1 = arith.constant 0 : i32
    return %c0_i32, %c0_i32_0 : i32, i32
  }
  func.func @transform_9(%arg0: i32) -> (i32, i32) {
    %c0_i32 = arith.constant 0 : i32
    %c0_i32_0 = arith.constant 0 : i32
    %c0_i32_1 = arith.constant 0 : i32
    return %c0_i32, %c0_i32_0 : i32, i32
  }
  func.func @transform_10(%arg0: i32) -> (i32, i32) {
    %c0_i32 = arith.constant 0 : i32
    %c0_i32_0 = arith.constant 0 : i32
    %c0_i32_1 = arith.constant 0 : i32
    return %c0_i32, %c0_i32_0 : i32, i32
  }
  func.func @transform_11(%arg0: i32) -> (i32, i32) {
    %c0_i32 = arith.constant 0 : i32
    %c0_i32_0 = arith.constant 0 : i32
    return %arg0, %c0_i32 : i32, i32
  }
}

</mosaic_0001>

<llo_original>
// kernel: _forward.1
$region0: #{_forward.1}
  #allocation0 [shape = 'u32[]', space=smem, size = 0x4, offset = 0x4, fixed_abs, tag = 'smem constant byte address 0x4 - core index']
  #allocation1 [shape = 'u32[144,128]{1,0:T(1,128)}', space=vmem, size = 0x12000, scoped, tag = 'internal scratch']
  #allocation2 [shape = 'bf16[2,8,8,32]{3,2,1,0:T(8,128)(2,1)}', space=vmem, size = 0x8000, scoped, tag = 'scratch operand']
  #allocation3 [shape = 'bf16[2,8,256]{2,1,0:T(8,128)(2,1)}', space=vmem, size = 0x2000, scoped, tag = 'scratch operand']
  #allocation4 [shape = 'bf16[18,512]{1,0:T(8,128)(2,1)}', space=vmem, size = 0x6000, scoped, tag = 'scratch operand']
  #allocation5 [shape = 'bf16[18,64]{1,0:T(8,128)(2,1)}', space=vmem, size = 0x1800, scoped, tag = 'scratch operand']
  #allocation6 [shape = 'bf16[8,256]{1,0:T(8,128)(2,1)}', space=vmem, size = 0x1000, scoped, tag = 'scratch operand']
  #allocation7 [shape = 'bf16[8,64]{1,0:T(8,128)(2,1)}', space=vmem, size = 0x800, scoped, tag = 'scratch operand']
  #allocation8 [shape = 'bf16[2,256]{1,0:T(2,128)(2,1)}', space=vmem, size = 0x400, scoped, tag = 'scratch operand']
  %s0 = inlined_call_operand.vmem [shape: bf16[128,256], index: 0, kind: input, shape index: {}]
  %s1 = inlined_call_operand.vmem [shape: bf16[256,32], index: 1, kind: input, shape index: {}]
  %s2 = inlined_call_operand.vmem [shape: f32[1,32], index: 2, kind: input, shape index: {}]
  %s3 = inlined_call_operand.vmem [shape: bf16[512,64], index: 3, kind: input, shape index: {}]
  %s4 = inlined_call_operand.vmem [shape: f32[1,64], index: 4, kind: input, shape index: {}]
  %s5 = inlined_call_operand.vmem [shape: bf16[256,64], index: 5, kind: input, shape index: {}]
  %s6 = inlined_call_operand.vmem [shape: f32[1,64], index: 6, kind: input, shape index: {}]
  %s7 = inlined_call_operand.vmem [shape: bf16[256,512], index: 7, kind: input, shape index: {}]
  %s8 = inlined_call_operand.vmem [shape: f32[1,512], index: 8, kind: input, shape index: {}]
  %s9 = inlined_call_operand.vmem [shape: bf16[512,128], index: 9, kind: input, shape index: {}]
  %s10 = inlined_call_operand.vmem [shape: f32[1,128], index: 10, kind: input, shape index: {}]
  %s11 = inlined_call_operand.hbm [shape: f32[2,128], index: 11, kind: output, shape index: {}]
  %s12 = sld [smem:[#allocation0]]
  $region54: #{_forward.1} parent=0
    _
  %s14 = ssub.s32 1, %s12
  %s15 = scalar_select 0, %s14, %s12
  $region1: #{_forward.1} parent=0
    #allocation9 [shape = 'u8[1024]{0}', space=vmem, size = 0x400, scoped, tag = 'output window, operand 0, single buffered']
    #allocation10 [shape = 's32[1]{0}', space=sflag, size = 0x4, scoped, tag = 'scoped memory for _forward.1']
    %16 = vsyncpa [#allocation10], 0
    // Predicated region
    $region2: #{_forward.1} parent=1 // pred_check
      _
    $region3: #{_forward.1} parent=1 // pred_check_branch
      %18 = sbr.rel (0) target = $region5
    $region4: #{_forward.1} parent=1 // pred_region
      _
    $region5: #{_forward.1} parent=1 // pred_fallthru
      _
    // Predicated region
    $region6: #{_forward.1} parent=1 // pred_check
      _
    $region7: #{_forward.1} parent=1 // pred_check_branch
      %20 = sbr.rel (0) target = $region9
    $region8: #{_forward.1} parent=1 // pred_region
      _
    $region9: #{_forward.1} parent=1 // pred_fallthru
      _
    // Predicated region
    $region10: #{_forward.1} parent=1 // pred_check
      _
    $region11: #{_forward.1} parent=1 // pred_check_branch
      %22 = sbr.rel (0) target = $region13
    $region12: #{_forward.1} parent=1 // pred_region
      _
    $region13: #{_forward.1} parent=1 // pred_fallthru
      _
    // Predicated region
    $region14: #{_forward.1} parent=1 // pred_check
      _
    $region15: #{_forward.1} parent=1 // pred_check_branch
      %24 = sbr.rel (0) target = $region17
    $region16: #{_forward.1} parent=1 // pred_region
      _
    $region17: #{_forward.1} parent=1 // pred_fallthru
      _
    // Predicated region
    $region18: #{_forward.1} parent=1 // pred_check
      _
    $region19: #{_forward.1} parent=1 // pred_check_branch
      %26 = sbr.rel (0) target = $region21
    $region20: #{_forward.1} parent=1 // pred_region
      _
    $region21: #{_forward.1} parent=1 // pred_fallthru
      _
    // Predicated region
    $region22: #{_forward.1} parent=1 // pred_check
      _
    $region23: #{_forward.1} parent=1 // pred_check_branch
      %28 = sbr.rel (0) target = $region25
    $region24: #{_forward.1} parent=1 // pred_region
      _
    $region25: #{_forward.1} parent=1 // pred_fallthru
      _
    // Predicated region
    $region26: #{_forward.1} parent=1 // pred_check
      _
    $region27: #{_forward.1} parent=1 // pred_check_branch
      %30 = sbr.rel (0) target = $region29
    $region28: #{_forward.1} parent=1 // pred_region
      _
    $region29: #{_forward.1} parent=1 // pred_fallthru
      _
    // Predicated region
    $region30: #{_forward.1} parent=1 // pred_check
      _
    $region31: #{_forward.1} parent=1 // pred_check_branch
      %32 = sbr.rel (0) target = $region33
    $region32: #{_forward.1} parent=1 // pred_region
      _
    $region33: #{_forward.1} parent=1 // pred_fallthru
      _
    // Predicated region
    $region34: #{_forward.1} parent=1 // pred_check
      _
    $region35: #{_forward.1} parent=1 // pred_check_branch
      %34 = sbr.rel (0) target = $region37
    $region36: #{_forward.1} parent=1 // pred_region
      _
    $region37: #{_forward.1} parent=1 // pred_fallthru
      _
    // Predicated region
    $region38: #{_forward.1} parent=1 // pred_check
      _
    $region39: #{_forward.1} parent=1 // pred_check_branch
      %36 = sbr.rel (0) target = $region41
    $region40: #{_forward.1} parent=1 // pred_region
      _
    $region41: #{_forward.1} parent=1 // pred_fallthru
      _
    // Predicated region
    $region42: #{_forward.1} parent=1 // pred_check
      _
    $region43: #{_forward.1} parent=1 // pred_check_branch
      %38 = sbr.rel (0) target = $region45
    $region44: #{_forward.1} parent=1 // pred_region
      _
    $region45: #{_forward.1} parent=1 // pred_fallthru
      _
    %v40 = vld [vmem:[%s0] sm:$0xff]
    %v41 = vld [vmem:[%s0 + $0x8] sm:$0xff]
    %v42 = vld [vmem:[%s0 + $0x10] sm:$0xff]
    %v43 = vld [vmem:[%s0 + $0x18] sm:$0xff]
    %v44 = vld [vmem:[%s0 + $0x20] sm:$0xff]
    %v45 = vld [vmem:[%s0 + $0x28] sm:$0xff]
    %v46 = vld [vmem:[%s0 + $0x30] sm:$0xff]
    %v47 = vld [vmem:[%s0 + $0x38] sm:$0xff]
    %v48 = vld [vmem:[%s0 + $0x40] sm:$0xff]
    %v49 = vld [vmem:[%s0 + $0x48] sm:$0xff]
    %v50 = vld [vmem:[%s0 + $0x50] sm:$0xff]
    %v51 = vld [vmem:[%s0 + $0x58] sm:$0xff]
    %v52 = vld [vmem:[%s0 + $0x60] sm:$0xff]
    %v53 = vld [vmem:[%s0 + $0x68] sm:$0xff]
    %v54 = vld [vmem:[%s0 + $0x70] sm:$0xff]
    %v55 = vld [vmem:[%s0 + $0x78] sm:$0xff]
    %v56 = vld [vmem:[%s1] sm:$0xf]
    %v57 = vld [vmem:[%s1 + $0x4] sm:$0xf]
    %v58 = vld [vmem:[%s1 + $0x8] sm:$0xf]
    %v59 = vld [vmem:[%s1 + $0xc] sm:$0xf]
    %v60 = vld [vmem:[%s1 + $0x10] sm:$0xf]
    %v61 = vld [vmem:[%s1 + $0x14] sm:$0xf]
    %v62 = vld [vmem:[%s1 + $0x18] sm:$0xf]
    %v63 = vld [vmem:[%s1 + $0x1c] sm:$0xf]
    %v64 = vld [vmem:[%s1 + $0x20] sm:$0xf]
    %v65 = vld [vmem:[%s1 + $0x24] sm:$0xf]
    %v66 = vld [vmem:[%s1 + $0x28] sm:$0xf]
    %v67 = vld [vmem:[%s1 + $0x2c] sm:$0xf]
    %v68 = vld [vmem:[%s1 + $0x30] sm:$0xf]
    %v69 = vld [vmem:[%s1 + $0x34] sm:$0xf]
    %v70 = vld [vmem:[%s1 + $0x38] sm:$0xf]
    %v71 = vld [vmem:[%s1 + $0x3c] sm:$0xf]
    %v72 = vld [vmem:[%s1 + $0x40] sm:$0xf]
    %v73 = vld [vmem:[%s1 + $0x44] sm:$0xf]
    %v74 = vld [vmem:[%s1 + $0x48] sm:$0xf]
    %v75 = vld [vmem:[%s1 + $0x4c] sm:$0xf]
    %v76 = vld [vmem:[%s1 + $0x50] sm:$0xf]
    %v77 = vld [vmem:[%s1 + $0x54] sm:$0xf]
    %v78 = vld [vmem:[%s1 + $0x58] sm:$0xf]
    %v79 = vld [vmem:[%s1 + $0x5c] sm:$0xf]
    %v80 = vld [vmem:[%s1 + $0x60] sm:$0xf]
    %v81 = vld [vmem:[%s1 + $0x64] sm:$0xf]
    %v82 = vld [vmem:[%s1 + $0x68] sm:$0xf]
    %v83 = vld [vmem:[%s1 + $0x6c] sm:$0xf]
    %v84 = vld [vmem:[%s1 + $0x70] sm:$0xf]
    %v85 = vld [vmem:[%s1 + $0x74] sm:$0xf]
    %v86 = vld [vmem:[%s1 + $0x78] sm:$0xf]
    %v87 = vld [vmem:[%s1 + $0x7c] sm:$0xf]
    %v88 = vld [vmem:[%s2] sm:$0x1]
    %v90 = vlaneseq
    %v91 = vshrl.u32 %v90, 7
    %v92 = vsub.s32 0, %v91
    %v93 = vrot.slane %v88, %v92
    %v111 = vunpack.c.l.b16 %v40
    %v112 = vunpack.c.h.b16 %v40
    %v113 = vunpack.c.l.b16 %v41
    %v114 = vunpack.c.h.b16 %v41
    %v115 = vunpack.c.l.b16 %v42
    %v116 = vunpack.c.h.b16 %v42
    %v117 = vunpack.c.l.b16 %v43
    %v118 = vunpack.c.h.b16 %v43
    %v119 = vunpack.c.l.b16 %v44
    %v120 = vunpack.c.h.b16 %v44
    %v121 = vunpack.c.l.b16 %v45
    %v122 = vunpack.c.h.b16 %v45
    %v123 = vunpack.c.l.b16 %v46
    %v124 = vunpack.c.h.b16 %v46
    %v125 = vunpack.c.l.b16 %v47
    %v126 = vunpack.c.h.b16 %v47
    %v127 = vunpack.c.l.b16 %v48
    %v128 = vunpack.c.h.b16 %v48
    %v129 = vunpack.c.l.b16 %v49
    %v130 = vunpack.c.h.b16 %v49
    %v131 = vunpack.c.l.b16 %v50
    %v132 = vunpack.c.h.b16 %v50
    %v133 = vunpack.c.l.b16 %v51
    %v134 = vunpack.c.h.b16 %v51
    %v135 = vunpack.c.l.b16 %v52
    %v136 = vunpack.c.h.b16 %v52
    %v137 = vunpack.c.l.b16 %v53
    %v138 = vunpack.c.h.b16 %v53
    %v139 = vunpack.c.l.b16 %v54
    %v140 = vunpack.c.h.b16 %v54
    %v141 = vunpack.c.l.b16 %v55
    %v142 = vunpack.c.h.b16 %v55
    %v143 = vpack.c.b16 %v113, %v111
    %v144 = vpack.c.b16 %v114, %v112
    %v145 = vpack.c.b16 %v117, %v115
    %v146 = vpack.c.b16 %v118, %v116
    %v147 = vpack.c.b16 %v121, %v119
    %v148 = vpack.c.b16 %v122, %v120
    %v149 = vpack.c.b16 %v125, %v123
    %v150 = vpack.c.b16 %v126, %v124
    %v151 = vpack.c.b16 %v129, %v127
    %v152 = vpack.c.b16 %v130, %v128
    %v153 = vpack.c.b16 %v133, %v131
    %v154 = vpack.c.b16 %v134, %v132
    %v155 = vpack.c.b16 %v137, %v135
    %v156 = vpack.c.b16 %v138, %v136
    %v157 = vpack.c.b16 %v141, %v139
    %v158 = vpack.c.b16 %v142, %v140
    %v207 = vunpack.c.l.b16 %v56
    %v208 = vunpack.c.l.b16 %v57
    %v209 = vunpack.c.l.b16 %v58
    %v210 = vunpack.c.l.b16 %v59
    %v211 = vunpack.c.l.b16 %v60
    %v212 = vunpack.c.l.b16 %v61
    %v213 = vunpack.c.l.b16 %v62
    %v214 = vunpack.c.l.b16 %v63
    %v215 = vunpack.c.l.b16 %v64
    %v216 = vunpack.c.l.b16 %v65
    %v217 = vunpack.c.l.b16 %v66
    %v218 = vunpack.c.l.b16 %v67
    %v219 = vunpack.c.l.b16 %v68
    %v220 = vunpack.c.l.b16 %v69
    %v221 = vunpack.c.l.b16 %v70
    %v222 = vunpack.c.l.b16 %v71
    %v223 = vunpack.c.l.b16 %v72
    %v224 = vunpack.c.l.b16 %v73
    %v225 = vunpack.c.l.b16 %v74
    %v226 = vunpack.c.l.b16 %v75
    %v227 = vunpack.c.l.b16 %v76
    %v228 = vunpack.c.l.b16 %v77
    %v229 = vunpack.c.l.b16 %v78
    %v230 = vunpack.c.l.b16 %v79
    %v231 = vunpack.c.l.b16 %v80
    %v232 = vunpack.c.l.b16 %v81
    %v233 = vunpack.c.l.b16 %v82
    %v234 = vunpack.c.l.b16 %v83
    %v235 = vunpack.c.l.b16 %v84
    %v236 = vunpack.c.l.b16 %v85
    %v237 = vunpack.c.l.b16 %v86
    %v238 = vunpack.c.l.b16 %v87
    %v239 = vpack.c.b16 %v208, %v207
    %v240 = vpack.c.b16 %v210, %v209
    %v241 = vpack.c.b16 %v212, %v211
    %v242 = vpack.c.b16 %v214, %v213
    %v243 = vpack.c.b16 %v216, %v215
    %v244 = vpack.c.b16 %v218, %v217
    %v245 = vpack.c.b16 %v220, %v219
    %v246 = vpack.c.b16 %v222, %v221
    %v247 = vpack.c.b16 %v224, %v223
    %v248 = vpack.c.b16 %v226, %v225
    %v249 = vpack.c.b16 %v228, %v227
    %v250 = vpack.c.b16 %v230, %v229
    %v251 = vpack.c.b16 %v232, %v231
    %v252 = vpack.c.b16 %v234, %v233
    %v253 = vpack.c.b16 %v236, %v235
    %v254 = vpack.c.b16 %v238, %v237
    %271 = vmatprep.subr.bf16.mxu0 0
    %272 = vmatpush1.bf16.msra.mxu0 %v239
    %273 = vmatprep.subr.bf16.mxu0 0
    %274 = vmatpush1.bf16.msra.mxu0 %v240
    %275 = vmatprep.subr.bf16.mxu0 0
    %276 = vmatpush1.bf16.msra.mxu0 %v241
    %277 = vmatprep.subr.bf16.mxu0 0
    %278 = vmatpush1.bf16.msra.mxu0 %v242
    %279 = vmatprep.subr.bf16.mxu0 0
    %280 = vmatpush1.bf16.msra.mxu0 %v243
    %281 = vmatprep.subr.bf16.mxu0 0
    %282 = vmatpush1.bf16.msra.mxu0 %v244
    %283 = vmatprep.subr.bf16.mxu0 0
    %284 = vmatpush1.bf16.msra.mxu0 %v245
    %285 = vmatprep.subr.bf16.mxu0 0
    %286 = vmatpush1.bf16.msra.mxu0 %v246
    %287 = vmatprep.subr.bf16.mxu0 0
    %288 = vmatpush1.bf16.msra.mxu0 %v247
    %289 = vmatprep.subr.bf16.mxu0 0
    %290 = vmatpush1.bf16.msra.mxu0 %v248
    %291 = vmatprep.subr.bf16.mxu0 0
    %292 = vmatpush1.bf16.msra.mxu0 %v249
    %293 = vmatprep.subr.bf16.mxu0 0
    %294 = vmatpush1.bf16.msra.mxu0 %v250
    %295 = vmatprep.subr.bf16.mxu0 0
    %296 = vmatpush1.bf16.msra.mxu0 %v251
    %297 = vmatprep.subr.bf16.mxu0 0
    %298 = vmatpush1.bf16.msra.mxu0 %v252
    %299 = vmatprep.subr.bf16.mxu0 0
    %300 = vmatpush1.bf16.msra.mxu0 %v253
    %301 = vmatprep.subr.bf16.mxu0 0
    %302 = vmatpush1.bf16.msra.mxu0 %v254
    %303 = vmatprep.mubr.bf16.mxu0 %v144
    %304 = vmatmul.mubr.bf16.gmra.mrb[0].mxu0 %v143
    %v305 = vpop.f32.mrb[0].mxu0
    %v306 = vadd.f32 %v93, %v305
    %v307 = vpop.f32.mrb[0].mxu0
    %v308 = vpop.f32.mrb[0].mxu0
    %v309 = vadd.f32 %v93, %v308
    %v310 = vpop.f32.mrb[0].mxu0
    %311 = vmatprep.mubr.bf16.mxu0 %v146
    %312 = vmatmul.mubr.bf16.gmra.mrb[0].mxu0 %v145
    %v313 = vpop.f32.mrb[0].mxu0
    %v314 = vadd.f32 %v93, %v313
    %v315 = vpop.f32.mrb[0].mxu0
    %v316 = vpop.f32.mrb[0].mxu0
    %v317 = vadd.f32 %v93, %v316
    %v318 = vpop.f32.mrb[0].mxu0
    %319 = vmatprep.mubr.bf16.mxu0 %v148
    %320 = vmatmul.mubr.bf16.gmra.mrb[0].mxu0 %v147
    %v321 = vpop.f32.mrb[0].mxu0
    %v322 = vadd.f32 %v93, %v321
    %v323 = vpop.f32.mrb[0].mxu0
    %v324 = vpop.f32.mrb[0].mxu0
    %v325 = vadd.f32 %v93, %v324
    %v326 = vpop.f32.mrb[0].mxu0
    %327 = vmatprep.mubr.bf16.mxu0 %v150
    %328 = vmatmul.mubr.bf16.gmra.mrb[0].mxu0 %v149
    %v329 = vpop.f32.mrb[0].mxu0
    %v330 = vadd.f32 %v93, %v329
    %v331 = vpop.f32.mrb[0].mxu0
    %v332 = vpop.f32.mrb[0].mxu0
    %v333 = vadd.f32 %v93, %v332
    %v334 = vpop.f32.mrb[0].mxu0
    %335 = vmatprep.mubr.bf16.mxu0 %v152
    %336 = vmatmul.mubr.bf16.gmra.mrb[0].mxu0 %v151
    %v337 = vpop.f32.mrb[0].mxu0
    %v338 = vadd.f32 %v93, %v337
    %v339 = vpop.f32.mrb[0].mxu0
    %v340 = vpop.f32.mrb[0].mxu0
    %v341 = vadd.f32 %v93, %v340
    %v342 = vpop.f32.mrb[0].mxu0
    %343 = vmatprep.mubr.bf16.mxu0 %v154
    %344 = vmatmul.mubr.bf16.gmra.mrb[0].mxu0 %v153
    %v345 = vpop.f32.mrb[0].mxu0
    %v346 = vadd.f32 %v93, %v345
    %v347 = vpop.f32.mrb[0].mxu0
    %v348 = vpop.f32.mrb[0].mxu0
    %v349 = vadd.f32 %v93, %v348
    %v350 = vpop.f32.mrb[0].mxu0
    %351 = vmatprep.mubr.bf16.mxu0 %v156
    %352 = vmatmul.mubr.bf16.gmra.mrb[0].mxu0 %v155
    %v353 = vpop.f32.mrb[0].mxu0
    %v354 = vadd.f32 %v93, %v353
    %v355 = vpop.f32.mrb[0].mxu0
    %v356 = vpop.f32.mrb[0].mxu0
    %v357 = vadd.f32 %v93, %v356
    %v358 = vpop.f32.mrb[0].mxu0
    %359 = vmatprep.mubr.bf16.mxu0 %v158
    %360 = vmatmul.mubr.bf16.gmra.mrb[0].mxu0 %v157
    %v361 = vpop.f32.mrb[0].mxu0
    %v362 = vadd.f32 %v93, %v361
    %v363 = vpop.f32.mrb[0].mxu0
    %v364 = vpop.f32.mrb[0].mxu0
    %v365 = vadd.f32 %v93, %v364
    %v366 = vpop.f32.mrb[0].mxu0
    %367 = vdwg.mxu0
    %v368 = vmax.f32 %v306, 0.0
    %v369 = vmax.f32 %v309, 0.0
    %v370 = vmax.f32 %v314, 0.0
    %v371 = vmax.f32 %v317, 0.0
    %v372 = vmax.f32 %v322, 0.0
    %v373 = vmax.f32 %v325, 0.0
    %v374 = vmax.f32 %v330, 0.0
    %v375 = vmax.f32 %v333, 0.0
    %v376 = vmax.f32 %v338, 0.0
    %v377 = vmax.f32 %v341, 0.0
    %v378 = vmax.f32 %v346, 0.0
    %v379 = vmax.f32 %v349, 0.0
    %v380 = vmax.f32 %v354, 0.0
    %v381 = vmax.f32 %v357, 0.0
    %v382 = vmax.f32 %v362, 0.0
    %v383 = vmax.f32 %v365, 0.0
    %v384 = vpack.c.bf16 %v369, %v368
    %v385 = vpack.c.bf16 %v371, %v370
    %v386 = vpack.c.bf16 %v373, %v372
    %v387 = vpack.c.bf16 %v375, %v374
    %v388 = vpack.c.bf16 %v377, %v376
    %v389 = vpack.c.bf16 %v379, %v378
    %v390 = vpack.c.bf16 %v381, %v380
    %v391 = vpack.c.bf16 %v383, %v382
    %v400 = vunpack.c.l.b16 %v384
    %v401 = vunpack.c.h.b16 %v384
    %v402 = vunpack.c.l.b16 %v385
    %v403 = vunpack.c.h.b16 %v385
    %v404 = vunpack.c.l.b16 %v386
    %v405 = vunpack.c.h.b16 %v386
    %v406 = vunpack.c.l.b16 %v387
    %v407 = vunpack.c.h.b16 %v387
    %v408 = vunpack.c.l.b16 %v388
    %v409 = vunpack.c.h.b16 %v388
    %v410 = vunpack.c.l.b16 %v389
    %v411 = vunpack.c.h.b16 %v389
    %v412 = vunpack.c.l.b16 %v390
    %v413 = vunpack.c.h.b16 %v390
    %v414 = vunpack.c.l.b16 %v391
    %v415 = vunpack.c.h.b16 %v391
    %v416 = vpack.c.b16 %v400, %v400
    %v417 = vpack.c.b16 %v401, %v401
    %v418 = vpack.c.b16 %v402, %v402
    %v419 = vpack.c.b16 %v403, %v403
    %v420 = vpack.c.b16 %v404, %v404
    %v421 = vpack.c.b16 %v405, %v405
    %v422 = vpack.c.b16 %v406, %v406
    %v423 = vpack.c.b16 %v407, %v407
    %v424 = vpack.c.b16 %v408, %v408
    %v425 = vpack.c.b16 %v409, %v409
    %v426 = vpack.c.b16 %v410, %v410
    %v427 = vpack.c.b16 %v411, %v411
    %v428 = vpack.c.b16 %v412, %v412
    %v429 = vpack.c.b16 %v413, %v413
    %v430 = vpack.c.b16 %v414, %v414
    %v431 = vpack.c.b16 %v415, %v415
    %vm448 = vcmask 257024
    %449 = vst.msk [vmem:[#allocation2] sm:$0xf] %vm448, %v416
    %450 = vst.msk [vmem:[#allocation2 + $0x4] sm:$0xf] %vm448, %v417
    %451 = vst.msk [vmem:[#allocation2 + $0x8] sm:$0xf] %vm448, %v418
    %452 = vst.msk [vmem:[#allocation2 + $0xc] sm:$0xf] %vm448, %v419
    %453 = vst.msk [vmem:[#allocation2 + $0x10] sm:$0xf] %vm448, %v420
    %454 = vst.msk [vmem:[#allocation2 + $0x14] sm:$0xf] %vm448, %v421
    %455 = vst.msk [vmem:[#allocation2 + $0x18] sm:$0xf] %vm448, %v422
    %456 = vst.msk [vmem:[#allocation2 + $0x1c] sm:$0xf] %vm448, %v423
    %457 = vst.msk [vmem:[#allocation2 + $0x20] sm:$0xf] %vm448, %v424
    %458 = vst.msk [vmem:[#allocation2 + $0x24] sm:$0xf] %vm448, %v425
    %459 = vst.msk [vmem:[#allocation2 + $0x28] sm:$0xf] %vm448, %v426
    %460 = vst.msk [vmem:[#allocation2 + $0x2c] sm:$0xf] %vm448, %v427
    %461 = vst.msk [vmem:[#allocation2 + $0x30] sm:$0xf] %vm448, %v428
    %462 = vst.msk [vmem:[#allocation2 + $0x34] sm:$0xf] %vm448, %v429
    %463 = vst.msk [vmem:[#allocation2 + $0x38] sm:$0xf] %vm448, %v430
    %464 = vst.msk [vmem:[#allocation2 + $0x3c] sm:$0xf] %vm448, %v431
    %v465 = vld [vmem:[#allocation2] sm:$0x1]
    %v466 = vld [vmem:[#allocation2 + $0x4] sm:$0x1]
    %v467 = vld [vmem:[#allocation2 + $0x8] sm:$0x1]
    %v468 = vld [vmem:[#allocation2 + $0xc] sm:$0x1]
    %v469 = vld [vmem:[#allocation2 + $0x10] sm:$0x1]
    %v470 = vld [vmem:[#allocation2 + $0x14] sm:$0x1]
    %v471 = vld [vmem:[#allocation2 + $0x18] sm:$0x1]
    %v472 = vld [vmem:[#allocation2 + $0x1c] sm:$0x1]
    %v473 = vld [vmem:[#allocation2 + $0x20] sm:$0x1]
    %v474 = vld [vmem:[#allocation2 + $0x24] sm:$0x1]
    %v475 = vld [vmem:[#allocation2 + $0x28] sm:$0x1]
    %v476 = vld [vmem:[#allocation2 + $0x2c] sm:$0x1]
    %v477 = vld [vmem:[#allocation2 + $0x30] sm:$0x1]
    %v478 = vld [vmem:[#allocation2 + $0x34] sm:$0x1]
    %v479 = vld [vmem:[#allocation2 + $0x38] sm:$0x1]
    %v480 = vld [vmem:[#allocation2 + $0x3c] sm:$0x1]
    %v497 = vunpack.c.l.b16 %v465
    %v498 = vunpack.c.l.b16 %v466
    %v499 = vunpack.c.l.b16 %v467
    %v500 = vunpack.c.l.b16 %v468
    %v501 = vunpack.c.l.b16 %v469
    %v502 = vunpack.c.l.b16 %v470
    %v503 = vunpack.c.l.b16 %v471
    %v504 = vunpack.c.l.b16 %v472
    %v505 = vunpack.c.l.b16 %v473
    %v506 = vunpack.c.l.b16 %v474
    %v507 = vunpack.c.l.b16 %v475
    %v508 = vunpack.c.l.b16 %v476
    %v509 = vunpack.c.l.b16 %v477
    %v510 = vunpack.c.l.b16 %v478
    %v511 = vunpack.c.l.b16 %v479
    %v512 = vunpack.c.l.b16 %v480
    %v513 = vrot.slane %v498, 7
    %vm514 = vcmask 1041409
    %v515 = vsel %vm514, %v513, %v497
    %v516 = vrot.slane %v499, 6
    %vm517 = vcmask 1042434
    %v518 = vsel %vm517, %v516, %v515
    %v519 = vrot.slane %v500, 5
    %vm520 = vcmask 1043459
    %v521 = vsel %vm520, %v519, %v518
    %v522 = vrot.slane %v501, 4
    %vm523 = vcmask 1044484
    %v524 = vsel %vm523, %v522, %v521
    %v525 = vrot.slane %v502, 3
    %vm526 = vcmask 1045509
    %v527 = vsel %vm526, %v525, %v524
    %v528 = vrot.slane %v503, 2
    %vm529 = vcmask 1046534
    %v530 = vsel %vm529, %v528, %v527
    %v531 = vrot.slane %v504, 1
    %vm532 = vcmask 1047559
    %v533 = vsel %vm532, %v531, %v530
    %v534 = vrot.slane %v506, 7
    %v535 = vsel %vm514, %v534, %v505
    %v536 = vrot.slane %v507, 6
    %v537 = vsel %vm517, %v536, %v535
    %v538 = vrot.slane %v508, 5
    %v539 = vsel %vm520, %v538, %v537
    %v540 = vrot.slane %v509, 4
    %v541 = vsel %vm523, %v540, %v539
    %v542 = vrot.slane %v510, 3
    %v543 = vsel %vm526, %v542, %v541
    %v544 = vrot.slane %v511, 2
    %v545 = vsel %vm529, %v544, %v543
    %v546 = vrot.slane %v512, 1
    %v547 = vsel %vm532, %v546, %v545
    %v548 = vpack.c.b16 %v533, %v533
    %v549 = vpack.c.b16 %v547, %v547
    %552 = vst.msk [vmem:[#allocation3] sm:$0xf] %vm448, %v548
    %553 = vst.msk [vmem:[#allocation3 + $0x8] sm:$0xf] %vm448, %v549
    %v554 = vld [vmem:[#allocation2] sm:$0x1]
    %v555 = vld [vmem:[#allocation2 + $0x4] sm:$0x1]
    %v556 = vld [vmem:[#allocation2 + $0x8] sm:$0x1]
    %v557 = vld [vmem:[#allocation2 + $0xc] sm:$0x1]
    %v558 = vld [vmem:[#allocation2 + $0x10] sm:$0x1]
    %v559 = vld [vmem:[#allocation2 + $0x14] sm:$0x1]
    %v560 = vld [vmem:[#allocation2 + $0x18] sm:$0x1]
    %v561 = vld [vmem:[#allocation2 + $0x1c] sm:$0x1]
    %v562 = vld [vmem:[#allocation2 + $0x20] sm:$0x1]
    %v563 = vld [vmem:[#allocation2 + $0x24] sm:$0x1]
    %v564 = vld [vmem:[#allocation2 + $0x28] sm:$0x1]
    %v565 = vld [vmem:[#allocation2 + $0x2c] sm:$0x1]
    %v566 = vld [vmem:[#allocation2 + $0x30] sm:$0x1]
    %v567 = vld [vmem:[#allocation2 + $0x34] sm:$0x1]
    %v568 = vld [vmem:[#allocation2 + $0x38] sm:$0x1]
    %v569 = vld [vmem:[#allocation2 + $0x3c] sm:$0x1]
    %v586 = vunpack.c.l.b16 %v554
    %v587 = vunpack.c.l.b16 %v555
    %v588 = vunpack.c.l.b16 %v556
    %v589 = vunpack.c.l.b16 %v557
    %v590 = vunpack.c.l.b16 %v558
    %v591 = vunpack.c.l.b16 %v559
    %v592 = vunpack.c.l.b16 %v560
    %v593 = vunpack.c.l.b16 %v561
    %v594 = vunpack.c.l.b16 %v562
    %v595 = vunpack.c.l.b16 %v563
    %v596 = vunpack.c.l.b16 %v564
    %v597 = vunpack.c.l.b16 %v565
    %v598 = vunpack.c.l.b16 %v566
    %v599 = vunpack.c.l.b16 %v567
    %v600 = vunpack.c.l.b16 %v568
    %v601 = vunpack.c.l.b16 %v569
    %v602 = vrot.slane %v586, 1
    %v603 = vsel %vm514, %v587, %v602
    %v604 = vrot.slane %v588, 7
    %v605 = vsel %vm517, %v604, %v603
    %v606 = vrot.slane %v589, 6
    %v607 = vsel %vm520, %v606, %v605
    %v608 = vrot.slane %v590, 5
    %v609 = vsel %vm523, %v608, %v607
    %v610 = vrot.slane %v591, 4
    %v611 = vsel %vm526, %v610, %v609
    %v612 = vrot.slane %v592, 3
    %v613 = vsel %vm529, %v612, %v611
    %v614 = vrot.slane %v593, 2
    %v615 = vsel %vm532, %v614, %v613
    %v616 = vrot.slane %v594, 1
    %v617 = vsel %vm514, %v595, %v616
    %v618 = vrot.slane %v596, 7
    %v619 = vsel %vm517, %v618, %v617
    %v620 = vrot.slane %v597, 6
    %v621 = vsel %vm520, %v620, %v619
    %v622 = vrot.slane %v598, 5
    %v623 = vsel %vm523, %v622, %v621
    %v624 = vrot.slane %v599, 4
    %v625 = vsel %vm526, %v624, %v623
    %v626 = vrot.slane %v600, 3
    %v627 = vsel %vm529, %v626, %v625
    %v628 = vrot.slane %v601, 2
    %v629 = vsel %vm532, %v628, %v627
    %v630 = vpack.c.b16 %v615, %v615
    %v631 = vpack.c.b16 %v629, %v629
    %632 = vrot.lane.b32.xlu0 %v630, 32
    %v633 = vpop.permute.xlu0 %632
    %634 = vrot.lane.b32.xlu0 %v631, 32
    %v635 = vpop.permute.xlu0 %634
    %vm638 = vcmask 519424
    %639 = vst.msk [vmem:[#allocation3] sm:$0xf] %vm638, %v633
    %640 = vst.msk [vmem:[#allocation3 + $0x8] sm:$0xf] %vm638, %v635
    %v641 = vld [vmem:[#allocation2] sm:$0x2]
    %v642 = vld [vmem:[#allocation2 + $0x4] sm:$0x2]
    %v643 = vld [vmem:[#allocation2 + $0x8] sm:$0x2]
    %v644 = vld [vmem:[#allocation2 + $0xc] sm:$0x2]
    %v645 = vld [vmem:[#allocation2 + $0x10] sm:$0x2]
    %v646 = vld [vmem:[#allocation2 + $0x14] sm:$0x2]
    %v647 = vld [vmem:[#allocation2 + $0x18] sm:$0x2]
    %v648 = vld [vmem:[#allocation2 + $0x1c] sm:$0x2]
    %v649 = vld [vmem:[#allocation2 + $0x20] sm:$0x2]
    %v650 = vld [vmem:[#allocation2 + $0x24] sm:$0x2]
    %v651 = vld [vmem:[#allocation2 + $0x28] sm:$0x2]
    %v652 = vld [vmem:[#allocation2 + $0x2c] sm:$0x2]
    %v653 = vld [vmem:[#allocation2 + $0x30] sm:$0x2]
    %v654 = vld [vmem:[#allocation2 + $0x34] sm:$0x2]
    %v655 = vld [vmem:[#allocation2 + $0x38] sm:$0x2]
    %v656 = vld [vmem:[#allocation2 + $0x3c] sm:$0x2]
    %v673 = vunpack.c.l.b16 %v641
    %v674 = vunpack.c.l.b16 %v642
    %v675 = vunpack.c.l.b16 %v643
    %v676 = vunpack.c.l.b16 %v644
    %v677 = vunpack.c.l.b16 %v645
    %v678 = vunpack.c.l.b16 %v646
    %v679 = vunpack.c.l.b16 %v647
    %v680 = vunpack.c.l.b16 %v648
    %v681 = vunpack.c.l.b16 %v649
    %v682 = vunpack.c.l.b16 %v650
    %v683 = vunpack.c.l.b16 %v651
    %v684 = vunpack.c.l.b16 %v652
    %v685 = vunpack.c.l.b16 %v653
    %v686 = vunpack.c.l.b16 %v654
    %v687 = vunpack.c.l.b16 %v655
    %v688 = vunpack.c.l.b16 %v656
    %v689 = vrot.slane %v673, 2
    %v690 = vrot.slane %v674, 1
    %v691 = vsel %vm514, %v690, %v689
    %v692 = vsel %vm517, %v675, %v691
    %v693 = vrot.slane %v676, 7
    %v694 = vsel %vm520, %v693, %v692
    %v695 = vrot.slane %v677, 6
    %v696 = vsel %vm523, %v695, %v694
    %v697 = vrot.slane %v678, 5
    %v698 = vsel %vm526, %v697, %v696
    %v699 = vrot.slane %v679, 4
    %v700 = vsel %vm529, %v699, %v698
    %v701 = vrot.slane %v680, 3
    %v702 = vsel %vm532, %v701, %v700
    %v703 = vrot.slane %v681, 2
    %v704 = vrot.slane %v682, 1
    %v705 = vsel %vm514, %v704, %v703
    %v706 = vsel %vm517, %v683, %v705
    %v707 = vrot.slane %v684, 7
    %v708 = vsel %vm520, %v707, %v706
    %v709 = vrot.slane %v685, 6
    %v710 = vsel %vm523, %v709, %v708
    %v711 = vrot.slane %v686, 5
    %v712 = vsel %vm526, %v711, %v710
    %v713 = vrot.slane %v687, 4
    %v714 = vsel %vm529, %v713, %v712
    %v715 = vrot.slane %v688, 3
    %v716 = vsel %vm532, %v715, %v714
    %v717 = vpack.c.b16 %v702, %v702
    %v718 = vpack.c.b16 %v716, %v716
    %719 = vrot.lane.b32.xlu0 %v717, 64
    %v720 = vpop.permute.xlu0 %719
    %721 = vrot.lane.b32.xlu0 %v718, 64
    %v722 = vpop.permute.xlu0 %721
    %vm725 = vcmask 781824
    %726 = vst.msk [vmem:[#allocation3] sm:$0xf] %vm725, %v720
    %727 = vst.msk [vmem:[#allocation3 + $0x8] sm:$0xf] %vm725, %v722
    %v728 = vld [vmem:[#allocation2] sm:$0x2]
    %v729 = vld [vmem:[#allocation2 + $0x4] sm:$0x2]
    %v730 = vld [vmem:[#allocation2 + $0x8] sm:$0x2]
    %v731 = vld [vmem:[#allocation2 + $0xc] sm:$0x2]
    %v732 = vld [vmem:[#allocation2 + $0x10] sm:$0x2]
    %v733 = vld [vmem:[#allocation2 + $0x14] sm:$0x2]
    %v734 = vld [vmem:[#allocation2 + $0x18] sm:$0x2]
    %v735 = vld [vmem:[#allocation2 + $0x1c] sm:$0x2]
    %v736 = vld [vmem:[#allocation2 + $0x20] sm:$0x2]
    %v737 = vld [vmem:[#allocation2 + $0x24] sm:$0x2]
    %v738 = vld [vmem:[#allocation2 + $0x28] sm:$0x2]
    %v739 = vld [vmem:[#allocation2 + $0x2c] sm:$0x2]
    %v740 = vld [vmem:[#allocation2 + $0x30] sm:$0x2]
    %v741 = vld [vmem:[#allocation2 + $0x34] sm:$0x2]
    %v742 = vld [vmem:[#allocation2 + $0x38] sm:$0x2]
    %v743 = vld [vmem:[#allocation2 + $0x3c] sm:$0x2]
    %v760 = vunpack.c.l.b16 %v728
    %v761 = vunpack.c.l.b16 %v729
    %v762 = vunpack.c.l.b16 %v730
    %v763 = vunpack.c.l.b16 %v731
    %v764 = vunpack.c.l.b16 %v732
    %v765 = vunpack.c.l.b16 %v733
    %v766 = vunpack.c.l.b16 %v734
    %v767 = vunpack.c.l.b16 %v735
    %v768 = vunpack.c.l.b16 %v736
    %v769 = vunpack.c.l.b16 %v737
    %v770 = vunpack.c.l.b16 %v738
    %v771 = vunpack.c.l.b16 %v739
    %v772 = vunpack.c.l.b16 %v740
    %v773 = vunpack.c.l.b16 %v741
    %v774 = vunpack.c.l.b16 %v742
    %v775 = vunpack.c.l.b16 %v743
    %v776 = vrot.slane %v760, 3
    %v777 = vrot.slane %v761, 2
    %v778 = vsel %vm514, %v777, %v776
    %v779 = vrot.slane %v762, 1
    %v780 = vsel %vm517, %v779, %v778
    %v781 = vsel %vm520, %v763, %v780
    %v782 = vrot.slane %v764, 7
    %v783 = vsel %vm523, %v782, %v781
    %v784 = vrot.slane %v765, 6
    %v785 = vsel %vm526, %v784, %v783
    %v786 = vrot.slane %v766, 5
    %v787 = vsel %vm529, %v786, %v785
    %v788 = vrot.slane %v767, 4
    %v789 = vsel %vm532, %v788, %v787
    %v790 = vrot.slane %v768, 3
    %v791 = vrot.slane %v769, 2
    %v792 = vsel %vm514, %v791, %v790
    %v793 = vrot.slane %v770, 1
    %v794 = vsel %vm517, %v793, %v792
    %v795 = vsel %vm520, %v771, %v794
    %v796 = vrot.slane %v772, 7
    %v797 = vsel %vm523, %v796, %v795
    %v798 = vrot.slane %v773, 6
    %v799 = vsel %vm526, %v798, %v797
    %v800 = vrot.slane %v774, 5
    %v801 = vsel %vm529, %v800, %v799
    %v802 = vrot.slane %v775, 4
    %v803 = vsel %vm532, %v802, %v801
    %v804 = vpack.c.b16 %v789, %v789
    %v805 = vpack.c.b16 %v803, %v803
    %806 = vrot.lane.b32.xlu0 %v804, 96
    %v807 = vpop.permute.xlu0 %806
    %808 = vrot.lane.b32.xlu0 %v805, 96
    %v809 = vpop.permute.xlu0 %808
    %vm812 = vcmask 1044224
    %813 = vst.msk [vmem:[#allocation3] sm:$0xf] %vm812, %v807
    %814 = vst.msk [vmem:[#allocation3 + $0x8] sm:$0xf] %vm812, %v809
    %v815 = vld [vmem:[#allocation2] sm:$0x4]
    %v816 = vld [vmem:[#allocation2 + $0x4] sm:$0x4]
    %v817 = vld [vmem:[#allocation2 + $0x8] sm:$0x4]
    %v818 = vld [vmem:[#allocation2 + $0xc] sm:$0x4]
    %v819 = vld [vmem:[#allocation2 + $0x10] sm:$0x4]
    %v820 = vld [vmem:[#allocation2 + $0x14] sm:$0x4]
    %v821 = vld [vmem:[#allocation2 + $0x18] sm:$0x4]
    %v822 = vld [vmem:[#allocation2 + $0x1c] sm:$0x4]
    %v823 = vld [vmem:[#allocation2 + $0x20] sm:$0x4]
    %v824 = vld [vmem:[#allocation2 + $0x24] sm:$0x4]
    %v825 = vld [vmem:[#allocation2 + $0x28] sm:$0x4]
    %v826 = vld [vmem:[#allocation2 + $0x2c] sm:$0x4]
    %v827 = vld [vmem:[#allocation2 + $0x30] sm:$0x4]
    %v828 = vld [vmem:[#allocation2 + $0x34] sm:$0x4]
    %v829 = vld [vmem:[#allocation2 + $0x38] sm:$0x4]
    %v830 = vld [vmem:[#allocation2 + $0x3c] sm:$0x4]
    %v847 = vunpack.c.l.b16 %v815
    %v848 = vunpack.c.l.b16 %v816
    %v849 = vunpack.c.l.b16 %v817
    %v850 = vunpack.c.l.b16 %v818
    %v851 = vunpack.c.l.b16 %v819
    %v852 = vunpack.c.l.b16 %v820
    %v853 = vunpack.c.l.b16 %v821
    %v854 = vunpack.c.l.b16 %v822
    %v855 = vunpack.c.l.b16 %v823
    %v856 = vunpack.c.l.b16 %v824
    %v857 = vunpack.c.l.b16 %v825
    %v858 = vunpack.c.l.b16 %v826
    %v859 = vunpack.c.l.b16 %v827
    %v860 = vunpack.c.l.b16 %v828
    %v861 = vunpack.c.l.b16 %v829
    %v862 = vunpack.c.l.b16 %v830
    %v863 = vrot.slane %v847, 4
    %v864 = vrot.slane %v848, 3
    %v865 = vsel %vm514, %v864, %v863
    %v866 = vrot.slane %v849, 2
    %v867 = vsel %vm517, %v866, %v865
    %v868 = vrot.slane %v850, 1
    %v869 = vsel %vm520, %v868, %v867
    %v870 = vsel %vm523, %v851, %v869
    %v871 = vrot.slane %v852, 7
    %v872 = vsel %vm526, %v871, %v870
    %v873 = vrot.slane %v853, 6
    %v874 = vsel %vm529, %v873, %v872
    %v875 = vrot.slane %v854, 5
    %v876 = vsel %vm532, %v875, %v874
    %v877 = vrot.slane %v855, 4
    %v878 = vrot.slane %v856, 3
    %v879 = vsel %vm514, %v878, %v877
    %v880 = vrot.slane %v857, 2
    %v881 = vsel %vm517, %v880, %v879
    %v882 = vrot.slane %v858, 1
    %v883 = vsel %vm520, %v882, %v881
    %v884 = vsel %vm523, %v859, %v883
    %v885 = vrot.slane %v860, 7
    %v886 = vsel %vm526, %v885, %v884
    %v887 = vrot.slane %v861, 6
    %v888 = vsel %vm529, %v887, %v886
    %v889 = vrot.slane %v862, 5
    %v890 = vsel %vm532, %v889, %v888
    %v891 = vpack.c.b16 %v876, %v876
    %v892 = vpack.c.b16 %v890, %v890
    %895 = vst.msk [vmem:[#allocation3 + $0x4] sm:$0xf] %vm448, %v891
    %896 = vst.msk [vmem:[#allocation3 + $0xc] sm:$0xf] %vm448, %v892
    %v897 = vld [vmem:[#allocation2] sm:$0x4]
    %v898 = vld [vmem:[#allocation2 + $0x4] sm:$0x4]
    %v899 = vld [vmem:[#allocation2 + $0x8] sm:$0x4]
    %v900 = vld [vmem:[#allocation2 + $0xc] sm:$0x4]
    %v901 = vld [vmem:[#allocation2 + $0x10] sm:$0x4]
    %v902 = vld [vmem:[#allocation2 + $0x14] sm:$0x4]
    %v903 = vld [vmem:[#allocation2 + $0x18] sm:$0x4]
    %v904 = vld [vmem:[#allocation2 + $0x1c] sm:$0x4]
    %v905 = vld [vmem:[#allocation2 + $0x20] sm:$0x4]
    %v906 = vld [vmem:[#allocation2 + $0x24] sm:$0x4]
    %v907 = vld [vmem:[#allocation2 + $0x28] sm:$0x4]
    %v908 = vld [vmem:[#allocation2 + $0x2c] sm:$0x4]
    %v909 = vld [vmem:[#allocation2 + $0x30] sm:$0x4]
    %v910 = vld [vmem:[#allocation2 + $0x34] sm:$0x4]
    %v911 = vld [vmem:[#allocation2 + $0x38] sm:$0x4]
    %v912 = vld [vmem:[#allocation2 + $0x3c] sm:$0x4]
    %v929 = vunpack.c.l.b16 %v897
    %v930 = vunpack.c.l.b16 %v898
    %v931 = vunpack.c.l.b16 %v899
    %v932 = vunpack.c.l.b16 %v900
    %v933 = vunpack.c.l.b16 %v901
    %v934 = vunpack.c.l.b16 %v902
    %v935 = vunpack.c.l.b16 %v903
    %v936 = vunpack.c.l.b16 %v904
    %v937 = vunpack.c.l.b16 %v905
    %v938 = vunpack.c.l.b16 %v906
    %v939 = vunpack.c.l.b16 %v907
    %v940 = vunpack.c.l.b16 %v908
    %v941 = vunpack.c.l.b16 %v909
    %v942 = vunpack.c.l.b16 %v910
    %v943 = vunpack.c.l.b16 %v911
    %v944 = vunpack.c.l.b16 %v912
    %v945 = vrot.slane %v929, 5
    %v946 = vrot.slane %v930, 4
    %v947 = vsel %vm514, %v946, %v945
    %v948 = vrot.slane %v931, 3
    %v949 = vsel %vm517, %v948, %v947
    %v950 = vrot.slane %v932, 2
    %v951 = vsel %vm520, %v950, %v949
    %v952 = vrot.slane %v933, 1
    %v953 = vsel %vm523, %v952, %v951
    %v954 = vsel %vm526, %v934, %v953
    %v955 = vrot.slane %v935, 7
    %v956 = vsel %vm529, %v955, %v954
    %v957 = vrot.slane %v936, 6
    %v958 = vsel %vm532, %v957, %v956
    %v959 = vrot.slane %v937, 5
    %v960 = vrot.slane %v938, 4
    %v961 = vsel %vm514, %v960, %v959
    %v962 = vrot.slane %v939, 3
    %v963 = vsel %vm517, %v962, %v961
    %v964 = vrot.slane %v940, 2
    %v965 = vsel %vm520, %v964, %v963
    %v966 = vrot.slane %v941, 1
    %v967 = vsel %vm523, %v966, %v965
    %v968 = vsel %vm526, %v942, %v967
    %v969 = vrot.slane %v943, 7
    %v970 = vsel %vm529, %v969, %v968
    %v971 = vrot.slane %v944, 6
    %v972 = vsel %vm532, %v971, %v970
    %v973 = vpack.c.b16 %v958, %v958
    %v974 = vpack.c.b16 %v972, %v972
    %975 = vrot.lane.b32.xlu0 %v973, 32
    %v976 = vpop.permute.xlu0 %975
    %977 = vrot.lane.b32.xlu0 %v974, 32
    %v978 = vpop.permute.xlu0 %977
    %981 = vst.msk [vmem:[#allocation3 + $0x4] sm:$0xf] %vm638, %v976
    %982 = vst.msk [vmem:[#allocation3 + $0xc] sm:$0xf] %vm638, %v978
    %v983 = vld [vmem:[#allocation2] sm:$0x8]
    %v984 = vld [vmem:[#allocation2 + $0x4] sm:$0x8]
    %v985 = vld [vmem:[#allocation2 + $0x8] sm:$0x8]
    %v986 = vld [vmem:[#allocation2 + $0xc] sm:$0x8]
    %v987 = vld [vmem:[#allocation2 + $0x10] sm:$0x8]
    %v988 = vld [vmem:[#allocation2 + $0x14] sm:$0x8]
    %v989 = vld [vmem:[#allocation2 + $0x18] sm:$0x8]
    %v990 = vld [vmem:[#allocation2 + $0x1c] sm:$0x8]
    %v991 = vld [vmem:[#allocation2 + $0x20] sm:$0x8]
    %v992 = vld [vmem:[#allocation2 + $0x24] sm:$0x8]
    %v993 = vld [vmem:[#allocation2 + $0x28] sm:$0x8]
    %v994 = vld [vmem:[#allocation2 + $0x2c] sm:$0x8]
    %v995 = vld [vmem:[#allocation2 + $0x30] sm:$0x8]
    %v996 = vld [vmem:[#allocation2 + $0x34] sm:$0x8]
    %v997 = vld [vmem:[#allocation2 + $0x38] sm:$0x8]
    %v998 = vld [vmem:[#allocation2 + $0x3c] sm:$0x8]
    %v1015 = vunpack.c.l.b16 %v983
    %v1016 = vunpack.c.l.b16 %v984
    %v1017 = vunpack.c.l.b16 %v985
    %v1018 = vunpack.c.l.b16 %v986
    %v1019 = vunpack.c.l.b16 %v987
    %v1020 = vunpack.c.l.b16 %v988
    %v1021 = vunpack.c.l.b16 %v989
    %v1022 = vunpack.c.l.b16 %v990
    %v1023 = vunpack.c.l.b16 %v991
    %v1024 = vunpack.c.l.b16 %v992
    %v1025 = vunpack.c.l.b16 %v993
    %v1026 = vunpack.c.l.b16 %v994
    %v1027 = vunpack.c.l.b16 %v995
    %v1028 = vunpack.c.l.b16 %v996
    %v1029 = vunpack.c.l.b16 %v997
    %v1030 = vunpack.c.l.b16 %v998
    %v1031 = vrot.slane %v1015, 6
    %v1032 = vrot.slane %v1016, 5
    %v1033 = vsel %vm514, %v1032, %v1031
    %v1034 = vrot.slane %v1017, 4
    %v1035 = vsel %vm517, %v1034, %v1033
    %v1036 = vrot.slane %v1018, 3
    %v1037 = vsel %vm520, %v1036, %v1035
    %v1038 = vrot.slane %v1019, 2
    %v1039 = vsel %vm523, %v1038, %v1037
    %v1040 = vrot.slane %v1020, 1
    %v1041 = vsel %vm526, %v1040, %v1039
    %v1042 = vsel %vm529, %v1021, %v1041
    %v1043 = vrot.slane %v1022, 7
    %v1044 = vsel %vm532, %v1043, %v1042
    %v1045 = vrot.slane %v1023, 6
    %v1046 = vrot.slane %v1024, 5
    %v1047 = vsel %vm514, %v1046, %v1045
    %v1048 = vrot.slane %v1025, 4
    %v1049 = vsel %vm517, %v1048, %v1047
    %v1050 = vrot.slane %v1026, 3
    %v1051 = vsel %vm520, %v1050, %v1049
    %v1052 = vrot.slane %v1027, 2
    %v1053 = vsel %vm523, %v1052, %v1051
    %v1054 = vrot.slane %v1028, 1
    %v1055 = vsel %vm526, %v1054, %v1053
    %v1056 = vsel %vm529, %v1029, %v1055
    %v1057 = vrot.slane %v1030, 7
    %v1058 = vsel %vm532, %v1057, %v1056
    %v1059 = vpack.c.b16 %v1044, %v1044
    %v1060 = vpack.c.b16 %v1058, %v1058
    %1061 = vrot.lane.b32.xlu0 %v1059, 64
    %v1062 = vpop.permute.xlu0 %1061
    %1063 = vrot.lane.b32.xlu0 %v1060, 64
    %v1064 = vpop.permute.xlu0 %1063
    %1067 = vst.msk [vmem:[#allocation3 + $0x4] sm:$0xf] %vm725, %v1062
    %1068 = vst.msk [vmem:[#allocation3 + $0xc] sm:$0xf] %vm725, %v1064
    %v1069 = vld [vmem:[#allocation2] sm:$0x8]
    %v1070 = vld [vmem:[#allocation2 + $0x4] sm:$0x8]
    %v1071 = vld [vmem:[#allocation2 + $0x8] sm:$0x8]
    %v1072 = vld [vmem:[#allocation2 + $0xc] sm:$0x8]
    %v1073 = vld [vmem:[#allocation2 + $0x10] sm:$0x8]
    %v1074 = vld [vmem:[#allocation2 + $0x14] sm:$0x8]
    %v1075 = vld [vmem:[#allocation2 + $0x18] sm:$0x8]
    %v1076 = vld [vmem:[#allocation2 + $0x1c] sm:$0x8]
    %v1077 = vld [vmem:[#allocation2 + $0x20] sm:$0x8]
    %v1078 = vld [vmem:[#allocation2 + $0x24] sm:$0x8]
    %v1079 = vld [vmem:[#allocation2 + $0x28] sm:$0x8]
    %v1080 = vld [vmem:[#allocation2 + $0x2c] sm:$0x8]
    %v1081 = vld [vmem:[#allocation2 + $0x30] sm:$0x8]
    %v1082 = vld [vmem:[#allocation2 + $0x34] sm:$0x8]
    %v1083 = vld [vmem:[#allocation2 + $0x38] sm:$0x8]
    %v1084 = vld [vmem:[#allocation2 + $0x3c] sm:$0x8]
    %v1101 = vunpack.c.l.b16 %v1069
    %v1102 = vunpack.c.l.b16 %v1070
    %v1103 = vunpack.c.l.b16 %v1071
    %v1104 = vunpack.c.l.b16 %v1072
    %v1105 = vunpack.c.l.b16 %v1073
    %v1106 = vunpack.c.l.b16 %v1074
    %v1107 = vunpack.c.l.b16 %v1075
    %v1108 = vunpack.c.l.b16 %v1076
    %v1109 = vunpack.c.l.b16 %v1077
    %v1110 = vunpack.c.l.b16 %v1078
    %v1111 = vunpack.c.l.b16 %v1079
    %v1112 = vunpack.c.l.b16 %v1080
    %v1113 = vunpack.c.l.b16 %v1081
    %v1114 = vunpack.c.l.b16 %v1082
    %v1115 = vunpack.c.l.b16 %v1083
    %v1116 = vunpack.c.l.b16 %v1084
    %v1117 = vrot.slane %v1101, 7
    %v1118 = vrot.slane %v1102, 6
    %v1119 = vsel %vm514, %v1118, %v1117
    %v1120 = vrot.slane %v1103, 5
    %v1121 = vsel %vm517, %v1120, %v1119
    %v1122 = vrot.slane %v1104, 4
    %v1123 = vsel %vm520, %v1122, %v1121
    %v1124 = vrot.slane %v1105, 3
    %v1125 = vsel %vm523, %v1124, %v1123
    %v1126 = vrot.slane %v1106, 2
    %v1127 = vsel %vm526, %v1126, %v1125
    %v1128 = vrot.slane %v1107, 1
    %v1129 = vsel %vm529, %v1128, %v1127
    %v1130 = vsel %vm532, %v1108, %v1129
    %v1131 = vrot.slane %v1109, 7
    %v1132 = vrot.slane %v1110, 6
    %v1133 = vsel %vm514, %v1132, %v1131
    %v1134 = vrot.slane %v1111, 5
    %v1135 = vsel %vm517, %v1134, %v1133
    %v1136 = vrot.slane %v1112, 4
    %v1137 = vsel %vm520, %v1136, %v1135
    %v1138 = vrot.slane %v1113, 3
    %v1139 = vsel %vm523, %v1138, %v1137
    %v1140 = vrot.slane %v1114, 2
    %v1141 = vsel %vm526, %v1140, %v1139
    %v1142 = vrot.slane %v1115, 1
    %v1143 = vsel %vm529, %v1142, %v1141
    %v1144 = vsel %vm532, %v1116, %v1143
    %v1145 = vpack.c.b16 %v1130, %v1130
    %v1146 = vpack.c.b16 %v1144, %v1144
    %1147 = vrot.lane.b32.xlu0 %v1145, 96
    %v1148 = vpop.permute.xlu0 %1147
    %1149 = vrot.lane.b32.xlu0 %v1146, 96
    %v1150 = vpop.permute.xlu0 %1149
    %1153 = vst.msk [vmem:[#allocation3 + $0x4] sm:$0xf] %vm812, %v1148
    %1154 = vst.msk [vmem:[#allocation3 + $0xc] sm:$0xf] %vm812, %v1150
    %v1155 = vld [vmem:[#allocation3] sm:$0x1]
    %v1156 = vld [vmem:[#allocation3 + $0x8] sm:$0x1]
    %v1159 = vunpack.c.l.b16 %v1155
    %v1160 = vunpack.c.l.b16 %v1156
    %v1161 = vrot.slane %v1160, 7
    %v1162 = vsel %vm514, %v1161, %v1159
    %v1163 = vpack.c.b16 %v1162, %v1162
    %1165 = vst [vmem:[#allocation4] sm:$0x1] %v1163
    %v1166 = vld [vmem:[#allocation3] sm:$0x1]
    %v1167 = vld [vmem:[#allocation3 + $0x8] sm:$0x1]
    %v1170 = vunpack.c.l.b16 %v1166
    %v1171 = vunpack.c.l.b16 %v1167
    %v1172 = vrot.slane %v1170, 1
    %v1173 = vsel %vm514, %v1171, %v1172
    %v1174 = vpack.c.b16 %v1173, %v1173
    %1176 = vst [vmem:[#allocation4 + $0x4] sm:$0x1] %v1174
    %v1177 = vld [vmem:[#allocation3] sm:$0x2]
    %v1178 = vld [vmem:[#allocation3 + $0x8] sm:$0x2]
    %v1181 = vunpack.c.l.b16 %v1177
    %v1182 = vunpack.c.l.b16 %v1178
    %v1183 = vrot.slane %v1181, 2
    %v1184 = vrot.slane %v1182, 1
    %v1185 = vsel %vm514, %v1184, %v1183
    %v1186 = vpack.c.b16 %v1185, %v1185
    %1188 = vst [vmem:[#allocation4 + $0x8] sm:$0x1] %v1186
    %v1189 = vld [vmem:[#allocation3] sm:$0x2]
    %v1190 = vld [vmem:[#allocation3 + $0x8] sm:$0x2]
    %v1193 = vunpack.c.l.b16 %v1189
    %v1194 = vunpack.c.l.b16 %v1190
    %v1195 = vrot.slane %v1193, 3
    %v1196 = vrot.slane %v1194, 2
    %v1197 = vsel %vm514, %v1196, %v1195
    %v1198 = vpack.c.b16 %v1197, %v1197
    %1200 = vst [vmem:[#allocation4 + $0xc] sm:$0x1] %v1198
    %v1201 = vld [vmem:[#allocation3] sm:$0x11]
    %v1202 = vld [vmem:[#allocation3 + $0x8] sm:$0x11]
    %v1205 = vunpack.c.l.b16 %v1201
    %v1206 = vunpack.c.h.b16 %v1201
    %v1207 = vunpack.c.l.b16 %v1202
    %v1208 = vunpack.c.h.b16 %v1202
    %v1209 = vrot.slane %v1205, 6
    %v1210 = vrot.slane %v1207, 5
    %v1211 = vsel %vm520, %v1210, %v1209
    %v1212 = vrot.slane %v1206, 6
    %v1213 = vrot.slane %v1208, 5
    %v1214 = vsel %vm520, %v1213, %v1212
    %v1215 = vpack.c.b16 %v1214, %v1211
    %1216 = vrot.lane.b32.xlu0 %v1215, 64
    %v1217 = vpop.permute.xlu0 %1216
    %v1218 = vrot.slane %v1217, 4
    %vm1219 = vcmask 523264
    %v1220 = vsel %vm1219, %v1217, %v1218
    %1222 = vst [vmem:[#allocation4] sm:$0x2] %v1220
    %v1223 = vld [vmem:[#allocation3] sm:$0x11]
    %v1224 = vld [vmem:[#allocation3 + $0x8] sm:$0x11]
    %v1227 = vunpack.c.l.b16 %v1223
    %v1228 = vunpack.c.h.b16 %v1223
    %v1229 = vunpack.c.l.b16 %v1224
    %v1230 = vunpack.c.h.b16 %v1224
    %v1231 = vrot.slane %v1227, 7
    %v1232 = vrot.slane %v1229, 6
    %v1233 = vsel %vm520, %v1232, %v1231
    %v1234 = vrot.slane %v1228, 7
    %v1235 = vrot.slane %v1230, 6
    %v1236 = vsel %vm520, %v1235, %v1234
    %v1237 = vpack.c.b16 %v1236, %v1233
    %1238 = vrot.lane.b32.xlu0 %v1237, 64
    %v1239 = vpop.permute.xlu0 %1238
    %v1240 = vrot.slane %v1239, 4
    %v1241 = vsel %vm1219, %v1239, %v1240
    %1243 = vst [vmem:[#allocation4 + $0x4] sm:$0x2] %v1241
    %v1244 = vld [vmem:[#allocation3] sm:$0x22]
    %v1245 = vld [vmem:[#allocation3 + $0x8] sm:$0x22]
    %v1248 = vunpack.c.l.b16 %v1244
    %v1249 = vunpack.c.h.b16 %v1244
    %v1250 = vunpack.c.l.b16 %v1245
    %v1251 = vunpack.c.h.b16 %v1245
    %v1252 = vrot.slane %v1250, 7
    %v1253 = vsel %vm520, %v1252, %v1248
    %v1254 = vrot.slane %v1251, 7
    %v1255 = vsel %vm520, %v1254, %v1249
    %v1256 = vpack.c.b16 %v1255, %v1253
    %1257 = vrot.lane.b32.xlu0 %v1256, 64
    %v1258 = vpop.permute.xlu0 %1257
    %v1259 = vrot.slane %v1258, 4
    %v1260 = vsel %vm1219, %v1258, %v1259
    %1262 = vst [vmem:[#allocation4 + $0x8] sm:$0x2] %v1260
    %v1263 = vld [vmem:[#allocation3] sm:$0x22]
    %v1264 = vld [vmem:[#allocation3 + $0x8] sm:$0x22]
    %v1267 = vunpack.c.l.b16 %v1263
    %v1268 = vunpack.c.h.b16 %v1263
    %v1269 = vunpack.c.l.b16 %v1264
    %v1270 = vunpack.c.h.b16 %v1264
    %v1271 = vrot.slane %v1267, 1
    %v1272 = vsel %vm520, %v1269, %v1271
    %v1273 = vrot.slane %v1268, 1
    %v1274 = vsel %vm520, %v1270, %v1273
    %v1275 = vpack.c.b16 %v1274, %v1272
    %1276 = vrot.lane.b32.xlu0 %v1275, 64
    %v1277 = vpop.permute.xlu0 %1276
    %v1278 = vrot.slane %v1277, 4
    %v1279 = vsel %vm1219, %v1277, %v1278
    %1281 = vst [vmem:[#allocation4 + $0xc] sm:$0x2] %v1279
    %v1282 = vld [vmem:[#allocation3 + $0x4] sm:$0x1]
    %v1283 = vld [vmem:[#allocation3 + $0xc] sm:$0x1]
    %v1286 = vunpack.c.l.b16 %v1282
    %v1287 = vunpack.c.l.b16 %v1283
    %v1288 = vrot.slane %v1286, 4
    %v1289 = vrot.slane %v1287, 3
    %v1290 = vsel %vm526, %v1289, %v1288
    %v1291 = vpack.c.b16 %v1290, %v1290
    %1293 = vst [vmem:[#allocation4] sm:$0x4] %v1291
    %v1294 = vld [vmem:[#allocation3 + $0x4] sm:$0x1]
    %v1295 = vld [vmem:[#allocation3 + $0xc] sm:$0x1]
    %v1298 = vunpack.c.l.b16 %v1294
    %v1299 = vunpack.c.l.b16 %v1295
    %v1300 = vrot.slane %v1298, 5
    %v1301 = vrot.slane %v1299, 4
    %v1302 = vsel %vm526, %v1301, %v1300
    %v1303 = vpack.c.b16 %v1302, %v1302
    %1305 = vst [vmem:[#allocation4 + $0x4] sm:$0x4] %v1303
    %v1306 = vld [vmem:[#allocation3 + $0x4] sm:$0x2]
    %v1307 = vld [vmem:[#allocation3 + $0xc] sm:$0x2]
    %v1310 = vunpack.c.l.b16 %v1306
    %v1311 = vunpack.c.l.b16 %v1307
    %v1312 = vrot.slane %v1310, 6
    %v1313 = vrot.slane %v1311, 5
    %v1314 = vsel %vm526, %v1313, %v1312
    %v1315 = vpack.c.b16 %v1314, %v1314
    %1317 = vst [vmem:[#allocation4 + $0x8] sm:$0x4] %v1315
    %v1318 = vld [vmem:[#allocation3 + $0x4] sm:$0x2]
    %v1319 = vld [vmem:[#allocation3 + $0xc] sm:$0x2]
    %v1322 = vunpack.c.l.b16 %v1318
    %v1323 = vunpack.c.l.b16 %v1319
    %v1324 = vrot.slane %v1322, 7
    %v1325 = vrot.slane %v1323, 6
    %v1326 = vsel %vm526, %v1325, %v1324
    %v1327 = vpack.c.b16 %v1326, %v1326
    %1329 = vst [vmem:[#allocation4 + $0xc] sm:$0x4] %v1327
    %v1330 = vld [vmem:[#allocation3] sm:$0x2]
    %v1331 = vld [vmem:[#allocation3 + $0x8] sm:$0x2]
    %v1334 = vunpack.c.l.b16 %v1330
    %v1335 = vunpack.c.l.b16 %v1331
    %v1336 = vrot.slane %v1334, 4
    %v1337 = vrot.slane %v1335, 3
    %v1338 = vsel %vm532, %v1337, %v1336
    %v1339 = vpack.c.b16 %v1338, %v1338
    %1341 = vst [vmem:[#allocation4] sm:$0x8] %v1339
    %v1342 = vld [vmem:[#allocation3] sm:$0x2]
    %v1343 = vld [vmem:[#allocation3 + $0x8] sm:$0x2]
    %v1346 = vunpack.c.l.b16 %v1342
    %v1347 = vunpack.c.l.b16 %v1343
    %v1348 = vrot.slane %v1346, 5
    %v1349 = vrot.slane %v1347, 4
    %v1350 = vsel %vm532, %v1349, %v1348
    %v1351 = vpack.c.b16 %v1350, %v1350
    %1353 = vst [vmem:[#allocation4 + $0x4] sm:$0x8] %v1351
    %v1354 = vld [vmem:[#allocation3] sm:$0x4]
    %v1355 = vld [vmem:[#allocation3 + $0x8] sm:$0x4]
    %v1358 = vunpack.c.l.b16 %v1354
    %v1359 = vunpack.c.l.b16 %v1355
    %v1360 = vrot.slane %v1358, 6
    %v1361 = vrot.slane %v1359, 5
    %v1362 = vsel %vm532, %v1361, %v1360
    %v1363 = vpack.c.b16 %v1362, %v1362
    %1365 = vst [vmem:[#allocation4 + $0x8] sm:$0x8] %v1363
    %v1366 = vld [vmem:[#allocation3] sm:$0x4]
    %v1367 = vld [vmem:[#allocation3 + $0x8] sm:$0x4]
    %v1370 = vunpack.c.l.b16 %v1366
    %v1371 = vunpack.c.l.b16 %v1367
    %v1372 = vrot.slane %v1370, 7
    %v1373 = vrot.slane %v1371, 6
    %v1374 = vsel %vm532, %v1373, %v1372
    %v1375 = vpack.c.b16 %v1374, %v1374
    %1377 = vst [vmem:[#allocation4 + $0xc] sm:$0x8] %v1375
    %v1378 = vld [vmem:[#allocation3] sm:$0x22]
    %v1379 = vld [vmem:[#allocation3 + $0x8] sm:$0x22]
    %v1382 = vunpack.c.l.b16 %v1378
    %v1383 = vunpack.c.h.b16 %v1378
    %v1384 = vunpack.c.l.b16 %v1379
    %v1385 = vunpack.c.h.b16 %v1379
    %v1386 = vrot.slane %v1382, 2
    %v1387 = vrot.slane %v1384, 1
    %v1388 = vsel %vm514, %v1387, %v1386
    %v1389 = vrot.slane %v1383, 2
    %v1390 = vrot.slane %v1385, 1
    %v1391 = vsel %vm514, %v1390, %v1389
    %v1392 = vpack.c.b16 %v1391, %v1388
    %1393 = vrot.lane.b32.xlu0 %v1392, 64
    %v1394 = vpop.permute.xlu0 %1393
    %v1395 = vrot.slane %v1394, 4
    %v1396 = vsel %vm1219, %v1394, %v1395
    %1398 = vst [vmem:[#allocation4 + $0x10] sm:$0x1] %v1396
    %v1399 = vld [vmem:[#allocation3] sm:$0x22]
    %v1400 = vld [vmem:[#allocation3 + $0x8] sm:$0x22]
    %v1403 = vunpack.c.l.b16 %v1399
    %v1404 = vunpack.c.h.b16 %v1399
    %v1405 = vunpack.c.l.b16 %v1400
    %v1406 = vunpack.c.h.b16 %v1400
    %v1407 = vrot.slane %v1403, 3
    %v1408 = vrot.slane %v1405, 2
    %v1409 = vsel %vm514, %v1408, %v1407
    %v1410 = vrot.slane %v1404, 3
    %v1411 = vrot.slane %v1406, 2
    %v1412 = vsel %vm514, %v1411, %v1410
    %v1413 = vpack.c.b16 %v1412, %v1409
    %1414 = vrot.lane.b32.xlu0 %v1413, 64
    %v1415 = vpop.permute.xlu0 %1414
    %v1416 = vrot.slane %v1415, 4
    %v1417 = vsel %vm1219, %v1415, %v1416
    %1419 = vst [vmem:[#allocation4 + $0x14] sm:$0x1] %v1417
    %v1420 = vld [vmem:[#allocation3] sm:$0x44]
    %v1421 = vld [vmem:[#allocation3 + $0x8] sm:$0x44]
    %v1424 = vunpack.c.l.b16 %v1420
    %v1425 = vunpack.c.h.b16 %v1420
    %v1426 = vunpack.c.l.b16 %v1421
    %v1427 = vunpack.c.h.b16 %v1421
    %v1428 = vrot.slane %v1424, 4
    %v1429 = vrot.slane %v1426, 3
    %v1430 = vsel %vm514, %v1429, %v1428
    %v1431 = vrot.slane %v1425, 4
    %v1432 = vrot.slane %v1427, 3
    %v1433 = vsel %vm514, %v1432, %v1431
    %v1434 = vpack.c.b16 %v1433, %v1430
    %1435 = vrot.lane.b32.xlu0 %v1434, 64
    %v1436 = vpop.permute.xlu0 %1435
    %v1437 = vrot.slane %v1436, 4
    %v1438 = vsel %vm1219, %v1436, %v1437
    %1440 = vst [vmem:[#allocation4 + $0x18] sm:$0x1] %v1438
    %v1441 = vld [vmem:[#allocation3] sm:$0x44]
    %v1442 = vld [vmem:[#allocation3 + $0x8] sm:$0x44]
    %v1445 = vunpack.c.l.b16 %v1441
    %v1446 = vunpack.c.h.b16 %v1441
    %v1447 = vunpack.c.l.b16 %v1442
    %v1448 = vunpack.c.h.b16 %v1442
    %v1449 = vrot.slane %v1445, 5
    %v1450 = vrot.slane %v1447, 4
    %v1451 = vsel %vm514, %v1450, %v1449
    %v1452 = vrot.slane %v1446, 5
    %v1453 = vrot.slane %v1448, 4
    %v1454 = vsel %vm514, %v1453, %v1452
    %v1455 = vpack.c.b16 %v1454, %v1451
    %1456 = vrot.lane.b32.xlu0 %v1455, 64
    %v1457 = vpop.permute.xlu0 %1456
    %v1458 = vrot.slane %v1457, 4
    %v1459 = vsel %vm1219, %v1457, %v1458
    %1461 = vst [vmem:[#allocation4 + $0x1c] sm:$0x1] %v1459
    %v1462 = vld [vmem:[#allocation3 + $0x4] sm:$0x2]
    %v1463 = vld [vmem:[#allocation3 + $0xc] sm:$0x2]
    %v1466 = vunpack.c.l.b16 %v1462
    %v1467 = vunpack.c.l.b16 %v1463
    %v1468 = vrot.slane %v1467, 7
    %v1469 = vsel %vm520, %v1468, %v1466
    %v1470 = vpack.c.b16 %v1469, %v1469
    %1472 = vst [vmem:[#allocation4 + $0x10] sm:$0x2] %v1470
    %v1473 = vld [vmem:[#allocation3 + $0x4] sm:$0x2]
    %v1474 = vld [vmem:[#allocation3 + $0xc] sm:$0x2]
    %v1477 = vunpack.c.l.b16 %v1473
    %v1478 = vunpack.c.l.b16 %v1474
    %v1479 = vrot.slane %v1477, 1
    %v1480 = vsel %vm520, %v1478, %v1479
    %v1481 = vpack.c.b16 %v1480, %v1480
    %1483 = vst [vmem:[#allocation4 + $0x14] sm:$0x2] %v1481
    %v1484 = vld [vmem:[#allocation3 + $0x4] sm:$0x4]
    %v1485 = vld [vmem:[#allocation3 + $0xc] sm:$0x4]
    %v1488 = vunpack.c.l.b16 %v1484
    %v1489 = vunpack.c.l.b16 %v1485
    %v1490 = vrot.slane %v1488, 2
    %v1491 = vrot.slane %v1489, 1
    %v1492 = vsel %vm520, %v1491, %v1490
    %v1493 = vpack.c.b16 %v1492, %v1492
    %1495 = vst [vmem:[#allocation4 + $0x18] sm:$0x2] %v1493
    %v1496 = vld [vmem:[#allocation3 + $0x4] sm:$0x4]
    %v1497 = vld [vmem:[#allocation3 + $0xc] sm:$0x4]
    %v1500 = vunpack.c.l.b16 %v1496
    %v1501 = vunpack.c.l.b16 %v1497
    %v1502 = vrot.slane %v1500, 3
    %v1503 = vrot.slane %v1501, 2
    %v1504 = vsel %vm520, %v1503, %v1502
    %v1505 = vpack.c.b16 %v1504, %v1504
    %1507 = vst [vmem:[#allocation4 + $0x1c] sm:$0x2] %v1505
    %v1508 = vld [vmem:[#allocation3] sm:$0x4]
    %v1509 = vld [vmem:[#allocation3 + $0x8] sm:$0x4]
    %v1512 = vunpack.c.l.b16 %v1508
    %v1513 = vunpack.c.l.b16 %v1509
    %v1514 = vrot.slane %v1513, 7
    %v1515 = vsel %vm526, %v1514, %v1512
    %v1516 = vpack.c.b16 %v1515, %v1515
    %1518 = vst [vmem:[#allocation4 + $0x10] sm:$0x4] %v1516
    %v1519 = vld [vmem:[#allocation3] sm:$0x4]
    %v1520 = vld [vmem:[#allocation3 + $0x8] sm:$0x4]
    %v1523 = vunpack.c.l.b16 %v1519
    %v1524 = vunpack.c.l.b16 %v1520
    %v1525 = vrot.slane %v1523, 1
    %v1526 = vsel %vm526, %v1524, %v1525
    %v1527 = vpack.c.b16 %v1526, %v1526
    %1529 = vst [vmem:[#allocation4 + $0x14] sm:$0x4] %v1527
    %v1530 = vld [vmem:[#allocation3] sm:$0x8]
    %v1531 = vld [vmem:[#allocation3 + $0x8] sm:$0x8]
    %v1534 = vunpack.c.l.b16 %v1530
    %v1535 = vunpack.c.l.b16 %v1531
    %v1536 = vrot.slane %v1534, 2
    %v1537 = vrot.slane %v1535, 1
    %v1538 = vsel %vm526, %v1537, %v1536
    %v1539 = vpack.c.b16 %v1538, %v1538
    %1541 = vst [vmem:[#allocation4 + $0x18] sm:$0x4] %v1539
    %v1542 = vld [vmem:[#allocation3] sm:$0x8]
    %v1543 = vld [vmem:[#allocation3 + $0x8] sm:$0x8]
    %v1546 = vunpack.c.l.b16 %v1542
    %v1547 = vunpack.c.l.b16 %v1543
    %v1548 = vrot.slane %v1546, 3
    %v1549 = vrot.slane %v1547, 2
    %v1550 = vsel %vm526, %v1549, %v1548
    %v1551 = vpack.c.b16 %v1550, %v1550
    %1553 = vst [vmem:[#allocation4 + $0x1c] sm:$0x4] %v1551
    %v1554 = vld [vmem:[#allocation3] sm:$0x44]
    %v1555 = vld [vmem:[#allocation3 + $0x8] sm:$0x44]
    %v1558 = vunpack.c.l.b16 %v1554
    %v1559 = vunpack.c.h.b16 %v1554
    %v1560 = vunpack.c.l.b16 %v1555
    %v1561 = vunpack.c.h.b16 %v1555
    %v1562 = vrot.slane %v1558, 6
    %v1563 = vrot.slane %v1560, 5
    %v1564 = vsel %vm532, %v1563, %v1562
    %v1565 = vrot.slane %v1559, 6
    %v1566 = vrot.slane %v1561, 5
    %v1567 = vsel %vm532, %v1566, %v1565
    %v1568 = vpack.c.b16 %v1567, %v1564
    %1569 = vrot.lane.b32.xlu0 %v1568, 64
    %v1570 = vpop.permute.xlu0 %1569
    %v1571 = vrot.slane %v1570, 4
    %v1572 = vsel %vm1219, %v1570, %v1571
    %1574 = vst [vmem:[#allocation4 + $0x10] sm:$0x8] %v1572
    %v1575 = vld [vmem:[#allocation3] sm:$0x44]
    %v1576 = vld [vmem:[#allocation3 + $0x8] sm:$0x44]
    %v1579 = vunpack.c.l.b16 %v1575
    %v1580 = vunpack.c.h.b16 %v1575
    %v1581 = vunpack.c.l.b16 %v1576
    %v1582 = vunpack.c.h.b16 %v1576
    %v1583 = vrot.slane %v1579, 7
    %v1584 = vrot.slane %v1581, 6
    %v1585 = vsel %vm532, %v1584, %v1583
    %v1586 = vrot.slane %v1580, 7
    %v1587 = vrot.slane %v1582, 6
    %v1588 = vsel %vm532, %v1587, %v1586
    %v1589 = vpack.c.b16 %v1588, %v1585
    %1590 = vrot.lane.b32.xlu0 %v1589, 64
    %v1591 = vpop.permute.xlu0 %1590
    %v1592 = vrot.slane %v1591, 4
    %v1593 = vsel %vm1219, %v1591, %v1592
    %1595 = vst [vmem:[#allocation4 + $0x14] sm:$0x8] %v1593
    %v1596 = vld [vmem:[#allocation3] sm:$0x88]
    %v1597 = vld [vmem:[#allocation3 + $0x8] sm:$0x88]
    %v1600 = vunpack.c.l.b16 %v1596
    %v1601 = vunpack.c.h.b16 %v1596
    %v1602 = vunpack.c.l.b16 %v1597
    %v1603 = vunpack.c.h.b16 %v1597
    %v1604 = vrot.slane %v1602, 7
    %v1605 = vsel %vm532, %v1604, %v1600
    %v1606 = vrot.slane %v1603, 7
    %v1607 = vsel %vm532, %v1606, %v1601
    %v1608 = vpack.c.b16 %v1607, %v1605
    %1609 = vrot.lane.b32.xlu0 %v1608, 64
    %v1610 = vpop.permute.xlu0 %1609
    %v1611 = vrot.slane %v1610, 4
    %v1612 = vsel %vm1219, %v1610, %v1611
    %1614 = vst [vmem:[#allocation4 + $0x18] sm:$0x8] %v1612
    %v1615 = vld [vmem:[#allocation3] sm:$0x88]
    %v1616 = vld [vmem:[#allocation3 + $0x8] sm:$0x88]
    %v1619 = vunpack.c.l.b16 %v1615
    %v1620 = vunpack.c.h.b16 %v1615
    %v1621 = vunpack.c.l.b16 %v1616
    %v1622 = vunpack.c.h.b16 %v1616
    %v1623 = vrot.slane %v1619, 1
    %v1624 = vsel %vm532, %v1621, %v1623
    %v1625 = vrot.slane %v1620, 1
    %v1626 = vsel %vm532, %v1622, %v1625
    %v1627 = vpack.c.b16 %v1626, %v1624
    %1628 = vrot.lane.b32.xlu0 %v1627, 64
    %v1629 = vpop.permute.xlu0 %1628
    %v1630 = vrot.slane %v1629, 4
    %v1631 = vsel %vm1219, %v1629, %v1630
    %1633 = vst [vmem:[#allocation4 + $0x1c] sm:$0x8] %v1631
    %v1634 = vld [vmem:[#allocation3 + $0x4] sm:$0x4]
    %v1635 = vld [vmem:[#allocation3 + $0xc] sm:$0x4]
    %v1638 = vunpack.c.l.b16 %v1634
    %v1639 = vunpack.c.l.b16 %v1635
    %v1640 = vrot.slane %v1638, 4
    %v1641 = vrot.slane %v1639, 3
    %v1642 = vsel %vm514, %v1641, %v1640
    %v1643 = vpack.c.b16 %v1642, %v1642
    %1645 = vst [vmem:[#allocation4 + $0x20] sm:$0x1] %v1643
    %v1646 = vld [vmem:[#allocation3 + $0x4] sm:$0x4]
    %v1647 = vld [vmem:[#allocation3 + $0xc] sm:$0x4]
    %v1650 = vunpack.c.l.b16 %v1646
    %v1651 = vunpack.c.l.b16 %v1647
    %v1652 = vrot.slane %v1650, 5
    %v1653 = vrot.slane %v1651, 4
    %v1654 = vsel %vm514, %v1653, %v1652
    %v1655 = vpack.c.b16 %v1654, %v1654
    %1657 = vst [vmem:[#allocation4 + $0x24] sm:$0x1] %v1655
    %v1658 = vld [vmem:[#allocation3 + $0x4] sm:$0x8]
    %v1659 = vld [vmem:[#allocation3 + $0xc] sm:$0x8]
    %v1662 = vunpack.c.l.b16 %v1658
    %v1663 = vunpack.c.l.b16 %v1659
    %v1664 = vrot.slane %v1662, 6
    %v1665 = vrot.slane %v1663, 5
    %v1666 = vsel %vm514, %v1665, %v1664
    %v1667 = vpack.c.b16 %v1666, %v1666
    %1669 = vst [vmem:[#allocation4 + $0x28] sm:$0x1] %v1667
    %v1670 = vld [vmem:[#allocation3 + $0x4] sm:$0x8]
    %v1671 = vld [vmem:[#allocation3 + $0xc] sm:$0x8]
    %v1674 = vunpack.c.l.b16 %v1670
    %v1675 = vunpack.c.l.b16 %v1671
    %v1676 = vrot.slane %v1674, 7
    %v1677 = vrot.slane %v1675, 6
    %v1678 = vsel %vm514, %v1677, %v1676
    %v1679 = vpack.c.b16 %v1678, %v1678
    %1681 = vst [vmem:[#allocation4 + $0x2c] sm:$0x1] %v1679
    %v1682 = vld [vmem:[#allocation4] sm:$0xff]
    %v1683 = vld [vmem:[#allocation4 + $0x8] sm:$0xff]
    %v1684 = vld [vmem:[#allocation4 + $0x10] sm:$0xff]
    %v1685 = vld [vmem:[#allocation4 + $0x18] sm:$0xff]
    %v1686 = vld [vmem:[#allocation4 + $0x20] sm:$0x11]
    %v1687 = vld [vmem:[#allocation4 + $0x28] sm:$0x11]
    %v1688 = vld [vmem:[%s3] sm:$0xf]
    %v1689 = vld [vmem:[%s3 + $0x4] sm:$0xf]
    %v1690 = vld [vmem:[%s3 + $0x8] sm:$0xf]
    %v1691 = vld [vmem:[%s3 + $0xc] sm:$0xf]
    %v1692 = vld [vmem:[%s3 + $0x10] sm:$0xf]
    %v1693 = vld [vmem:[%s3 + $0x14] sm:$0xf]
    %v1694 = vld [vmem:[%s3 + $0x18] sm:$0xf]
    %v1695 = vld [vmem:[%s3 + $0x1c] sm:$0xf]
    %v1696 = vld [vmem:[%s3 + $0x20] sm:$0xf]
    %v1697 = vld [vmem:[%s3 + $0x24] sm:$0xf]
    %v1698 = vld [vmem:[%s3 + $0x28] sm:$0xf]
    %v1699 = vld [vmem:[%s3 + $0x2c] sm:$0xf]
    %v1700 = vld [vmem:[%s3 + $0x30] sm:$0xf]
    %v1701 = vld [vmem:[%s3 + $0x34] sm:$0xf]
    %v1702 = vld [vmem:[%s3 + $0x38] sm:$0xf]
    %v1703 = vld [vmem:[%s3 + $0x3c] sm:$0xf]
    %v1704 = vld [vmem:[%s3 + $0x40] sm:$0xf]
    %v1705 = vld [vmem:[%s3 + $0x44] sm:$0xf]
    %v1706 = vld [vmem:[%s3 + $0x48] sm:$0xf]
    %v1707 = vld [vmem:[%s3 + $0x4c] sm:$0xf]
    %v1708 = vld [vmem:[%s3 + $0x50] sm:$0xf]
    %v1709 = vld [vmem:[%s3 + $0x54] sm:$0xf]
    %v1710 = vld [vmem:[%s3 + $0x58] sm:$0xf]
    %v1711 = vld [vmem:[%s3 + $0x5c] sm:$0xf]
    %v1712 = vld [vmem:[%s3 + $0x60] sm:$0xf]
    %v1713 = vld [vmem:[%s3 + $0x64] sm:$0xf]
    %v1714 = vld [vmem:[%s3 + $0x68] sm:$0xf]
    %v1715 = vld [vmem:[%s3 + $0x6c] sm:$0xf]
    %v1716 = vld [vmem:[%s3 + $0x70] sm:$0xf]
    %v1717 = vld [vmem:[%s3 + $0x74] sm:$0xf]
    %v1718 = vld [vmem:[%s3 + $0x78] sm:$0xf]
    %v1719 = vld [vmem:[%s3 + $0x7c] sm:$0xf]
    %v1720 = vld [vmem:[%s3 + $0x80] sm:$0xf]
    %v1721 = vld [vmem:[%s3 + $0x84] sm:$0xf]
    %v1722 = vld [vmem:[%s3 + $0x88] sm:$0xf]
    %v1723 = vld [vmem:[%s3 + $0x8c] sm:$0xf]
    %v1724 = vld [vmem:[%s3 + $0x90] sm:$0xf]
    %v1725 = vld [vmem:[%s3 + $0x94] sm:$0xf]
    %v1726 = vld [vmem:[%s3 + $0x98] sm:$0xf]
    %v1727 = vld [vmem:[%s3 + $0x9c] sm:$0xf]
    %v1728 = vld [vmem:[%s3 + $0xa0] sm:$0xf]
    %v1729 = vld [vmem:[%s3 + $0xa4] sm:$0xf]
    %v1730 = vld [vmem:[%s3 + $0xa8] sm:$0xf]
    %v1731 = vld [vmem:[%s3 + $0xac] sm:$0xf]
    %v1732 = vld [vmem:[%s3 + $0xb0] sm:$0xf]
    %v1733 = vld [vmem:[%s3 + $0xb4] sm:$0xf]
    %v1734 = vld [vmem:[%s3 + $0xb8] sm:$0xf]
    %v1735 = vld [vmem:[%s3 + $0xbc] sm:$0xf]
    %v1736 = vld [vmem:[%s3 + $0xc0] sm:$0xf]
    %v1737 = vld [vmem:[%s3 + $0xc4] sm:$0xf]
    %v1738 = vld [vmem:[%s3 + $0xc8] sm:$0xf]
    %v1739 = vld [vmem:[%s3 + $0xcc] sm:$0xf]
    %v1740 = vld [vmem:[%s3 + $0xd0] sm:$0xf]
    %v1741 = vld [vmem:[%s3 + $0xd4] sm:$0xf]
    %v1742 = vld [vmem:[%s3 + $0xd8] sm:$0xf]
    %v1743 = vld [vmem:[%s3 + $0xdc] sm:$0xf]
    %v1744 = vld [vmem:[%s3 + $0xe0] sm:$0xf]
    %v1745 = vld [vmem:[%s3 + $0xe4] sm:$0xf]
    %v1746 = vld [vmem:[%s3 + $0xe8] sm:$0xf]
    %v1747 = vld [vmem:[%s3 + $0xec] sm:$0xf]
    %v1748 = vld [vmem:[%s3 + $0xf0] sm:$0xf]
    %v1749 = vld [vmem:[%s3 + $0xf4] sm:$0xf]
    %v1750 = vld [vmem:[%s3 + $0xf8] sm:$0xf]
    %v1751 = vld [vmem:[%s3 + $0xfc] sm:$0xf]
    %v1752 = vld [vmem:[%s4] sm:$0x1]
    %v1754 = vlaneseq
    %v1755 = vshrl.u32 %v1754, 7
    %v1756 = vsub.s32 0, %v1755
    %v1757 = vrot.slane %v1752, %v1756
    %v1765 = vunpack.c.l.b16 %v1682
    %v1766 = vunpack.c.h.b16 %v1682
    %v1767 = vunpack.c.l.b16 %v1683
    %v1768 = vunpack.c.h.b16 %v1683
    %v1769 = vunpack.c.l.b16 %v1684
    %v1770 = vunpack.c.h.b16 %v1684
    %v1771 = vunpack.c.l.b16 %v1685
    %v1772 = vunpack.c.h.b16 %v1685
    %v1773 = vunpack.c.l.b16 %v1686
    %v1774 = vunpack.c.h.b16 %v1686
    %v1775 = vunpack.c.l.b16 %v1687
    %v1776 = vunpack.c.h.b16 %v1687
    %v1777 = vpack.c.b16 %v1769, %v1765
    %v1778 = vpack.c.b16 %v1770, %v1766
    %v1779 = vpack.c.b16 %v1771, %v1767
    %v1780 = vpack.c.b16 %v1772, %v1768
    %v1781 = vpack.c.b16 %v1773, %v1773
    %v1782 = vpack.c.b16 %v1774, %v1774
    %v1783 = vpack.c.b16 %v1775, %v1775
    %v1784 = vpack.c.b16 %v1776, %v1776
    %v1857 = vunpack.c.l.b16 %v1688
    %v1858 = vunpack.c.l.b16 %v1689
    %v1859 = vunpack.c.l.b16 %v1690
    %v1860 = vunpack.c.l.b16 %v1691
    %v1861 = vunpack.c.l.b16 %v1692
    %v1862 = vunpack.c.l.b16 %v1693
    %v1863 = vunpack.c.l.b16 %v1694
    %v1864 = vunpack.c.l.b16 %v1695
    %v1865 = vunpack.c.l.b16 %v1696
    %v1866 = vunpack.c.l.b16 %v1697
    %v1867 = vunpack.c.l.b16 %v1698
    %v1868 = vunpack.c.l.b16 %v1699
    %v1869 = vunpack.c.l.b16 %v1700
    %v1870 = vunpack.c.l.b16 %v1701
    %v1871 = vunpack.c.l.b16 %v1702
    %v1872 = vunpack.c.l.b16 %v1703
    %v1873 = vunpack.c.l.b16 %v1704
    %v1874 = vunpack.c.l.b16 %v1705
    %v1875 = vunpack.c.l.b16 %v1706
    %v1876 = vunpack.c.l.b16 %v1707
    %v1877 = vunpack.c.l.b16 %v1708
    %v1878 = vunpack.c.l.b16 %v1709
    %v1879 = vunpack.c.l.b16 %v1710
    %v1880 = vunpack.c.l.b16 %v1711
    %v1881 = vunpack.c.l.b16 %v1712
    %v1882 = vunpack.c.l.b16 %v1713
    %v1883 = vunpack.c.l.b16 %v1714
    %v1884 = vunpack.c.l.b16 %v1715
    %v1885 = vunpack.c.l.b16 %v1716
    %v1886 = vunpack.c.l.b16 %v1717
    %v1887 = vunpack.c.l.b16 %v1718
    %v1888 = vunpack.c.l.b16 %v1719
    %v1889 = vunpack.c.l.b16 %v1720
    %v1890 = vunpack.c.l.b16 %v1721
    %v1891 = vunpack.c.l.b16 %v1722
    %v1892 = vunpack.c.l.b16 %v1723
    %v1893 = vunpack.c.l.b16 %v1724
    %v1894 = vunpack.c.l.b16 %v1725
    %v1895 = vunpack.c.l.b16 %v1726
    %v1896 = vunpack.c.l.b16 %v1727
    %v1897 = vunpack.c.l.b16 %v1728
    %v1898 = vunpack.c.l.b16 %v1729
    %v1899 = vunpack.c.l.b16 %v1730
    %v1900 = vunpack.c.l.b16 %v1731
    %v1901 = vunpack.c.l.b16 %v1732
    %v1902 = vunpack.c.l.b16 %v1733
    %v1903 = vunpack.c.l.b16 %v1734
    %v1904 = vunpack.c.l.b16 %v1735
    %v1905 = vunpack.c.l.b16 %v1736
    %v1906 = vunpack.c.l.b16 %v1737
    %v1907 = vunpack.c.l.b16 %v1738
    %v1908 = vunpack.c.l.b16 %v1739
    %v1909 = vunpack.c.l.b16 %v1740
    %v1910 = vunpack.c.l.b16 %v1741
    %v1911 = vunpack.c.l.b16 %v1742
    %v1912 = vunpack.c.l.b16 %v1743
    %v1913 = vunpack.c.l.b16 %v1744
    %v1914 = vunpack.c.l.b16 %v1745
    %v1915 = vunpack.c.l.b16 %v1746
    %v1916 = vunpack.c.l.b16 %v1747
    %v1917 = vunpack.c.l.b16 %v1748
    %v1918 = vunpack.c.l.b16 %v1749
    %v1919 = vunpack.c.l.b16 %v1750
    %v1920 = vunpack.c.l.b16 %v1751
    %v1921 = vpack.c.b16 %v1858, %v1857
    %v1922 = vpack.c.b16 %v1860, %v1859
    %v1923 = vpack.c.b16 %v1862, %v1861
    %v1924 = vpack.c.b16 %v1864, %v1863
    %v1925 = vpack.c.b16 %v1866, %v1865
    %v1926 = vpack.c.b16 %v1868, %v1867
    %v1927 = vpack.c.b16 %v1870, %v1869
    %v1928 = vpack.c.b16 %v1872, %v1871
    %v1929 = vpack.c.b16 %v1874, %v1873
    %v1930 = vpack.c.b16 %v1876, %v1875
    %v1931 = vpack.c.b16 %v1878, %v1877
    %v1932 = vpack.c.b16 %v1880, %v1879
    %v1933 = vpack.c.b16 %v1882, %v1881
    %v1934 = vpack.c.b16 %v1884, %v1883
    %v1935 = vpack.c.b16 %v1886, %v1885
    %v1936 = vpack.c.b16 %v1888, %v1887
    %v1937 = vpack.c.b16 %v1890, %v1889
    %v1938 = vpack.c.b16 %v1892, %v1891
    %v1939 = vpack.c.b16 %v1894, %v1893
    %v1940 = vpack.c.b16 %v1896, %v1895
    %v1941 = vpack.c.b16 %v1898, %v1897
    %v1942 = vpack.c.b16 %v1900, %v1899
    %v1943 = vpack.c.b16 %v1902, %v1901
    %v1944 = vpack.c.b16 %v1904, %v1903
    %v1945 = vpack.c.b16 %v1906, %v1905
    %v1946 = vpack.c.b16 %v1908, %v1907
    %v1947 = vpack.c.b16 %v1910, %v1909
    %v1948 = vpack.c.b16 %v1912, %v1911
    %v1949 = vpack.c.b16 %v1914, %v1913
    %v1950 = vpack.c.b16 %v1916, %v1915
    %v1951 = vpack.c.b16 %v1918, %v1917
    %v1952 = vpack.c.b16 %v1920, %v1919
    %1985 = vmatprep.subr.bf16.mxu0 0
    %1986 = vmatpush1.bf16.msra.mxu0 %v1921
    %1987 = vmatprep.subr.bf16.mxu0 0
    %1988 = vmatpush1.bf16.msra.mxu0 %v1922
    %1989 = vmatprep.subr.bf16.mxu0 0
    %1990 = vmatpush1.bf16.msra.mxu0 %v1923
    %1991 = vmatprep.subr.bf16.mxu0 0
    %1992 = vmatpush1.bf16.msra.mxu0 %v1924
    %1993 = vmatprep.subr.bf16.mxu0 0
    %1994 = vmatpush1.bf16.msra.mxu0 %v1925
    %1995 = vmatprep.subr.bf16.mxu0 0
    %1996 = vmatpush1.bf16.msra.mxu0 %v1926
    %1997 = vmatprep.subr.bf16.mxu0 0
    %1998 = vmatpush1.bf16.msra.mxu0 %v1927
    %1999 = vmatprep.subr.bf16.mxu0 0
    %2000 = vmatpush1.bf16.msra.mxu0 %v1928
    %2001 = vmatprep.subr.bf16.mxu0 0
    %2002 = vmatpush1.bf16.msra.mxu0 %v1929
    %2003 = vmatprep.subr.bf16.mxu0 0
    %2004 = vmatpush1.bf16.msra.mxu0 %v1930
    %2005 = vmatprep.subr.bf16.mxu0 0
    %2006 = vmatpush1.bf16.msra.mxu0 %v1931
    %2007 = vmatprep.subr.bf16.mxu0 0
    %2008 = vmatpush1.bf16.msra.mxu0 %v1932
    %2009 = vmatprep.subr.bf16.mxu0 0
    %2010 = vmatpush1.bf16.msra.mxu0 %v1933
    %2011 = vmatprep.subr.bf16.mxu0 0
    %2012 = vmatpush1.bf16.msra.mxu0 %v1934
    %2013 = vmatprep.subr.bf16.mxu0 0
    %2014 = vmatpush1.bf16.msra.mxu0 %v1935
    %2015 = vmatprep.subr.bf16.mxu0 0
    %2016 = vmatpush1.bf16.msra.mxu0 %v1936
    %2017 = vmatprep.mubr.bf16.mxu0 %v1778
    %2018 = vmatmul.mubr.bf16.gmra.mrb[0].mxu0 %v1777
    %v2019 = vpop.f32.mrb[0].mxu0
    %v2020 = vadd.f32 %v1757, %v2019
    %v2021 = vpop.f32.mrb[0].mxu0
    %v2022 = vpop.f32.mrb[0].mxu0
    %v2023 = vadd.f32 %v1757, %v2022
    %v2024 = vpop.f32.mrb[0].mxu0
    %2025 = vmatprep.mubr.bf16.mxu0 %v1782
    %2026 = vmatmul.mubr.bf16.gmra.mrb[0].mxu0 %v1781
    %v2027 = vpop.f32.mrb[0].mxu0
    %v2028 = vadd.f32 %v1757, %v2027
    %v2029 = vpop.f32.mrb[0].mxu0
    %v2030 = vpop.f32.mrb[0].mxu0
    %v2031 = vpop.f32.mrb[0].mxu0
    %2032 = vdwg.mxu0
    %2033 = vmatprep.subr.bf16.mxu0 0
    %2034 = vmatpush1.bf16.msra.mxu0 %v1937
    %2035 = vmatprep.subr.bf16.mxu0 0
    %2036 = vmatpush1.bf16.msra.mxu0 %v1938
    %2037 = vmatprep.subr.bf16.mxu0 0
    %2038 = vmatpush1.bf16.msra.mxu0 %v1939
    %2039 = vmatprep.subr.bf16.mxu0 0
    %2040 = vmatpush1.bf16.msra.mxu0 %v1940
    %2041 = vmatprep.subr.bf16.mxu0 0
    %2042 = vmatpush1.bf16.msra.mxu0 %v1941
    %2043 = vmatprep.subr.bf16.mxu0 0
    %2044 = vmatpush1.bf16.msra.mxu0 %v1942
    %2045 = vmatprep.subr.bf16.mxu0 0
    %2046 = vmatpush1.bf16.msra.mxu0 %v1943
    %2047 = vmatprep.subr.bf16.mxu0 0
    %2048 = vmatpush1.bf16.msra.mxu0 %v1944
    %2049 = vmatprep.subr.bf16.mxu0 0
    %2050 = vmatpush1.bf16.msra.mxu0 %v1945
    %2051 = vmatprep.subr.bf16.mxu0 0
    %2052 = vmatpush1.bf16.msra.mxu0 %v1946
    %2053 = vmatprep.subr.bf16.mxu0 0
    %2054 = vmatpush1.bf16.msra.mxu0 %v1947
    %2055 = vmatprep.subr.bf16.mxu0 0
    %2056 = vmatpush1.bf16.msra.mxu0 %v1948
    %2057 = vmatprep.subr.bf16.mxu0 0
    %2058 = vmatpush1.bf16.msra.mxu0 %v1949
    %2059 = vmatprep.subr.bf16.mxu0 0
    %2060 = vmatpush1.bf16.msra.mxu0 %v1950
    %2061 = vmatprep.subr.bf16.mxu0 0
    %2062 = vmatpush1.bf16.msra.mxu0 %v1951
    %2063 = vmatprep.subr.bf16.mxu0 0
    %2064 = vmatpush1.bf16.msra.mxu0 %v1952
    %2065 = vmatprep.mubr.bf16.mxu0 %v1780
    %2066 = vmatmul.mubr.bf16.gmra.mrb[0].mxu0 %v1779
    %v2067 = vpop.f32.mrb[0].mxu0
    %v2068 = vadd.f32 %v2020, %v2067
    %v2069 = vpop.f32.mrb[0].mxu0
    %v2070 = vpop.f32.mrb[0].mxu0
    %v2071 = vadd.f32 %v2023, %v2070
    %v2072 = vpop.f32.mrb[0].mxu0
    %2073 = vmatprep.mubr.bf16.mxu0 %v1784
    %2074 = vmatmul.mubr.bf16.gmra.mrb[0].mxu0 %v1783
    %v2075 = vpop.f32.mrb[0].mxu0
    %v2076 = vadd.f32 %v2028, %v2075
    %v2077 = vpop.f32.mrb[0].mxu0
    %v2078 = vpop.f32.mrb[0].mxu0
    %v2079 = vpop.f32.mrb[0].mxu0
    %2080 = vdwg.mxu0
    %v2081 = vmax.f32 %v2068, 0.0
    %v2082 = vmax.f32 %v2071, 0.0
    %v2083 = vmax.f32 %v2076, 0.0
    %v2084 = vpack.c.bf16 %v2082, %v2081
    %v2085 = vpack.c.bf16 %v2083, %v2083
    %v2088 = vunpack.c.l.b16 %v2084
    %v2089 = vunpack.c.h.b16 %v2084
    %v2090 = vunpack.c.l.b16 %v2085
    %v2091 = vpack.c.b16 %v2088, %v2088
    %v2092 = vpack.c.b16 %v2089, %v2089
    %v2093 = vpack.c.b16 %v2090, %v2090
    %vm2097 = vcmask 519168
    %2098 = vst.msk [vmem:[#allocation5] sm:$0xf] %vm2097, %v2091
    %2099 = vst.msk [vmem:[#allocation5 + $0x4] sm:$0xf] %vm2097, %v2092
    %vm2100 = vcmask 516096
    %2101 = vst.msk [vmem:[#allocation5 + $0x8] sm:$0x1] %vm2100, %v2093
    %v2102 = vld [vmem:[#allocation5] sm:$0x1]
    %2103 = vst.msk [vmem:[#allocation6] sm:$0x1] %vm2100, %v2102
    %v2104 = vld [vmem:[#allocation5] sm:$0x2]
    %v2106 = vrot.slane %v2104, 5
    %v2107 = vrot.slane %v2106, 4
    %2108 = vrot.lane.b32.xlu0 %v2107, 64
    %v2109 = vpop.permute.xlu0 %2108
    %vm2111 = vcmask 1040896
    %2112 = vst.msk [vmem:[#allocation6] sm:$0x1] %vm2111, %v2109
    %v2113 = vld [vmem:[#allocation5] sm:$0x8]
    %v2115 = vrot.slane %v2113, 7
    %v2116 = vrot.slane %v2115, 4
    %2118 = vst.msk [vmem:[#allocation6 + $0x4] sm:$0x1] %vm2100, %v2116
    %v2119 = vld [vmem:[#allocation5 + $0x4] sm:$0x1]
    %2121 = vrot.lane.b32.xlu0 %v2119, 64
    %v2122 = vpop.permute.xlu0 %2121
    %2124 = vst.msk [vmem:[#allocation6 + $0x4] sm:$0x1] %vm2111, %v2122
    %v2125 = vld [vmem:[#allocation5] sm:$0x2]
    %vm2126 = vcmask 517121
    %2127 = vst.msk [vmem:[#allocation6] sm:$0x2] %vm2126, %v2125
    %v2128 = vld [vmem:[#allocation5] sm:$0x4]
    %v2130 = vrot.slane %v2128, 5
    %v2131 = vrot.slane %v2130, 4
    %2132 = vrot.lane.b32.xlu0 %v2131, 64
    %v2133 = vpop.permute.xlu0 %2132
    %vm2135 = vcmask 1041921
    %2136 = vst.msk [vmem:[#allocation6] sm:$0x2] %vm2135, %v2133
    %v2137 = vld [vmem:[#allocation5 + $0x4] sm:$0x1]
    %v2139 = vrot.slane %v2137, 7
    %2141 = vst.msk [vmem:[#allocation6 + $0x4] sm:$0x2] %vm2126, %v2139
    %v2142 = vld [vmem:[#allocation5 + $0x4] sm:$0x2]
    %2144 = vrot.lane.b32.xlu0 %v2142, 64
    %v2145 = vpop.permute.xlu0 %2144
    %2147 = vst.msk [vmem:[#allocation6 + $0x4] sm:$0x2] %vm2135, %v2145
    %v2148 = vld [vmem:[#allocation5] sm:$0x8]
    %v2150 = vrot.slane %v2148, 5
    %v2151 = vrot.slane %v2150, 4
    %vm2153 = vcmask 518146
    %2154 = vst.msk [vmem:[#allocation6] sm:$0x4] %vm2153, %v2151
    %v2155 = vld [vmem:[#allocation5 + $0x4] sm:$0x1]
    %v2157 = vrot.slane %v2155, 6
    %2158 = vrot.lane.b32.xlu0 %v2157, 64
    %v2159 = vpop.permute.xlu0 %2158
    %vm2161 = vcmask 1042946
    %2162 = vst.msk [vmem:[#allocation6] sm:$0x4] %vm2161, %v2159
    %v2163 = vld [vmem:[#allocation5 + $0x4] sm:$0x4]
    %2164 = vst.msk [vmem:[#allocation6 + $0x4] sm:$0x4] %vm2153, %v2163
    %v2165 = vld [vmem:[#allocation5 + $0x4] sm:$0x8]
    %v2167 = vrot.slane %v2165, 5
    %v2168 = vrot.slane %v2167, 4
    %2169 = vrot.lane.b32.xlu0 %v2168, 64
    %v2170 = vpop.permute.xlu0 %2169
    %2172 = vst.msk [vmem:[#allocation6 + $0x4] sm:$0x4] %vm2161, %v2170
    %v2173 = vld [vmem:[#allocation5 + $0x4] sm:$0x1]
    %v2175 = vrot.slane %v2173, 5
    %vm2177 = vcmask 519171
    %2178 = vst.msk [vmem:[#allocation6] sm:$0x8] %vm2177, %v2175
    %v2179 = vld [vmem:[#allocation5 + $0x4] sm:$0x2]
    %v2181 = vrot.slane %v2179, 6
    %2182 = vrot.lane.b32.xlu0 %v2181, 64
    %v2183 = vpop.permute.xlu0 %2182
    %vm2185 = vcmask 1043971
    %2186 = vst.msk [vmem:[#allocation6] sm:$0x8] %vm2185, %v2183
    %v2187 = vld [vmem:[#allocation5 + $0x4] sm:$0x8]
    %2188 = vst.msk [vmem:[#allocation6 + $0x4] sm:$0x8] %vm2177, %v2187
    %v2189 = vld [vmem:[#allocation5 + $0x8] sm:$0x1]
    %v2191 = vrot.slane %v2189, 5
    %2192 = vrot.lane.b32.xlu0 %v2191, 64
    %v2193 = vpop.permute.xlu0 %2192
    %2195 = vst.msk [vmem:[#allocation6 + $0x4] sm:$0x8] %vm2185, %v2193
    %v2196 = vld [vmem:[#allocation6] sm:$0xff]
    %v2197 = vld [vmem:[%s5] sm:$0xf]
    %v2198 = vld [vmem:[%s5 + $0x4] sm:$0xf]
    %v2199 = vld [vmem:[%s5 + $0x8] sm:$0xf]
    %v2200 = vld [vmem:[%s5 + $0xc] sm:$0xf]
    %v2201 = vld [vmem:[%s5 + $0x10] sm:$0xf]
    %v2202 = vld [vmem:[%s5 + $0x14] sm:$0xf]
    %v2203 = vld [vmem:[%s5 + $0x18] sm:$0xf]
    %v2204 = vld [vmem:[%s5 + $0x1c] sm:$0xf]
    %v2205 = vld [vmem:[%s5 + $0x20] sm:$0xf]
    %v2206 = vld [vmem:[%s5 + $0x24] sm:$0xf]
    %v2207 = vld [vmem:[%s5 + $0x28] sm:$0xf]
    %v2208 = vld [vmem:[%s5 + $0x2c] sm:$0xf]
    %v2209 = vld [vmem:[%s5 + $0x30] sm:$0xf]
    %v2210 = vld [vmem:[%s5 + $0x34] sm:$0xf]
    %v2211 = vld [vmem:[%s5 + $0x38] sm:$0xf]
    %v2212 = vld [vmem:[%s5 + $0x3c] sm:$0xf]
    %v2213 = vld [vmem:[%s5 + $0x40] sm:$0xf]
    %v2214 = vld [vmem:[%s5 + $0x44] sm:$0xf]
    %v2215 = vld [vmem:[%s5 + $0x48] sm:$0xf]
    %v2216 = vld [vmem:[%s5 + $0x4c] sm:$0xf]
    %v2217 = vld [vmem:[%s5 + $0x50] sm:$0xf]
    %v2218 = vld [vmem:[%s5 + $0x54] sm:$0xf]
    %v2219 = vld [vmem:[%s5 + $0x58] sm:$0xf]
    %v2220 = vld [vmem:[%s5 + $0x5c] sm:$0xf]
    %v2221 = vld [vmem:[%s5 + $0x60] sm:$0xf]
    %v2222 = vld [vmem:[%s5 + $0x64] sm:$0xf]
    %v2223 = vld [vmem:[%s5 + $0x68] sm:$0xf]
    %v2224 = vld [vmem:[%s5 + $0x6c] sm:$0xf]
    %v2225 = vld [vmem:[%s5 + $0x70] sm:$0xf]
    %v2226 = vld [vmem:[%s5 + $0x74] sm:$0xf]
    %v2227 = vld [vmem:[%s5 + $0x78] sm:$0xf]
    %v2228 = vld [vmem:[%s5 + $0x7c] sm:$0xf]
    %v2229 = vld [vmem:[%s6] sm:$0x1]
    %v2231 = vlaneseq
    %v2232 = vshrl.u32 %v2231, 7
    %v2233 = vsub.s32 0, %v2232
    %v2234 = vrot.slane %v2229, %v2233
    %v2237 = vunpack.c.l.b16 %v2196
    %v2238 = vunpack.c.h.b16 %v2196
    %v2239 = vpack.c.b16 %v2237, %v2237
    %v2240 = vpack.c.b16 %v2238, %v2238
    %v2275 = vunpack.c.l.b16 %v2197
    %v2276 = vunpack.c.l.b16 %v2198
    %v2277 = vunpack.c.l.b16 %v2199
    %v2278 = vunpack.c.l.b16 %v2200
    %v2279 = vunpack.c.l.b16 %v2201
    %v2280 = vunpack.c.l.b16 %v2202
    %v2281 = vunpack.c.l.b16 %v2203
    %v2282 = vunpack.c.l.b16 %v2204
    %v2283 = vunpack.c.l.b16 %v2205
    %v2284 = vunpack.c.l.b16 %v2206
    %v2285 = vunpack.c.l.b16 %v2207
    %v2286 = vunpack.c.l.b16 %v2208
    %v2287 = vunpack.c.l.b16 %v2209
    %v2288 = vunpack.c.l.b16 %v2210
    %v2289 = vunpack.c.l.b16 %v2211
    %v2290 = vunpack.c.l.b16 %v2212
    %v2291 = vunpack.c.l.b16 %v2213
    %v2292 = vunpack.c.l.b16 %v2214
    %v2293 = vunpack.c.l.b16 %v2215
    %v2294 = vunpack.c.l.b16 %v2216
    %v2295 = vunpack.c.l.b16 %v2217
    %v2296 = vunpack.c.l.b16 %v2218
    %v2297 = vunpack.c.l.b16 %v2219
    %v2298 = vunpack.c.l.b16 %v2220
    %v2299 = vunpack.c.l.b16 %v2221
    %v2300 = vunpack.c.l.b16 %v2222
    %v2301 = vunpack.c.l.b16 %v2223
    %v2302 = vunpack.c.l.b16 %v2224
    %v2303 = vunpack.c.l.b16 %v2225
    %v2304 = vunpack.c.l.b16 %v2226
    %v2305 = vunpack.c.l.b16 %v2227
    %v2306 = vunpack.c.l.b16 %v2228
    %v2307 = vpack.c.b16 %v2276, %v2275
    %v2308 = vpack.c.b16 %v2278, %v2277
    %v2309 = vpack.c.b16 %v2280, %v2279
    %v2310 = vpack.c.b16 %v2282, %v2281
    %v2311 = vpack.c.b16 %v2284, %v2283
    %v2312 = vpack.c.b16 %v2286, %v2285
    %v2313 = vpack.c.b16 %v2288, %v2287
    %v2314 = vpack.c.b16 %v2290, %v2289
    %v2315 = vpack.c.b16 %v2292, %v2291
    %v2316 = vpack.c.b16 %v2294, %v2293
    %v2317 = vpack.c.b16 %v2296, %v2295
    %v2318 = vpack.c.b16 %v2298, %v2297
    %v2319 = vpack.c.b16 %v2300, %v2299
    %v2320 = vpack.c.b16 %v2302, %v2301
    %v2321 = vpack.c.b16 %v2304, %v2303
    %v2322 = vpack.c.b16 %v2306, %v2305
    %2339 = vmatprep.subr.bf16.mxu0 0
    %2340 = vmatpush1.bf16.msra.mxu0 %v2307
    %2341 = vmatprep.subr.bf16.mxu0 0
    %2342 = vmatpush1.bf16.msra.mxu0 %v2308
    %2343 = vmatprep.subr.bf16.mxu0 0
    %2344 = vmatpush1.bf16.msra.mxu0 %v2309
    %2345 = vmatprep.subr.bf16.mxu0 0
    %2346 = vmatpush1.bf16.msra.mxu0 %v2310
    %2347 = vmatprep.subr.bf16.mxu0 0
    %2348 = vmatpush1.bf16.msra.mxu0 %v2311
    %2349 = vmatprep.subr.bf16.mxu0 0
    %2350 = vmatpush1.bf16.msra.mxu0 %v2312
    %2351 = vmatprep.subr.bf16.mxu0 0
    %2352 = vmatpush1.bf16.msra.mxu0 %v2313
    %2353 = vmatprep.subr.bf16.mxu0 0
    %2354 = vmatpush1.bf16.msra.mxu0 %v2314
    %2355 = vmatprep.subr.bf16.mxu0 0
    %2356 = vmatpush1.bf16.msra.mxu0 %v2315
    %2357 = vmatprep.subr.bf16.mxu0 0
    %2358 = vmatpush1.bf16.msra.mxu0 %v2316
    %2359 = vmatprep.subr.bf16.mxu0 0
    %2360 = vmatpush1.bf16.msra.mxu0 %v2317
    %2361 = vmatprep.subr.bf16.mxu0 0
    %2362 = vmatpush1.bf16.msra.mxu0 %v2318
    %2363 = vmatprep.subr.bf16.mxu0 0
    %2364 = vmatpush1.bf16.msra.mxu0 %v2319
    %2365 = vmatprep.subr.bf16.mxu0 0
    %2366 = vmatpush1.bf16.msra.mxu0 %v2320
    %2367 = vmatprep.subr.bf16.mxu0 0
    %2368 = vmatpush1.bf16.msra.mxu0 %v2321
    %2369 = vmatprep.subr.bf16.mxu0 0
    %2370 = vmatpush1.bf16.msra.mxu0 %v2322
    %2371 = vmatprep.mubr.bf16.mxu0 %v2240
    %2372 = vmatmul.mubr.bf16.gmra.mrb[0].mxu0 %v2239
    %v2373 = vpop.f32.mrb[0].mxu0
    %v2374 = vadd.f32 %v2234, %v2373
    %v2375 = vpop.f32.mrb[0].mxu0
    %v2376 = vpop.f32.mrb[0].mxu0
    %v2377 = vpop.f32.mrb[0].mxu0
    %2378 = vdwg.mxu0
    %v2379 = vmax.f32 %v2374, 0.0
    %v2380 = vpack.c.bf16 %v2379, %v2379
    %2381 = vst.msk [vmem:[#allocation7] sm:$0xf] %vm2097, %v2380
    %v2382 = vld [vmem:[#allocation7] sm:$0x1]
    %2383 = vst.msk [vmem:[#allocation8] sm:$0x1] %vm2100, %v2382
    %v2384 = vld [vmem:[#allocation7] sm:$0x2]
    %v2387 = vunpack.c.l.s4 1966171168
    %v2388 = vunpack.c.0.s8 %v2387
    %v2389 = vlaneseq
    %v2390 = vshrl.u32 %v2389, 7
    %v2391 = vsub.s32 %v2388, %v2390
    %v2392 = vrot.slane %v2384, %v2391
    %v2393 = vcombine.high %v2392, %v2392
    %v2395 = vunpack.c.l.s4 1966171168
    %v2396 = vunpack.c.0.s8 %v2395
    %v2397 = vlaneseq
    %v2398 = vshrl.u32 %v2397, 7
    %v2399 = vsub.s32 %v2396, %v2398
    %v2400 = vrot.slane %v2393, %v2399
    %2401 = vrot.lane.b32.xlu0 %v2400, 64
    %v2402 = vpop.permute.xlu0 %2401
    %2404 = vst.msk [vmem:[#allocation8] sm:$0x1] %vm2111, %v2402
    %v2405 = vld [vmem:[#allocation7] sm:$0x4]
    %v2408 = vunpack.c.l.s4 1966171168
    %v2409 = vunpack.c.0.s8 %v2408
    %v2410 = vlaneseq
    %v2411 = vshrl.u32 %v2410, 7
    %v2412 = vsub.s32 %v2409, %v2411
    %v2413 = vrot.slane %v2405, %v2412
    %v2415 = vunpack.c.l.s4 1966171168
    %v2416 = vunpack.c.0.s8 %v2415
    %v2417 = vlaneseq
    %v2418 = vshrl.u32 %v2417, 7
    %v2419 = vsub.s32 %v2416, %v2418
    %v2420 = vrot.slane %v2413, %v2419
    %v2421 = vcombine.high %v2420, %v2420
    %2423 = vst.msk [vmem:[#allocation8 + $0x1] sm:$0x1] %vm2100, %v2421
    %v2424 = vld [vmem:[#allocation7] sm:$0x8]
    %v2427 = vunpack.c.l.s4 1966171168
    %v2428 = vunpack.c.0.s8 %v2427
    %v2429 = vlaneseq
    %v2430 = vshrl.u32 %v2429, 7
    %v2431 = vsub.s32 %v2428, %v2430
    %v2432 = vrot.slane %v2424, %v2431
    %v2433 = vcombine.high %v2432, %v2432
    %v2435 = vunpack.c.l.s4 1966171168
    %v2436 = vunpack.c.0.s8 %v2435
    %v2437 = vlaneseq
    %v2438 = vshrl.u32 %v2437, 7
    %v2439 = vsub.s32 %v2436, %v2438
    %v2440 = vrot.slane %v2433, %v2439
    %v2441 = vcombine.high %v2440, %v2440
    %2442 = vrot.lane.b32.xlu0 %v2441, 64
    %v2443 = vpop.permute.xlu0 %2442
    %2445 = vst.msk [vmem:[#allocation8 + $0x1] sm:$0x1] %vm2111, %v2443
    %v2446 = vld [vmem:[#allocation8] sm:$0x3]
    %v2447 = vld [vmem:[%s7] sm:$0xff]
    %v2448 = vld [vmem:[%s7 + $0x8] sm:$0xff]
    %v2449 = vld [vmem:[%s7 + $0x10] sm:$0xff]
    %v2450 = vld [vmem:[%s7 + $0x18] sm:$0xff]
    %v2451 = vld [vmem:[%s7 + $0x20] sm:$0xff]
    %v2452 = vld [vmem:[%s7 + $0x28] sm:$0xff]
    %v2453 = vld [vmem:[%s7 + $0x30] sm:$0xff]
    %v2454 = vld [vmem:[%s7 + $0x38] sm:$0xff]
    %v2455 = vld [vmem:[%s7 + $0x40] sm:$0xff]
    %v2456 = vld [vmem:[%s7 + $0x48] sm:$0xff]
    %v2457 = vld [vmem:[%s7 + $0x50] sm:$0xff]
    %v2458 = vld [vmem:[%s7 + $0x58] sm:$0xff]
    %v2459 = vld [vmem:[%s7 + $0x60] sm:$0xff]
    %v2460 = vld [vmem:[%s7 + $0x68] sm:$0xff]
    %v2461 = vld [vmem:[%s7 + $0x70] sm:$0xff]
    %v2462 = vld [vmem:[%s7 + $0x78] sm:$0xff]
    %v2463 = vld [vmem:[%s7 + $0x80] sm:$0xff]
    %v2464 = vld [vmem:[%s7 + $0x88] sm:$0xff]
    %v2465 = vld [vmem:[%s7 + $0x90] sm:$0xff]
    %v2466 = vld [vmem:[%s7 + $0x98] sm:$0xff]
    %v2467 = vld [vmem:[%s7 + $0xa0] sm:$0xff]
    %v2468 = vld [vmem:[%s7 + $0xa8] sm:$0xff]
    %v2469 = vld [vmem:[%s7 + $0xb0] sm:$0xff]
    %v2470 = vld [vmem:[%s7 + $0xb8] sm:$0xff]
    %v2471 = vld [vmem:[%s7 + $0xc0] sm:$0xff]
    %v2472 = vld [vmem:[%s7 + $0xc8] sm:$0xff]
    %v2473 = vld [vmem:[%s7 + $0xd0] sm:$0xff]
    %v2474 = vld [vmem:[%s7 + $0xd8] sm:$0xff]
    %v2475 = vld [vmem:[%s7 + $0xe0] sm:$0xff]
    %v2476 = vld [vmem:[%s7 + $0xe8] sm:$0xff]
    %v2477 = vld [vmem:[%s7 + $0xf0] sm:$0xff]
    %v2478 = vld [vmem:[%s7 + $0xf8] sm:$0xff]
    %v2479 = vld [vmem:[%s7 + $0x100] sm:$0xff]
    %v2480 = vld [vmem:[%s7 + $0x108] sm:$0xff]
    %v2481 = vld [vmem:[%s7 + $0x110] sm:$0xff]
    %v2482 = vld [vmem:[%s7 + $0x118] sm:$0xff]
    %v2483 = vld [vmem:[%s7 + $0x120] sm:$0xff]
    %v2484 = vld [vmem:[%s7 + $0x128] sm:$0xff]
    %v2485 = vld [vmem:[%s7 + $0x130] sm:$0xff]
    %v2486 = vld [vmem:[%s7 + $0x138] sm:$0xff]
    %v2487 = vld [vmem:[%s7 + $0x140] sm:$0xff]
    %v2488 = vld [vmem:[%s7 + $0x148] sm:$0xff]
    %v2489 = vld [vmem:[%s7 + $0x150] sm:$0xff]
    %v2490 = vld [vmem:[%s7 + $0x158] sm:$0xff]
    %v2491 = vld [vmem:[%s7 + $0x160] sm:$0xff]
    %v2492 = vld [vmem:[%s7 + $0x168] sm:$0xff]
    %v2493 = vld [vmem:[%s7 + $0x170] sm:$0xff]
    %v2494 = vld [vmem:[%s7 + $0x178] sm:$0xff]
    %v2495 = vld [vmem:[%s7 + $0x180] sm:$0xff]
    %v2496 = vld [vmem:[%s7 + $0x188] sm:$0xff]
    %v2497 = vld [vmem:[%s7 + $0x190] sm:$0xff]
    %v2498 = vld [vmem:[%s7 + $0x198] sm:$0xff]
    %v2499 = vld [vmem:[%s7 + $0x1a0] sm:$0xff]
    %v2500 = vld [vmem:[%s7 + $0x1a8] sm:$0xff]
    %v2501 = vld [vmem:[%s7 + $0x1b0] sm:$0xff]
    %v2502 = vld [vmem:[%s7 + $0x1b8] sm:$0xff]
    %v2503 = vld [vmem:[%s7 + $0x1c0] sm:$0xff]
    %v2504 = vld [vmem:[%s7 + $0x1c8] sm:$0xff]
    %v2505 = vld [vmem:[%s7 + $0x1d0] sm:$0xff]
    %v2506 = vld [vmem:[%s7 + $0x1d8] sm:$0xff]
    %v2507 = vld [vmem:[%s7 + $0x1e0] sm:$0xff]
    %v2508 = vld [vmem:[%s7 + $0x1e8] sm:$0xff]
    %v2509 = vld [vmem:[%s7 + $0x1f0] sm:$0xff]
    %v2510 = vld [vmem:[%s7 + $0x1f8] sm:$0xff]
    %v2511 = vld [vmem:[%s8] sm:$0xf]
    %v2513 = vlaneseq
    %v2514 = vshrl.u32 %v2513, 7
    %v2515 = vsub.s32 0, %v2514
    %v2516 = vrot.slane %v2511, %v2515
    %v2517 = vlaneseq
    %v2518 = vshrl.u32 %v2517, 7
    %v2519 = vsub.s32 1, %v2518
    %v2520 = vrot.slane %v2511, %v2519
    %v2521 = vlaneseq
    %v2522 = vshrl.u32 %v2521, 7
    %v2523 = vsub.s32 2, %v2522
    %v2524 = vrot.slane %v2511, %v2523
    %v2525 = vlaneseq
    %v2526 = vshrl.u32 %v2525, 7
    %v2527 = vsub.s32 3, %v2526
    %v2528 = vrot.slane %v2511, %v2527
    %v2535 = vunpack.c.l.s4 1966171168
    %v2536 = vunpack.c.0.s8 %v2535
    %v2537 = vlaneseq
    %v2538 = vshrl.u32 %v2537, 7
    %v2539 = vsub.s32 %v2536, %v2538
    %v2540 = vrot.slane %v2446, %v2539
    %v2541 = vcombine.high %v2540, %v2540
    %v2543 = vunpack.c.l.s4 1966171168
    %v2544 = vunpack.c.0.s8 %v2543
    %v2545 = vlaneseq
    %v2546 = vshrl.u32 %v2545, 7
    %v2547 = vsub.s32 %v2544, %v2546
    %v2548 = vrot.slane %v2540, %v2547
    %v2550 = vunpack.c.l.s4 1966171168
    %v2551 = vunpack.c.0.s8 %v2550
    %v2552 = vlaneseq
    %v2553 = vshrl.u32 %v2552, 7
    %v2554 = vsub.s32 %v2551, %v2553
    %v2555 = vrot.slane %v2541, %v2554
    %v2622 = vunpack.c.l.b16 %v2447
    %v2623 = vunpack.c.h.b16 %v2447
    %v2624 = vunpack.c.l.b16 %v2448
    %v2625 = vunpack.c.h.b16 %v2448
    %v2626 = vunpack.c.l.b16 %v2449
    %v2627 = vunpack.c.h.b16 %v2449
    %v2628 = vunpack.c.l.b16 %v2450
    %v2629 = vunpack.c.h.b16 %v2450
    %v2630 = vunpack.c.l.b16 %v2451
    %v2631 = vunpack.c.h.b16 %v2451
    %v2632 = vunpack.c.l.b16 %v2452
    %v2633 = vunpack.c.h.b16 %v2452
    %v2634 = vunpack.c.l.b16 %v2453
    %v2635 = vunpack.c.h.b16 %v2453
    %v2636 = vunpack.c.l.b16 %v2454
    %v2637 = vunpack.c.h.b16 %v2454
    %v2638 = vunpack.c.l.b16 %v2455
    %v2639 = vunpack.c.h.b16 %v2455
    %v2640 = vunpack.c.l.b16 %v2456
    %v2641 = vunpack.c.h.b16 %v2456
    %v2642 = vunpack.c.l.b16 %v2457
    %v2643 = vunpack.c.h.b16 %v2457
    %v2644 = vunpack.c.l.b16 %v2458
    %v2645 = vunpack.c.h.b16 %v2458
    %v2646 = vunpack.c.l.b16 %v2459
    %v2647 = vunpack.c.h.b16 %v2459
    %v2648 = vunpack.c.l.b16 %v2460
    %v2649 = vunpack.c.h.b16 %v2460
    %v2650 = vunpack.c.l.b16 %v2461
    %v2651 = vunpack.c.h.b16 %v2461
    %v2652 = vunpack.c.l.b16 %v2462
    %v2653 = vunpack.c.h.b16 %v2462
    %v2654 = vunpack.c.l.b16 %v2463
    %v2655 = vunpack.c.h.b16 %v2463
    %v2656 = vunpack.c.l.b16 %v2464
    %v2657 = vunpack.c.h.b16 %v2464
    %v2658 = vunpack.c.l.b16 %v2465
    %v2659 = vunpack.c.h.b16 %v2465
    %v2660 = vunpack.c.l.b16 %v2466
    %v2661 = vunpack.c.h.b16 %v2466
    %v2662 = vunpack.c.l.b16 %v2467
    %v2663 = vunpack.c.h.b16 %v2467
    %v2664 = vunpack.c.l.b16 %v2468
    %v2665 = vunpack.c.h.b16 %v2468
    %v2666 = vunpack.c.l.b16 %v2469
    %v2667 = vunpack.c.h.b16 %v2469
    %v2668 = vunpack.c.l.b16 %v2470
    %v2669 = vunpack.c.h.b16 %v2470
    %v2670 = vunpack.c.l.b16 %v2471
    %v2671 = vunpack.c.h.b16 %v2471
    %v2672 = vunpack.c.l.b16 %v2472
    %v2673 = vunpack.c.h.b16 %v2472
    %v2674 = vunpack.c.l.b16 %v2473
    %v2675 = vunpack.c.h.b16 %v2473
    %v2676 = vunpack.c.l.b16 %v2474
    %v2677 = vunpack.c.h.b16 %v2474
    %v2678 = vunpack.c.l.b16 %v2475
    %v2679 = vunpack.c.h.b16 %v2475
    %v2680 = vunpack.c.l.b16 %v2476
    %v2681 = vunpack.c.h.b16 %v2476
    %v2682 = vunpack.c.l.b16 %v2477
    %v2683 = vunpack.c.h.b16 %v2477
    %v2684 = vunpack.c.l.b16 %v2478
    %v2685 = vunpack.c.h.b16 %v2478
    %v2686 = vunpack.c.l.b16 %v2479
    %v2687 = vunpack.c.h.b16 %v2479
    %v2688 = vunpack.c.l.b16 %v2480
    %v2689 = vunpack.c.h.b16 %v2480
    %v2690 = vunpack.c.l.b16 %v2481
    %v2691 = vunpack.c.h.b16 %v2481
    %v2692 = vunpack.c.l.b16 %v2482
    %v2693 = vunpack.c.h.b16 %v2482
    %v2694 = vunpack.c.l.b16 %v2483
    %v2695 = vunpack.c.h.b16 %v2483
    %v2696 = vunpack.c.l.b16 %v2484
    %v2697 = vunpack.c.h.b16 %v2484
    %v2698 = vunpack.c.l.b16 %v2485
    %v2699 = vunpack.c.h.b16 %v2485
    %v2700 = vunpack.c.l.b16 %v2486
    %v2701 = vunpack.c.h.b16 %v2486
    %v2702 = vunpack.c.l.b16 %v2487
    %v2703 = vunpack.c.h.b16 %v2487
    %v2704 = vunpack.c.l.b16 %v2488
    %v2705 = vunpack.c.h.b16 %v2488
    %v2706 = vunpack.c.l.b16 %v2489
    %v2707 = vunpack.c.h.b16 %v2489
    %v2708 = vunpack.c.l.b16 %v2490
    %v2709 = vunpack.c.h.b16 %v2490
    %v2710 = vunpack.c.l.b16 %v2491
    %v2711 = vunpack.c.h.b16 %v2491
    %v2712 = vunpack.c.l.b16 %v2492
    %v2713 = vunpack.c.h.b16 %v2492
    %v2714 = vunpack.c.l.b16 %v2493
    %v2715 = vunpack.c.h.b16 %v2493
    %v2716 = vunpack.c.l.b16 %v2494
    %v2717 = vunpack.c.h.b16 %v2494
    %v2718 = vunpack.c.l.b16 %v2495
    %v2719 = vunpack.c.h.b16 %v2495
    %v2720 = vunpack.c.l.b16 %v2496
    %v2721 = vunpack.c.h.b16 %v2496
    %v2722 = vunpack.c.l.b16 %v2497
    %v2723 = vunpack.c.h.b16 %v2497
    %v2724 = vunpack.c.l.b16 %v2498
    %v2725 = vunpack.c.h.b16 %v2498
    %v2726 = vunpack.c.l.b16 %v2499
    %v2727 = vunpack.c.h.b16 %v2499
    %v2728 = vunpack.c.l.b16 %v2500
    %v2729 = vunpack.c.h.b16 %v2500
    %v2730 = vunpack.c.l.b16 %v2501
    %v2731 = vunpack.c.h.b16 %v2501
    %v2732 = vunpack.c.l.b16 %v2502
    %v2733 = vunpack.c.h.b16 %v2502
    %v2734 = vunpack.c.l.b16 %v2503
    %v2735 = vunpack.c.h.b16 %v2503
    %v2736 = vunpack.c.l.b16 %v2504
    %v2737 = vunpack.c.h.b16 %v2504
    %v2738 = vunpack.c.l.b16 %v2505
    %v2739 = vunpack.c.h.b16 %v2505
    %v2740 = vunpack.c.l.b16 %v2506
    %v2741 = vunpack.c.h.b16 %v2506
    %v2742 = vunpack.c.l.b16 %v2507
    %v2743 = vunpack.c.h.b16 %v2507
    %v2744 = vunpack.c.l.b16 %v2508
    %v2745 = vunpack.c.h.b16 %v2508
    %v2746 = vunpack.c.l.b16 %v2509
    %v2747 = vunpack.c.h.b16 %v2509
    %v2748 = vunpack.c.l.b16 %v2510
    %v2749 = vunpack.c.h.b16 %v2510
    %v2750 = vpack.c.b16 %v2626, %v2622
    %v2751 = vpack.c.b16 %v2627, %v2623
    %v2752 = vpack.c.b16 %v2628, %v2624
    %v2753 = vpack.c.b16 %v2629, %v2625
    %v2754 = vpack.c.b16 %v2634, %v2630
    %v2755 = vpack.c.b16 %v2635, %v2631
    %v2756 = vpack.c.b16 %v2636, %v2632
    %v2757 = vpack.c.b16 %v2637, %v2633
    %v2758 = vpack.c.b16 %v2642, %v2638
    %v2759 = vpack.c.b16 %v2643, %v2639
    %v2760 = vpack.c.b16 %v2644, %v2640
    %v2761 = vpack.c.b16 %v2645, %v2641
    %v2762 = vpack.c.b16 %v2650, %v2646
    %v2763 = vpack.c.b16 %v2651, %v2647
    %v2764 = vpack.c.b16 %v2652, %v2648
    %v2765 = vpack.c.b16 %v2653, %v2649
    %v2766 = vpack.c.b16 %v2658, %v2654
    %v2767 = vpack.c.b16 %v2659, %v2655
    %v2768 = vpack.c.b16 %v2660, %v2656
    %v2769 = vpack.c.b16 %v2661, %v2657
    %v2770 = vpack.c.b16 %v2666, %v2662
    %v2771 = vpack.c.b16 %v2667, %v2663
    %v2772 = vpack.c.b16 %v2668, %v2664
    %v2773 = vpack.c.b16 %v2669, %v2665
    %v2774 = vpack.c.b16 %v2674, %v2670
    %v2775 = vpack.c.b16 %v2675, %v2671
    %v2776 = vpack.c.b16 %v2676, %v2672
    %v2777 = vpack.c.b16 %v2677, %v2673
    %v2778 = vpack.c.b16 %v2682, %v2678
    %v2779 = vpack.c.b16 %v2683, %v2679
    %v2780 = vpack.c.b16 %v2684, %v2680
    %v2781 = vpack.c.b16 %v2685, %v2681
    %v2782 = vpack.c.b16 %v2690, %v2686
    %v2783 = vpack.c.b16 %v2691, %v2687
    %v2784 = vpack.c.b16 %v2692, %v2688
    %v2785 = vpack.c.b16 %v2693, %v2689
    %v2786 = vpack.c.b16 %v2698, %v2694
    %v2787 = vpack.c.b16 %v2699, %v2695
    %v2788 = vpack.c.b16 %v2700, %v2696
    %v2789 = vpack.c.b16 %v2701, %v2697
    %v2790 = vpack.c.b16 %v2706, %v2702
    %v2791 = vpack.c.b16 %v2707, %v2703
    %v2792 = vpack.c.b16 %v2708, %v2704
    %v2793 = vpack.c.b16 %v2709, %v2705
    %v2794 = vpack.c.b16 %v2714, %v2710
    %v2795 = vpack.c.b16 %v2715, %v2711
    %v2796 = vpack.c.b16 %v2716, %v2712
    %v2797 = vpack.c.b16 %v2717, %v2713
    %v2798 = vpack.c.b16 %v2722, %v2718
    %v2799 = vpack.c.b16 %v2723, %v2719
    %v2800 = vpack.c.b16 %v2724, %v2720
    %v2801 = vpack.c.b16 %v2725, %v2721
    %v2802 = vpack.c.b16 %v2730, %v2726
    %v2803 = vpack.c.b16 %v2731, %v2727
    %v2804 = vpack.c.b16 %v2732, %v2728
    %v2805 = vpack.c.b16 %v2733, %v2729
    %v2806 = vpack.c.b16 %v2738, %v2734
    %v2807 = vpack.c.b16 %v2739, %v2735
    %v2808 = vpack.c.b16 %v2740, %v2736
    %v2809 = vpack.c.b16 %v2741, %v2737
    %v2810 = vpack.c.b16 %v2746, %v2742
    %v2811 = vpack.c.b16 %v2747, %v2743
    %v2812 = vpack.c.b16 %v2748, %v2744
    %v2813 = vpack.c.b16 %v2749, %v2745
    %2878 = vmatprep.subr.bf16.mxu0 %v2751
    %2879 = vmatpush1.bf16.msra.mxu0 %v2750
    %2880 = vmatprep.subr.bf16.mxu0 %v2755
    %2881 = vmatpush1.bf16.msra.mxu0 %v2754
    %2882 = vmatprep.subr.bf16.mxu0 %v2759
    %2883 = vmatpush1.bf16.msra.mxu0 %v2758
    %2884 = vmatprep.subr.bf16.mxu0 %v2763
    %2885 = vmatpush1.bf16.msra.mxu0 %v2762
    %2886 = vmatprep.subr.bf16.mxu0 %v2767
    %2887 = vmatpush1.bf16.msra.mxu0 %v2766
    %2888 = vmatprep.subr.bf16.mxu0 %v2771
    %2889 = vmatpush1.bf16.msra.mxu0 %v2770
    %2890 = vmatprep.subr.bf16.mxu0 %v2775
    %2891 = vmatpush1.bf16.msra.mxu0 %v2774
    %2892 = vmatprep.subr.bf16.mxu0 %v2779
    %2893 = vmatpush1.bf16.msra.mxu0 %v2778
    %2894 = vmatprep.subr.bf16.mxu0 %v2783
    %2895 = vmatpush1.bf16.msra.mxu0 %v2782
    %2896 = vmatprep.subr.bf16.mxu0 %v2787
    %2897 = vmatpush1.bf16.msra.mxu0 %v2786
    %2898 = vmatprep.subr.bf16.mxu0 %v2791
    %2899 = vmatpush1.bf16.msra.mxu0 %v2790
    %2900 = vmatprep.subr.bf16.mxu0 %v2795
    %2901 = vmatpush1.bf16.msra.mxu0 %v2794
    %2902 = vmatprep.subr.bf16.mxu0 %v2799
    %2903 = vmatpush1.bf16.msra.mxu0 %v2798
    %2904 = vmatprep.subr.bf16.mxu0 %v2803
    %2905 = vmatpush1.bf16.msra.mxu0 %v2802
    %2906 = vmatprep.subr.bf16.mxu0 %v2807
    %2907 = vmatpush1.bf16.msra.mxu0 %v2806
    %2908 = vmatprep.subr.bf16.mxu0 %v2811
    %2909 = vmatpush1.bf16.msra.mxu0 %v2810
    %2910 = vmatprep.mubr.bf16.mxu0 %v2555
    %2911 = vmatmul.mubr.bf16.gmra.mrb[0].mxu0 %v2548
    %v2912 = vpop.f32.mrb[0].mxu0
    %v2913 = vadd.f32 %v2516, %v2912
    %v2914 = vpop.f32.mrb[0].mxu0
    %v2915 = vadd.f32 %v2520, %v2914
    %v2916 = vpop.f32.mrb[0].mxu0
    %v2917 = vpop.f32.mrb[0].mxu0
    %2918 = vdwg.mxu0
    %2919 = vmatprep.subr.bf16.mxu0 %v2753
    %2920 = vmatpush1.bf16.msra.mxu0 %v2752
    %2921 = vmatprep.subr.bf16.mxu0 %v2757
    %2922 = vmatpush1.bf16.msra.mxu0 %v2756
    %2923 = vmatprep.subr.bf16.mxu0 %v2761
    %2924 = vmatpush1.bf16.msra.mxu0 %v2760
    %2925 = vmatprep.subr.bf16.mxu0 %v2765
    %2926 = vmatpush1.bf16.msra.mxu0 %v2764
    %2927 = vmatprep.subr.bf16.mxu0 %v2769
    %2928 = vmatpush1.bf16.msra.mxu0 %v2768
    %2929 = vmatprep.subr.bf16.mxu0 %v2773
    %2930 = vmatpush1.bf16.msra.mxu0 %v2772
    %2931 = vmatprep.subr.bf16.mxu0 %v2777
    %2932 = vmatpush1.bf16.msra.mxu0 %v2776
    %2933 = vmatprep.subr.bf16.mxu0 %v2781
    %2934 = vmatpush1.bf16.msra.mxu0 %v2780
    %2935 = vmatprep.subr.bf16.mxu0 %v2785
    %2936 = vmatpush1.bf16.msra.mxu0 %v2784
    %2937 = vmatprep.subr.bf16.mxu0 %v2789
    %2938 = vmatpush1.bf16.msra.mxu0 %v2788
    %2939 = vmatprep.subr.bf16.mxu0 %v2793
    %2940 = vmatpush1.bf16.msra.mxu0 %v2792
    %2941 = vmatprep.subr.bf16.mxu0 %v2797
    %2942 = vmatpush1.bf16.msra.mxu0 %v2796
    %2943 = vmatprep.subr.bf16.mxu0 %v2801
    %2944 = vmatpush1.bf16.msra.mxu0 %v2800
    %2945 = vmatprep.subr.bf16.mxu0 %v2805
    %2946 = vmatpush1.bf16.msra.mxu0 %v2804
    %2947 = vmatprep.subr.bf16.mxu0 %v2809
    %2948 = vmatpush1.bf16.msra.mxu0 %v2808
    %2949 = vmatprep.subr.bf16.mxu0 %v2813
    %2950 = vmatpush1.bf16.msra.mxu0 %v2812
    %2951 = vmatprep.mubr.bf16.mxu0 %v2555
    %2952 = vmatmul.mubr.bf16.gmra.mrb[0].mxu0 %v2548
    %v2953 = vpop.f32.mrb[0].mxu0
    %v2954 = vadd.f32 %v2524, %v2953
    %v2955 = vpop.f32.mrb[0].mxu0
    %v2956 = vadd.f32 %v2528, %v2955
    %v2957 = vpop.f32.mrb[0].mxu0
    %v2958 = vpop.f32.mrb[0].mxu0
    %2959 = vdwg.mxu0
    %v2960 = vmax.f32 %v2913, 0.0
    %v2961 = vmax.f32 %v2915, 0.0
    %v2962 = vmax.f32 %v2954, 0.0
    %v2963 = vmax.f32 %v2956, 0.0
    %v2964 = vpack.c.bf16 %v2960, %v2960
    %v2965 = vpack.c.bf16 %v2961, %v2961
    %v2966 = vpack.c.bf16 %v2962, %v2962
    %v2967 = vpack.c.bf16 %v2963, %v2963
    %v2968 = vld [vmem:[%s9] sm:$0xf]
    %v2969 = vld [vmem:[%s9 + $0x4] sm:$0xf]
    %v2970 = vld [vmem:[%s9 + $0x8] sm:$0xf]
    %v2971 = vld [vmem:[%s9 + $0xc] sm:$0xf]
    %v2972 = vld [vmem:[%s9 + $0x10] sm:$0xf]
    %v2973 = vld [vmem:[%s9 + $0x14] sm:$0xf]
    %v2974 = vld [vmem:[%s9 + $0x18] sm:$0xf]
    %v2975 = vld [vmem:[%s9 + $0x1c] sm:$0xf]
    %v2976 = vld [vmem:[%s9 + $0x20] sm:$0xf]
    %v2977 = vld [vmem:[%s9 + $0x24] sm:$0xf]
    %v2978 = vld [vmem:[%s9 + $0x28] sm:$0xf]
    %v2979 = vld [vmem:[%s9 + $0x2c] sm:$0xf]
    %v2980 = vld [vmem:[%s9 + $0x30] sm:$0xf]
    %v2981 = vld [vmem:[%s9 + $0x34] sm:$0xf]
    %v2982 = vld [vmem:[%s9 + $0x38] sm:$0xf]
    %v2983 = vld [vmem:[%s9 + $0x3c] sm:$0xf]
    %v2984 = vld [vmem:[%s9 + $0x40] sm:$0xf]
    %v2985 = vld [vmem:[%s9 + $0x44] sm:$0xf]
    %v2986 = vld [vmem:[%s9 + $0x48] sm:$0xf]
    %v2987 = vld [vmem:[%s9 + $0x4c] sm:$0xf]
    %v2988 = vld [vmem:[%s9 + $0x50] sm:$0xf]
    %v2989 = vld [vmem:[%s9 + $0x54] sm:$0xf]
    %v2990 = vld [vmem:[%s9 + $0x58] sm:$0xf]
    %v2991 = vld [vmem:[%s9 + $0x5c] sm:$0xf]
    %v2992 = vld [vmem:[%s9 + $0x60] sm:$0xf]
    %v2993 = vld [vmem:[%s9 + $0x64] sm:$0xf]
    %v2994 = vld [vmem:[%s9 + $0x68] sm:$0xf]
    %v2995 = vld [vmem:[%s9 + $0x6c] sm:$0xf]
    %v2996 = vld [vmem:[%s9 + $0x70] sm:$0xf]
    %v2997 = vld [vmem:[%s9 + $0x74] sm:$0xf]
    %v2998 = vld [vmem:[%s9 + $0x78] sm:$0xf]
    %v2999 = vld [vmem:[%s9 + $0x7c] sm:$0xf]
    %v3000 = vld [vmem:[%s9 + $0x80] sm:$0xf]
    %v3001 = vld [vmem:[%s9 + $0x84] sm:$0xf]
    %v3002 = vld [vmem:[%s9 + $0x88] sm:$0xf]
    %v3003 = vld [vmem:[%s9 + $0x8c] sm:$0xf]
    %v3004 = vld [vmem:[%s9 + $0x90] sm:$0xf]
    %v3005 = vld [vmem:[%s9 + $0x94] sm:$0xf]
    %v3006 = vld [vmem:[%s9 + $0x98] sm:$0xf]
    %v3007 = vld [vmem:[%s9 + $0x9c] sm:$0xf]
    %v3008 = vld [vmem:[%s9 + $0xa0] sm:$0xf]
    %v3009 = vld [vmem:[%s9 + $0xa4] sm:$0xf]
    %v3010 = vld [vmem:[%s9 + $0xa8] sm:$0xf]
    %v3011 = vld [vmem:[%s9 + $0xac] sm:$0xf]
    %v3012 = vld [vmem:[%s9 + $0xb0] sm:$0xf]
    %v3013 = vld [vmem:[%s9 + $0xb4] sm:$0xf]
    %v3014 = vld [vmem:[%s9 + $0xb8] sm:$0xf]
    %v3015 = vld [vmem:[%s9 + $0xbc] sm:$0xf]
    %v3016 = vld [vmem:[%s9 + $0xc0] sm:$0xf]
    %v3017 = vld [vmem:[%s9 + $0xc4] sm:$0xf]
    %v3018 = vld [vmem:[%s9 + $0xc8] sm:$0xf]
    %v3019 = vld [vmem:[%s9 + $0xcc] sm:$0xf]
    %v3020 = vld [vmem:[%s9 + $0xd0] sm:$0xf]
    %v3021 = vld [vmem:[%s9 + $0xd4] sm:$0xf]
    %v3022 = vld [vmem:[%s9 + $0xd8] sm:$0xf]
    %v3023 = vld [vmem:[%s9 + $0xdc] sm:$0xf]
    %v3024 = vld [vmem:[%s9 + $0xe0] sm:$0xf]
    %v3025 = vld [vmem:[%s9 + $0xe4] sm:$0xf]
    %v3026 = vld [vmem:[%s9 + $0xe8] sm:$0xf]
    %v3027 = vld [vmem:[%s9 + $0xec] sm:$0xf]
    %v3028 = vld [vmem:[%s9 + $0xf0] sm:$0xf]
    %v3029 = vld [vmem:[%s9 + $0xf4] sm:$0xf]
    %v3030 = vld [vmem:[%s9 + $0xf8] sm:$0xf]
    %v3031 = vld [vmem:[%s9 + $0xfc] sm:$0xf]
    %v3032 = vld [vmem:[%s10] sm:$0x1]
    %v3034 = vlaneseq
    %v3035 = vshrl.u32 %v3034, 7
    %v3036 = vsub.s32 0, %v3035
    %v3037 = vrot.slane %v3032, %v3036
    %v3103 = vunpack.c.l.b16 %v2968
    %v3104 = vunpack.c.l.b16 %v2969
    %v3105 = vunpack.c.l.b16 %v2970
    %v3106 = vunpack.c.l.b16 %v2971
    %v3107 = vunpack.c.l.b16 %v2972
    %v3108 = vunpack.c.l.b16 %v2973
    %v3109 = vunpack.c.l.b16 %v2974
    %v3110 = vunpack.c.l.b16 %v2975
    %v3111 = vunpack.c.l.b16 %v2976
    %v3112 = vunpack.c.l.b16 %v2977
    %v3113 = vunpack.c.l.b16 %v2978
    %v3114 = vunpack.c.l.b16 %v2979
    %v3115 = vunpack.c.l.b16 %v2980
    %v3116 = vunpack.c.l.b16 %v2981
    %v3117 = vunpack.c.l.b16 %v2982
    %v3118 = vunpack.c.l.b16 %v2983
    %v3119 = vunpack.c.l.b16 %v2984
    %v3120 = vunpack.c.l.b16 %v2985
    %v3121 = vunpack.c.l.b16 %v2986
    %v3122 = vunpack.c.l.b16 %v2987
    %v3123 = vunpack.c.l.b16 %v2988
    %v3124 = vunpack.c.l.b16 %v2989
    %v3125 = vunpack.c.l.b16 %v2990
    %v3126 = vunpack.c.l.b16 %v2991
    %v3127 = vunpack.c.l.b16 %v2992
    %v3128 = vunpack.c.l.b16 %v2993
    %v3129 = vunpack.c.l.b16 %v2994
    %v3130 = vunpack.c.l.b16 %v2995
    %v3131 = vunpack.c.l.b16 %v2996
    %v3132 = vunpack.c.l.b16 %v2997
    %v3133 = vunpack.c.l.b16 %v2998
    %v3134 = vunpack.c.l.b16 %v2999
    %v3135 = vunpack.c.l.b16 %v3000
    %v3136 = vunpack.c.l.b16 %v3001
    %v3137 = vunpack.c.l.b16 %v3002
    %v3138 = vunpack.c.l.b16 %v3003
    %v3139 = vunpack.c.l.b16 %v3004
    %v3140 = vunpack.c.l.b16 %v3005
    %v3141 = vunpack.c.l.b16 %v3006
    %v3142 = vunpack.c.l.b16 %v3007
    %v3143 = vunpack.c.l.b16 %v3008
    %v3144 = vunpack.c.l.b16 %v3009
    %v3145 = vunpack.c.l.b16 %v3010
    %v3146 = vunpack.c.l.b16 %v3011
    %v3147 = vunpack.c.l.b16 %v3012
    %v3148 = vunpack.c.l.b16 %v3013
    %v3149 = vunpack.c.l.b16 %v3014
    %v3150 = vunpack.c.l.b16 %v3015
    %v3151 = vunpack.c.l.b16 %v3016
    %v3152 = vunpack.c.l.b16 %v3017
    %v3153 = vunpack.c.l.b16 %v3018
    %v3154 = vunpack.c.l.b16 %v3019
    %v3155 = vunpack.c.l.b16 %v3020
    %v3156 = vunpack.c.l.b16 %v3021
    %v3157 = vunpack.c.l.b16 %v3022
    %v3158 = vunpack.c.l.b16 %v3023
    %v3159 = vunpack.c.l.b16 %v3024
    %v3160 = vunpack.c.l.b16 %v3025
    %v3161 = vunpack.c.l.b16 %v3026
    %v3162 = vunpack.c.l.b16 %v3027
    %v3163 = vunpack.c.l.b16 %v3028
    %v3164 = vunpack.c.l.b16 %v3029
    %v3165 = vunpack.c.l.b16 %v3030
    %v3166 = vunpack.c.l.b16 %v3031
    %v3167 = vpack.c.b16 %v3104, %v3103
    %v3168 = vpack.c.b16 %v3106, %v3105
    %v3169 = vpack.c.b16 %v3108, %v3107
    %v3170 = vpack.c.b16 %v3110, %v3109
    %v3171 = vpack.c.b16 %v3112, %v3111
    %v3172 = vpack.c.b16 %v3114, %v3113
    %v3173 = vpack.c.b16 %v3116, %v3115
    %v3174 = vpack.c.b16 %v3118, %v3117
    %v3175 = vpack.c.b16 %v3120, %v3119
    %v3176 = vpack.c.b16 %v3122, %v3121
    %v3177 = vpack.c.b16 %v3124, %v3123
    %v3178 = vpack.c.b16 %v3126, %v3125
    %v3179 = vpack.c.b16 %v3128, %v3127
    %v3180 = vpack.c.b16 %v3130, %v3129
    %v3181 = vpack.c.b16 %v3132, %v3131
    %v3182 = vpack.c.b16 %v3134, %v3133
    %v3183 = vpack.c.b16 %v3136, %v3135
    %v3184 = vpack.c.b16 %v3138, %v3137
    %v3185 = vpack.c.b16 %v3140, %v3139
    %v3186 = vpack.c.b16 %v3142, %v3141
    %v3187 = vpack.c.b16 %v3144, %v3143
    %v3188 = vpack.c.b16 %v3146, %v3145
    %v3189 = vpack.c.b16 %v3148, %v3147
    %v3190 = vpack.c.b16 %v3150, %v3149
    %v3191 = vpack.c.b16 %v3152, %v3151
    %v3192 = vpack.c.b16 %v3154, %v3153
    %v3193 = vpack.c.b16 %v3156, %v3155
    %v3194 = vpack.c.b16 %v3158, %v3157
    %v3195 = vpack.c.b16 %v3160, %v3159
    %v3196 = vpack.c.b16 %v3162, %v3161
    %v3197 = vpack.c.b16 %v3164, %v3163
    %v3198 = vpack.c.b16 %v3166, %v3165
    %3231 = vmatprep.subr.bf16.mxu0 0
    %3232 = vmatpush1.bf16.msra.mxu0 %v3167
    %3233 = vmatprep.subr.bf16.mxu0 0
    %3234 = vmatpush1.bf16.msra.mxu0 %v3168
    %3235 = vmatprep.subr.bf16.mxu0 0
    %3236 = vmatpush1.bf16.msra.mxu0 %v3169
    %3237 = vmatprep.subr.bf16.mxu0 0
    %3238 = vmatpush1.bf16.msra.mxu0 %v3170
    %3239 = vmatprep.subr.bf16.mxu0 0
    %3240 = vmatpush1.bf16.msra.mxu0 %v3171
    %3241 = vmatprep.subr.bf16.mxu0 0
    %3242 = vmatpush1.bf16.msra.mxu0 %v3172
    %3243 = vmatprep.subr.bf16.mxu0 0
    %3244 = vmatpush1.bf16.msra.mxu0 %v3173
    %3245 = vmatprep.subr.bf16.mxu0 0
    %3246 = vmatpush1.bf16.msra.mxu0 %v3174
    %3247 = vmatprep.subr.bf16.mxu0 0
    %3248 = vmatpush1.bf16.msra.mxu0 %v3175
    %3249 = vmatprep.subr.bf16.mxu0 0
    %3250 = vmatpush1.bf16.msra.mxu0 %v3176
    %3251 = vmatprep.subr.bf16.mxu0 0
    %3252 = vmatpush1.bf16.msra.mxu0 %v3177
    %3253 = vmatprep.subr.bf16.mxu0 0
    %3254 = vmatpush1.bf16.msra.mxu0 %v3178
    %3255 = vmatprep.subr.bf16.mxu0 0
    %3256 = vmatpush1.bf16.msra.mxu0 %v3179
    %3257 = vmatprep.subr.bf16.mxu0 0
    %3258 = vmatpush1.bf16.msra.mxu0 %v3180
    %3259 = vmatprep.subr.bf16.mxu0 0
    %3260 = vmatpush1.bf16.msra.mxu0 %v3181
    %3261 = vmatprep.subr.bf16.mxu0 0
    %3262 = vmatpush1.bf16.msra.mxu0 %v3182
    %3263 = vmatprep.mubr.bf16.mxu0 %v2965
    %3264 = vmatmul.mubr.bf16.gmra.mrb[0].mxu0 %v2964
    %v3265 = vpop.f32.mrb[0].mxu0
    %v3266 = vadd.f32 %v3037, %v3265
    %v3267 = vpop.f32.mrb[0].mxu0
    %v3268 = vpop.f32.mrb[0].mxu0
    %v3269 = vpop.f32.mrb[0].mxu0
    %3270 = vdwg.mxu0
    %3271 = vmatprep.subr.bf16.mxu0 0
    %3272 = vmatpush1.bf16.msra.mxu0 %v3183
    %3273 = vmatprep.subr.bf16.mxu0 0
    %3274 = vmatpush1.bf16.msra.mxu0 %v3184
    %3275 = vmatprep.subr.bf16.mxu0 0
    %3276 = vmatpush1.bf16.msra.mxu0 %v3185
    %3277 = vmatprep.subr.bf16.mxu0 0
    %3278 = vmatpush1.bf16.msra.mxu0 %v3186
    %3279 = vmatprep.subr.bf16.mxu0 0
    %3280 = vmatpush1.bf16.msra.mxu0 %v3187
    %3281 = vmatprep.subr.bf16.mxu0 0
    %3282 = vmatpush1.bf16.msra.mxu0 %v3188
    %3283 = vmatprep.subr.bf16.mxu0 0
    %3284 = vmatpush1.bf16.msra.mxu0 %v3189
    %3285 = vmatprep.subr.bf16.mxu0 0
    %3286 = vmatpush1.bf16.msra.mxu0 %v3190
    %3287 = vmatprep.subr.bf16.mxu0 0
    %3288 = vmatpush1.bf16.msra.mxu0 %v3191
    %3289 = vmatprep.subr.bf16.mxu0 0
    %3290 = vmatpush1.bf16.msra.mxu0 %v3192
    %3291 = vmatprep.subr.bf16.mxu0 0
    %3292 = vmatpush1.bf16.msra.mxu0 %v3193
    %3293 = vmatprep.subr.bf16.mxu0 0
    %3294 = vmatpush1.bf16.msra.mxu0 %v3194
    %3295 = vmatprep.subr.bf16.mxu0 0
    %3296 = vmatpush1.bf16.msra.mxu0 %v3195
    %3297 = vmatprep.subr.bf16.mxu0 0
    %3298 = vmatpush1.bf16.msra.mxu0 %v3196
    %3299 = vmatprep.subr.bf16.mxu0 0
    %3300 = vmatpush1.bf16.msra.mxu0 %v3197
    %3301 = vmatprep.subr.bf16.mxu0 0
    %3302 = vmatpush1.bf16.msra.mxu0 %v3198
    %3303 = vmatprep.mubr.bf16.mxu0 %v2967
    %3304 = vmatmul.mubr.bf16.gmra.mrb[0].mxu0 %v2966
    %v3305 = vpop.f32.mrb[0].mxu0
    %v3306 = vadd.f32 %v3266, %v3305
    %v3307 = vpop.f32.mrb[0].mxu0
    %v3308 = vpop.f32.mrb[0].mxu0
    %v3309 = vpop.f32.mrb[0].mxu0
    %3310 = vdwg.mxu0
    %3311 = vst [vmem:[#allocation9] sm:$0x3] %v3306
    // Predicated region
    $region46: #{_forward.1} parent=1 // pred_check
      _
    $region47: #{_forward.1} parent=1 // pred_check_branch
      %3313 = sbr.rel (0) target = $region49
    $region48: #{_forward.1} parent=1 // pred_region
      %s3315 = ssub.s32 32, 32
      %3316 = vsyncadd [#allocation10], %s3315
      %s3318 = sshll.u32 [#allocation9], 4
      %s3319 = int_to_ptr.vmem [resolvable:$true] %s3318
      %3321 = dma.vmem_to_hbm [thread:$0]  %s3319, 32, %s11, [#allocation10]
    $region49: #{_forward.1} parent=1 // pred_fallthru
      _
    // Predicated region
    $region50: #{_forward.1} parent=1 // pred_check
      _
    $region51: #{_forward.1} parent=1 // pred_check_branch
      %3323 = sbr.rel (0) target = $region53
    $region52: #{_forward.1} parent=1 // pred_region
      %3324 = dma.done [#allocation10], 32
    $region53: #{_forward.1} parent=1 // pred_fallthru
      _
    %3325 = vsyncpa [#allocation10], 1

</llo_original>
